<compile_context>
chip_gen: v5e
topology: v5e:2x2
jax: 0.10.0
libtpu: 0.0.40
codegen_flags: <defaults>
</compile_context>

<pallas_src>
import numpy as np
import jax
import jax.numpy as jnp
from jax.experimental import pallas as pl
from jax.experimental.pallas import tpu as pltpu

_PAD = 8  # sublane-aligned storage offset of the image interior in scratch


# ----------------------------- Pallas kernel --------------------------------
def _catup_fused_kernel(x1_ref, u2_ref, w1_ref, w2_ref, o_ref,
                        xpad_ref, hpad_ref):
    # x1_ref : (1, H, W, C1)            inputs1 tile (NHWC)
    # u2_ref : (1, H, W, C2)            upsampled inputs2 tile (NHWC)
    # w1_ref : (9*Cin, Cout)            conv1 weights, im2col row = (ky,kx,ci)
    # w2_ref : (9*Cout, Cout)           conv2 weights, im2col row = (ky,kx,ci)
    # o_ref  : (1, Cout, H*W)           lane-dense (256-lane) transposed output
    # xpad_ref: (H+2, W+2*_PAD, Cin)    VMEM scratch: zero-padded concat input
    # hpad_ref: (H+2, W+2*_PAD, Cout)   VMEM scratch: zero-padded conv1 output
    _, H, W, C1 = x1_ref.shape
    C2 = u2_ref.shape[-1]
    Cin = C1 + C2
    Cout = w1_ref.shape[-1]

    # Zero the halos every grid step (scratch persists across steps / cores,
    # so do not rely on a program_id == 0 init under "parallel" semantics).
    xpad_ref[...] = jnp.zeros_like(xpad_ref)
    hpad_ref[...] = jnp.zeros_like(hpad_ref)

    # Fused channel concat straight into the padded conv1 input.
    # Interior lives at rows [1, H+1) and sublane-aligned cols [_PAD, _PAD+W).
    xpad_ref[1:H + 1, _PAD:_PAD + W, :] = jnp.concatenate(
        [x1_ref[0], u2_ref[0]], axis=-1)

    def conv3x3_relu(src_ref, w_ref, cin):
        # im2col built once: 9 shifted window reads -> (H, W, 9*cin),
        # collapsed to (H*W, 9*cin), then a single MXU matmul (K = 9*cin).
        cols = [src_ref[ky:ky + H, _PAD - 1 + kx:_PAD - 1 + kx + W, :]
                for ky in range(3) for kx in range(3)]
        patches = jnp.concatenate(cols, axis=-1).reshape(H * W, 9 * cin)
        acc = jnp.dot(patches, w_ref[...], preferred_element_type=jnp.float32)
        return jnp.maximum(acc, 0.0)                      # (H*W, Cout) f32

    # conv1 + ReLU; activation stays resident in VMEM (no HBM round trip).
    h1 = conv3x3_relu(xpad_ref, w1_ref, Cin)
    hpad_ref[1:H + 1, _PAD:_PAD + W, :] = h1.reshape(H, W, Cout)

    # conv2 + ReLU; store transposed so the last dim is H*W (= 256) lanes:
    # dense stores, and (N, Cout, H*W) reshapes to NCHW for free outside.
    h2 = conv3x3_relu(hpad_ref, w2_ref, Cout)
    o_ref[...] = h2.T.reshape(1, Cout, H * W).astype(o_ref.dtype)


def catup_pallas(x1_nhwc, u2_nhwc, w1_mat, w2_mat):
    """Fused concat + conv1 + ReLU + conv2 + ReLU.  Returns (N, Cout, H*W)."""
    N, H, W, C1 = x1_nhwc.shape
    C2 = u2_nhwc.shape[-1]
    Cin = C1 + C2
    Cout = w1_mat.shape[-1]
    assert w1_mat.shape == (9 * Cin, Cout)
    assert w2_mat.shape == (9 * Cout, Cout)

    return pl.pallas_call(
        _catup_fused_kernel,
        out_shape=jax.ShapeDtypeStruct((N, Cout, H * W), x1_nhwc.dtype),
        grid=(N,),
        in_specs=[
            pl.BlockSpec((1, H, W, C1), lambda i: (i, 0, 0, 0)),
            pl.BlockSpec((1, H, W, C2), lambda i: (i, 0, 0, 0)),
            pl.BlockSpec((9 * Cin, Cout), lambda i: (0, 0)),
            pl.BlockSpec((9 * Cout, Cout), lambda i: (0, 0)),
        ],
        out_specs=pl.BlockSpec((1, Cout, H * W), lambda i: (i, 0, 0)),
        scratch_shapes=[
            pltpu.VMEM((H + 2, W + 2 * _PAD, Cin), jnp.float32),
            pltpu.VMEM((H + 2, W + 2 * _PAD, Cout), jnp.float32),
        ],
        compiler_params=pltpu.CompilerParams(
            dimension_semantics=("parallel",)),
    )(x1_nhwc, u2_nhwc, w1_mat, w2_mat)


# ------------------------------ JAX glue -------------------------------------
def _bilinear_matrix_np(n_in, n_out):
    """(n_out, n_in) interpolation matrix, bilinear, align_corners=True (numpy,
    so it constant-folds at trace time; no scatter HLOs)."""
    if n_in == 1:
        return np.ones((n_out, 1), np.float32)
    src = np.arange(n_out, dtype=np.float64) * (n_in - 1) / (n_out - 1)
    lo = np.clip(np.floor(src).astype(np.int64), 0, n_in - 2)
    frac = (src - lo).astype(np.float32)
    a = np.zeros((n_out, n_in), np.float32)
    rows = np.arange(n_out)
    a[rows, lo] += 1.0 - frac
    a[rows, lo + 1] += frac
    return a


def _upsample2x_bilinear_nhwc(x):
    """nn.Upsample(scale_factor=2, mode='bilinear', align_corners=True), NHWC."""
    n, h, w, c = x.shape
    ah = jnp.asarray(_bilinear_matrix_np(h, 2 * h), x.dtype)
    aw = jnp.asarray(_bilinear_matrix_np(w, 2 * w), x.dtype)
    return jnp.einsum('Hh,nhwc,Ww->nHWc', ah, x, aw)


def _upsample2x_bilinear_nchw(x):
    n, c, h, w = x.shape
    ah = jnp.asarray(_bilinear_matrix_np(h, 2 * h), x.dtype)
    aw = jnp.asarray(_bilinear_matrix_np(w, 2 * w), x.dtype)
    return jnp.einsum('Hh,nchw,Ww->ncHW', ah, x, aw)


def cat_up_forward(inputs1, inputs2, w1_oihw, w2_oihw):
    """catUp.forward.  inputs1 (N,C1,H,W), inputs2 (N,C2,H/2,W/2) -> NCHW."""
    n, _, h, w = inputs1.shape
    cout, cin = w1_oihw.shape[0], w1_oihw.shape[1]
    # NCHW -> NHWC for the hot path (channels on the lane axis in-kernel).
    x1 = jnp.transpose(inputs1, (0, 2, 3, 1))
    x2 = jnp.transpose(inputs2, (0, 2, 3, 1))
    u2 = _upsample2x_bilinear_nhwc(x2)                    # tiny half-res tensor
    # Conv weights OIHW -> (ky,kx,ci) x co, matching the im2col column order.
    w1_mat = jnp.transpose(w1_oihw, (2, 3, 1, 0)).reshape(9 * cin, cout)
    w2_mat = jnp.transpose(w2_oihw, (2, 3, 1, 0)).reshape(9 * cout, cout)
    y = catup_pallas(x1, u2, w1_mat, w2_mat)              # (N, Cout, H*W)
    return y.reshape(n, cout, h, w)                       # NCHW, free reshape


# ------------------------------- main -----------------------------------------
if __name__ == "__main__":
    key = jax.random.PRNGKey(0)
    k1, k2, k3, k4 = jax.random.split(key, 4)

    # inputs1 = (2, 4, 16, 16), inputs2 = (2, 4, 8, 8) -> in_size=8, out_size=8
    N, C1, H, W = 2, 4, 16, 16
    C2 = 4
    in_size = C1 + C2
    out_size = 8

    inputs1 = jax.random.normal(k1, (N, C1, H, W), jnp.float32)
    inputs2 = jax.random.normal(k2, (N, C2, H // 2, W // 2), jnp.float32)

    # PyTorch Conv2d weight layout (OIHW), bias=False.
    w1_oihw = jax.random.normal(k3, (out_size, in_size, 3, 3), jnp.float32) * 0.1
    w2_oihw = jax.random.normal(k4, (out_size, out_size, 3, 3), jnp.float32) * 0.1

    out = jax.jit(cat_up_forward)(inputs1, inputs2, w1_oihw, w2_oihw)
    out = jax.block_until_ready(out)
    assert out.shape == (N, out_size, H, W), out.shape

    # Pure-JAX reference (lax conv) to validate the fused Pallas path.
    def ref_forward(i1, i2, w1, w2):
        x = jnp.concatenate([i1, _upsample2x_bilinear_nchw(i2)], axis=1)
        dn = jax.lax.conv_dimension_numbers(x.shape, w1.shape,
                                            ('NCHW', 'OIHW', 'NCHW'))
        x = jax.lax.conv_general_dilated(x, w1, (1, 1), ((1, 1), (1, 1)),
                                         dimension_numbers=dn)
        x = jnp.maximum(x, 0.0)
        x = jax.lax.conv_general_dilated(x, w2, (1, 1), ((1, 1), (1, 1)),
                                         dimension_numbers=dn)
        return jnp.maximum(x, 0.0)

    ref = jax.block_until_ready(ref_forward(inputs1, inputs2, w1_oihw, w2_oihw))
    err = float(jnp.max(jnp.abs(out - ref)))
    assert jnp.allclose(out, ref, atol=1e-4, rtol=1e-4), err

    print("KERNEL_OK")
</pallas_src>

<mosaic_0001>
module attributes {stable_mosaic.version = 11 : i64} {
  func.func @_catup_fused_kernel(%arg0: i32, %arg1: memref<1x16x16x4xf32, #tpu.memory_space<vmem>>, %arg2: memref<1x16x16x4xf32, #tpu.memory_space<vmem>>, %arg3: memref<72x8xf32, #tpu.memory_space<vmem>>, %arg4: memref<72x8xf32, #tpu.memory_space<vmem>>, %arg5: memref<1x8x256xf32, #tpu.memory_space<vmem>>, %arg6: memref<18x32x8xf32, #tpu.memory_space<vmem>>, %arg7: memref<18x32x8xf32, #tpu.memory_space<vmem>>) attributes {dimension_semantics = [#tpu.dimension_semantics<parallel>], iteration_bounds = array<i64: 2>, scalar_prefetch = 0 : i64, scratch_operands = 2 : i64, tpu.core_type = #tpu.core_type<tc>, window_params = [{transform_indices = @transform_0, window_bounds = array<i64: 1, 16, 16, 4>}, {transform_indices = @transform_1, window_bounds = array<i64: 1, 16, 16, 4>}, {pipeline_mode = #tpu.pipeline_mode<synchronous>, transform_indices = @transform_2, window_bounds = array<i64: 72, 8>}, {pipeline_mode = #tpu.pipeline_mode<synchronous>, transform_indices = @transform_3, window_bounds = array<i64: 72, 8>}, {transform_indices = @transform_4, window_bounds = array<i64: 1, 8, 256>}]} {
    %cst = arith.constant 0.000000e+00 : f32
    %0 = vector.broadcast %cst : f32 to vector<18x32x8xf32>
    %c0 = arith.constant 0 : index
    %c0_0 = arith.constant 0 : index
    %c0_1 = arith.constant 0 : index
    %1 = vector.load %arg6[%c0, %c0_0, %c0_1] : memref<18x32x8xf32, #tpu.memory_space<vmem>>, vector<18x32x8xf32>
    tpu.vector_store %arg6[%c0, %c0_0, %c0_1], %0 {strides = array<i32>} : memref<18x32x8xf32, #tpu.memory_space<vmem>>, vector<18x32x8xf32>,
    %cst_2 = arith.constant 0.000000e+00 : f32
    %2 = vector.broadcast %cst_2 : f32 to vector<18x32x8xf32>
    %c0_3 = arith.constant 0 : index
    %c0_4 = arith.constant 0 : index
    %c0_5 = arith.constant 0 : index
    %3 = vector.load %arg7[%c0_3, %c0_4, %c0_5] : memref<18x32x8xf32, #tpu.memory_space<vmem>>, vector<18x32x8xf32>
    tpu.vector_store %arg7[%c0_3, %c0_4, %c0_5], %2 {strides = array<i32>} : memref<18x32x8xf32, #tpu.memory_space<vmem>>, vector<18x32x8xf32>,
    %c0_6 = arith.constant 0 : index
    %c0_7 = arith.constant 0 : index
    %c0_8 = arith.constant 0 : index
    %c0_9 = arith.constant 0 : index
    %4 = vector.load %arg1[%c0_6, %c0_7, %c0_8, %c0_9] : memref<1x16x16x4xf32, #tpu.memory_space<vmem>>, vector<1x16x16x4xf32>
    %5 = vector.shape_cast %4 : vector<1x16x16x4xf32> to vector<16x16x4xf32>
    %c0_10 = arith.constant 0 : index
    %c0_11 = arith.constant 0 : index
    %c0_12 = arith.constant 0 : index
    %c0_13 = arith.constant 0 : index
    %6 = vector.load %arg2[%c0_10, %c0_11, %c0_12, %c0_13] : memref<1x16x16x4xf32, #tpu.memory_space<vmem>>, vector<1x16x16x4xf32>
    %7 = vector.shape_cast %6 : vector<1x16x16x4xf32> to vector<16x16x4xf32>
    %8 = tpu.concatenate %5, %7 in 2 : vector<16x16x4xf32>, vector<16x16x4xf32> -> vector<16x16x8xf32>
    %c1 = arith.constant 1 : index
    %c8 = arith.constant 8 : index
    %c0_14 = arith.constant 0 : index
    %9 = vector.load %arg6[%c1, %c8, %c0_14] : memref<18x32x8xf32, #tpu.memory_space<vmem>>, vector<16x16x8xf32>
    tpu.vector_store %arg6[%c1, %c8, %c0_14], %8 {strides = array<i32>} : memref<18x32x8xf32, #tpu.memory_space<vmem>>, vector<16x16x8xf32>,
    %c0_15 = arith.constant 0 : index
    %c7 = arith.constant 7 : index
    %c0_16 = arith.constant 0 : index
    %10 = vector.load %arg6[%c0_15, %c7, %c0_16] : memref<18x32x8xf32, #tpu.memory_space<vmem>>, vector<16x16x8xf32>
    %c0_17 = arith.constant 0 : index
    %c8_18 = arith.constant 8 : index
    %c0_19 = arith.constant 0 : index
    %11 = vector.load %arg6[%c0_17, %c8_18, %c0_19] : memref<18x32x8xf32, #tpu.memory_space<vmem>>, vector<16x16x8xf32>
    %c0_20 = arith.constant 0 : index
    %c9 = arith.constant 9 : index
    %c0_21 = arith.constant 0 : index
    %12 = vector.load %arg6[%c0_20, %c9, %c0_21] : memref<18x32x8xf32, #tpu.memory_space<vmem>>, vector<16x16x8xf32>
    %c1_22 = arith.constant 1 : index
    %c7_23 = arith.constant 7 : index
    %c0_24 = arith.constant 0 : index
    %13 = vector.load %arg6[%c1_22, %c7_23, %c0_24] : memref<18x32x8xf32, #tpu.memory_space<vmem>>, vector<16x16x8xf32>
    %c1_25 = arith.constant 1 : index
    %c8_26 = arith.constant 8 : index
    %c0_27 = arith.constant 0 : index
    %14 = vector.load %arg6[%c1_25, %c8_26, %c0_27] : memref<18x32x8xf32, #tpu.memory_space<vmem>>, vector<16x16x8xf32>
    %c1_28 = arith.constant 1 : index
    %c9_29 = arith.constant 9 : index
    %c0_30 = arith.constant 0 : index
    %15 = vector.load %arg6[%c1_28, %c9_29, %c0_30] : memref<18x32x8xf32, #tpu.memory_space<vmem>>, vector<16x16x8xf32>
    %c2 = arith.constant 2 : index
    %c7_31 = arith.constant 7 : index
    %c0_32 = arith.constant 0 : index
    %16 = vector.load %arg6[%c2, %c7_31, %c0_32] : memref<18x32x8xf32, #tpu.memory_space<vmem>>, vector<16x16x8xf32>
    %c2_33 = arith.constant 2 : index
    %c8_34 = arith.constant 8 : index
    %c0_35 = arith.constant 0 : index
    %17 = vector.load %arg6[%c2_33, %c8_34, %c0_35] : memref<18x32x8xf32, #tpu.memory_space<vmem>>, vector<16x16x8xf32>
    %c2_36 = arith.constant 2 : index
    %c9_37 = arith.constant 9 : index
    %c0_38 = arith.constant 0 : index
    %18 = vector.load %arg6[%c2_36, %c9_37, %c0_38] : memref<18x32x8xf32, #tpu.memory_space<vmem>>, vector<16x16x8xf32>
    %19 = tpu.concatenate %10, %11, %12, %13, %14, %15, %16, %17, %18 in 2 : vector<16x16x8xf32>, vector<16x16x8xf32>, vector<16x16x8xf32>, vector<16x16x8xf32>, vector<16x16x8xf32>, vector<16x16x8xf32>, vector<16x16x8xf32>, vector<16x16x8xf32>, vector<16x16x8xf32> -> vector<16x16x72xf32>
    %20 = vector.shape_cast %19 : vector<16x16x72xf32> to vector<256x72xf32>
    %c0_39 = arith.constant 0 : index
    %c0_40 = arith.constant 0 : index
    %21 = vector.load %arg3[%c0_39, %c0_40] : memref<72x8xf32, #tpu.memory_space<vmem>>, vector<72x8xf32>
    %cst_41 = arith.constant dense<0.000000e+00> : vector<256x8xf32>
    %22 = tpu.matmul %20, %21, %cst_41 {dimension_numbers = #tpu.dot_dimension_numbers<[1], [0], [0], [1], [0, 0, 1, 1], [], []>} : vector<256x72xf32>, vector<72x8xf32>, vector<256x8xf32> -> vector<256x8xf32>
    %cst_42 = arith.constant 0.000000e+00 : f32
    %23 = vector.broadcast %cst_42 : f32 to vector<256x8xf32>
    %24 = arith.maximumf %22, %23 : vector<256x8xf32>
    %25 = vector.shape_cast %24 : vector<256x8xf32> to vector<16x16x8xf32>
    %c1_43 = arith.constant 1 : index
    %c8_44 = arith.constant 8 : index
    %c0_45 = arith.constant 0 : index
    %26 = vector.load %arg7[%c1_43, %c8_44, %c0_45] : memref<18x32x8xf32, #tpu.memory_space<vmem>>, vector<16x16x8xf32>
    tpu.vector_store %arg7[%c1_43, %c8_44, %c0_45], %25 {strides = array<i32>} : memref<18x32x8xf32, #tpu.memory_space<vmem>>, vector<16x16x8xf32>,
    %c0_46 = arith.constant 0 : index
    %c7_47 = arith.constant 7 : index
    %c0_48 = arith.constant 0 : index
    %27 = vector.load %arg7[%c0_46, %c7_47, %c0_48] : memref<18x32x8xf32, #tpu.memory_space<vmem>>, vector<16x16x8xf32>
    %c0_49 = arith.constant 0 : index
    %c8_50 = arith.constant 8 : index
    %c0_51 = arith.constant 0 : index
    %28 = vector.load %arg7[%c0_49, %c8_50, %c0_51] : memref<18x32x8xf32, #tpu.memory_space<vmem>>, vector<16x16x8xf32>
    %c0_52 = arith.constant 0 : index
    %c9_53 = arith.constant 9 : index
    %c0_54 = arith.constant 0 : index
    %29 = vector.load %arg7[%c0_52, %c9_53, %c0_54] : memref<18x32x8xf32, #tpu.memory_space<vmem>>, vector<16x16x8xf32>
    %c1_55 = arith.constant 1 : index
    %c7_56 = arith.constant 7 : index
    %c0_57 = arith.constant 0 : index
    %30 = vector.load %arg7[%c1_55, %c7_56, %c0_57] : memref<18x32x8xf32, #tpu.memory_space<vmem>>, vector<16x16x8xf32>
    %c1_58 = arith.constant 1 : index
    %c8_59 = arith.constant 8 : index
    %c0_60 = arith.constant 0 : index
    %31 = vector.load %arg7[%c1_58, %c8_59, %c0_60] : memref<18x32x8xf32, #tpu.memory_space<vmem>>, vector<16x16x8xf32>
    %c1_61 = arith.constant 1 : index
    %c9_62 = arith.constant 9 : index
    %c0_63 = arith.constant 0 : index
    %32 = vector.load %arg7[%c1_61, %c9_62, %c0_63] : memref<18x32x8xf32, #tpu.memory_space<vmem>>, vector<16x16x8xf32>
    %c2_64 = arith.constant 2 : index
    %c7_65 = arith.constant 7 : index
    %c0_66 = arith.constant 0 : index
    %33 = vector.load %arg7[%c2_64, %c7_65, %c0_66] : memref<18x32x8xf32, #tpu.memory_space<vmem>>, vector<16x16x8xf32>
    %c2_67 = arith.constant 2 : index
    %c8_68 = arith.constant 8 : index
    %c0_69 = arith.constant 0 : index
    %34 = vector.load %arg7[%c2_67, %c8_68, %c0_69] : memref<18x32x8xf32, #tpu.memory_space<vmem>>, vector<16x16x8xf32>
    %c2_70 = arith.constant 2 : index
    %c9_71 = arith.constant 9 : index
    %c0_72 = arith.constant 0 : index
    %35 = vector.load %arg7[%c2_70, %c9_71, %c0_72] : memref<18x32x8xf32, #tpu.memory_space<vmem>>, vector<16x16x8xf32>
    %36 = tpu.concatenate %27, %28, %29, %30, %31, %32, %33, %34, %35 in 2 : vector<16x16x8xf32>, vector<16x16x8xf32>, vector<16x16x8xf32>, vector<16x16x8xf32>, vector<16x16x8xf32>, vector<16x16x8xf32>, vector<16x16x8xf32>, vector<16x16x8xf32>, vector<16x16x8xf32> -> vector<16x16x72xf32>
    %37 = vector.shape_cast %36 : vector<16x16x72xf32> to vector<256x72xf32>
    %c0_73 = arith.constant 0 : index
    %c0_74 = arith.constant 0 : index
    %38 = vector.load %arg4[%c0_73, %c0_74] : memref<72x8xf32, #tpu.memory_space<vmem>>, vector<72x8xf32>
    %cst_75 = arith.constant dense<0.000000e+00> : vector<256x8xf32>
    %39 = tpu.matmul %37, %38, %cst_75 {dimension_numbers = #tpu.dot_dimension_numbers<[1], [0], [0], [1], [0, 0, 1, 1], [], []>} : vector<256x72xf32>, vector<72x8xf32>, vector<256x8xf32> -> vector<256x8xf32>
    %cst_76 = arith.constant 0.000000e+00 : f32
    %40 = vector.broadcast %cst_76 : f32 to vector<256x8xf32>
    %41 = arith.maximumf %39, %40 : vector<256x8xf32>
    %42 = tpu.transpose %41, [1, 0] : vector<256x8xf32> -> vector<8x256xf32>
    %43 = vector.shape_cast %42 : vector<8x256xf32> to vector<1x8x256xf32>
    %c0_77 = arith.constant 0 : index
    %c0_78 = arith.constant 0 : index
    %c0_79 = arith.constant 0 : index
    %44 = vector.load %arg5[%c0_77, %c0_78, %c0_79] : memref<1x8x256xf32, #tpu.memory_space<vmem>>, vector<1x8x256xf32>
    tpu.vector_store %arg5[%c0_77, %c0_78, %c0_79], %43 {strides = array<i32>} : memref<1x8x256xf32, #tpu.memory_space<vmem>>, vector<1x8x256xf32>,
    return
  }
  func.func @transform_0(%arg0: i32) -> (i32, i32, i32, i32) {
    %c0_i32 = arith.constant 0 : i32
    %c0_i32_0 = arith.constant 0 : i32
    %c0_i32_1 = arith.constant 0 : i32
    %c0_i32_2 = arith.constant 0 : i32
    return %arg0, %c0_i32, %c0_i32_0, %c0_i32_1 : i32, i32, i32, i32
  }
  func.func @transform_1(%arg0: i32) -> (i32, i32, i32, i32) {
    %c0_i32 = arith.constant 0 : i32
    %c0_i32_0 = arith.constant 0 : i32
    %c0_i32_1 = arith.constant 0 : i32
    %c0_i32_2 = arith.constant 0 : i32
    return %arg0, %c0_i32, %c0_i32_0, %c0_i32_1 : i32, i32, i32, i32
  }
  func.func @transform_2(%arg0: i32) -> (i32, i32) {
    %c0_i32 = arith.constant 0 : i32
    %c0_i32_0 = arith.constant 0 : i32
    %c0_i32_1 = arith.constant 0 : i32
    return %c0_i32, %c0_i32_0 : i32, i32
  }
  func.func @transform_3(%arg0: i32) -> (i32, i32) {
    %c0_i32 = arith.constant 0 : i32
    %c0_i32_0 = arith.constant 0 : i32
    %c0_i32_1 = arith.constant 0 : i32
    return %c0_i32, %c0_i32_0 : i32, i32
  }
  func.func @transform_4(%arg0: i32) -> (i32, i32, i32) {
    %c0_i32 = arith.constant 0 : i32
    %c0_i32_0 = arith.constant 0 : i32
    %c0_i32_1 = arith.constant 0 : i32
    return %arg0, %c0_i32, %c0_i32_0 : i32, i32, i32
  }
}

</mosaic_0001>

<llo_original>
// kernel: cat_up_forward.1
$region0: #{cat_up_forward.1}
  #allocation0 [shape = 'u32[]', space=smem, size = 0x4, offset = 0x4, fixed_abs, tag = 'smem constant byte address 0x4 - core index']
  #allocation1 [shape = 'u32[72,128]{1,0:T(1,128)}', space=vmem, size = 0x9000, scoped, tag = 'internal scratch']
  #allocation2 [shape = 'f32[18,32,8]{2,1,0:T(8,128)}', space=vmem, size = 0x48000, scoped, tag = 'scratch operand']
  #allocation3 [shape = 'f32[18,32,8]{2,1,0:T(8,128)}', space=vmem, size = 0x48000, scoped, tag = 'scratch operand']
  %s0 = inlined_call_operand.vmem [shape: f32[2,16,16,4], index: 0, kind: input, shape index: {}]
  %s1 = inlined_call_operand.vmem [shape: f32[2,16,16,4], index: 1, kind: input, shape index: {}]
  %s2 = inlined_call_operand.vmem [shape: f32[72,8], index: 2, kind: input, shape index: {}]
  %s3 = inlined_call_operand.vmem [shape: f32[72,8], index: 3, kind: input, shape index: {}]
  %s4 = inlined_call_operand.vmem [shape: f32[2,8,256], index: 4, kind: output, shape index: {}]
  %s5 = sld [smem:[#allocation0]]
  $region49: #{cat_up_forward.1} parent=0
    _
  %s7 = ssub.s32 1, %s5
  %s8 = scalar_select 0, %s7, %s5
  loop: start=0, step=1, limit=4
  $region2: #{cat_up_forward.1} parent=0 // loop_pre_header
    _
  $region3: #{cat_up_forward.1} parent=0 // loop_header
    %s10 = sphi 0, %s14
    %p11 = scmp.ge.s32.totalorder %s10, 4
    %s20 = sphi 0, %s22
    %s23 = sphi 0, %s20
    %s24 = sphi 0, %s23
    %s40 = sphi 0, %s24
    %s46 = sphi 0, %s48
    %s49 = sphi 0, %s46
    %s50 = sphi 0, %s49
    %s66 = sphi 0, %s50
    %s70 = sphi 0, %s70
    %s72 = sphi 0, %s70
    %s73 = sphi 0, %s72
    %s87 = sphi 0, %s73
    %s91 = sphi 0, %s91
    %s93 = sphi 0, %s91
    %s94 = sphi 0, %s93
    %s108 = sphi 0, %s94
    %s114 = sphi 0, %s116
    %s117 = sphi 0, %s114
    %s118 = sphi 0, %s117
    %s134 = sphi 0, %s118
  $region4: #{cat_up_forward.1} parent=0 // loop_header_branch
    %13 = sbr.rel (%p11) target = $region8
  $region5: #{cat_up_forward.1} parent=0 // loop_body
    %s15 = ssub.s32 %s10, 1
    %s16 = ssub.s32 %s10, 2
    %s17 = sadd.s32 %s10, 1
    %s18 = ssub.s32 %s10, %s17
    %p19 = scmp.eq.s32.totalorder %s18, 0
    %s21 = sadd.s32 %s20, 1
    %s22 = scalar_select %p19, %s20, %s21
    %p25 = pneg %p19
    %p26 = scmp.eq.s32.totalorder %s10, 1
    %p27 = por %p25, %p26
    %p28 = scmp.ne.s32.totalorder %s20, %s23
    %p29 = scmp.eq.s32.totalorder %s10, 0
    %p30 = por %p28, %p29
    %p31 = scmp.ne.s32.totalorder %s20, %s23
    %p32 = scmp.eq.s32.totalorder %s15, 1
    %p33 = por %p31, %p32
    %p34 = scmp.ne.s32.totalorder %s23, %s24
    %p35 = scmp.eq.s32.totalorder %s15, 0
    %p36 = por %p34, %p35
    %p37 = scmp.ne.s32.totalorder %s23, %s24
    %p38 = scmp.eq.s32.totalorder %s16, 1
    %p39 = por %p37, %p38
    %p41 = scmp.ne.s32.totalorder %s24, %s40
    %p42 = scmp.eq.s32.totalorder %s16, 0
    %p43 = por %p41, %p42
    %s44 = ssub.s32 %s10, %s17
    %p45 = scmp.eq.s32.totalorder %s44, 0
    %s47 = sadd.s32 %s46, 1
    %s48 = scalar_select %p45, %s46, %s47
    %p51 = pneg %p45
    %p52 = scmp.eq.s32.totalorder %s10, 1
    %p53 = por %p51, %p52
    %p54 = scmp.ne.s32.totalorder %s46, %s49
    %p55 = scmp.eq.s32.totalorder %s10, 0
    %p56 = por %p54, %p55
    %p57 = scmp.ne.s32.totalorder %s46, %s49
    %p58 = scmp.eq.s32.totalorder %s15, 1
    %p59 = por %p57, %p58
    %p60 = scmp.ne.s32.totalorder %s49, %s50
    %p61 = scmp.eq.s32.totalorder %s15, 0
    %p62 = por %p60, %p61
    %p63 = scmp.ne.s32.totalorder %s49, %s50
    %p64 = scmp.eq.s32.totalorder %s16, 1
    %p65 = por %p63, %p64
    %p67 = scmp.ne.s32.totalorder %s50, %s66
    %p68 = scmp.eq.s32.totalorder %s16, 0
    %p69 = por %p67, %p68
    %s71 = sadd.s32 %s70, 1
    %p74 = scmp.eq.s32.totalorder %s10, 1
    %p75 = scmp.ne.s32.totalorder %s70, %s72
    %p76 = scmp.eq.s32.totalorder %s10, 0
    %p77 = por %p75, %p76
    %p78 = scmp.ne.s32.totalorder %s70, %s72
    %p79 = scmp.eq.s32.totalorder %s15, 1
    %p80 = por %p78, %p79
    %p81 = scmp.ne.s32.totalorder %s72, %s73
    %p82 = scmp.eq.s32.totalorder %s15, 0
    %p83 = por %p81, %p82
    %p84 = scmp.ne.s32.totalorder %s72, %s73
    %p85 = scmp.eq.s32.totalorder %s16, 1
    %p86 = por %p84, %p85
    %p88 = scmp.ne.s32.totalorder %s73, %s87
    %p89 = scmp.eq.s32.totalorder %s16, 0
    %p90 = por %p88, %p89
    %s92 = sadd.s32 %s91, 1
    %p95 = scmp.eq.s32.totalorder %s10, 1
    %p96 = scmp.ne.s32.totalorder %s91, %s93
    %p97 = scmp.eq.s32.totalorder %s10, 0
    %p98 = por %p96, %p97
    %p99 = scmp.ne.s32.totalorder %s91, %s93
    %p100 = scmp.eq.s32.totalorder %s15, 1
    %p101 = por %p99, %p100
    %p102 = scmp.ne.s32.totalorder %s93, %s94
    %p103 = scmp.eq.s32.totalorder %s15, 0
    %p104 = por %p102, %p103
    %p105 = scmp.ne.s32.totalorder %s93, %s94
    %p106 = scmp.eq.s32.totalorder %s16, 1
    %p107 = por %p105, %p106
    %p109 = scmp.ne.s32.totalorder %s94, %s108
    %p110 = scmp.eq.s32.totalorder %s16, 0
    %p111 = por %p109, %p110
    %s112 = ssub.s32 %s10, %s17
    %p113 = scmp.eq.s32.totalorder %s112, 0
    %s115 = sadd.s32 %s114, 1
    %s116 = scalar_select %p113, %s114, %s115
    %p119 = pneg %p113
    %p120 = scmp.eq.s32.totalorder %s10, 1
    %p121 = por %p119, %p120
    %p122 = scmp.ne.s32.totalorder %s114, %s117
    %p123 = scmp.eq.s32.totalorder %s10, 0
    %p124 = por %p122, %p123
    %p125 = scmp.ne.s32.totalorder %s114, %s117
    %p126 = scmp.eq.s32.totalorder %s15, 1
    %p127 = por %p125, %p126
    %p128 = scmp.ne.s32.totalorder %s117, %s118
    %p129 = scmp.eq.s32.totalorder %s15, 0
    %p130 = por %p128, %p129
    %p131 = scmp.ne.s32.totalorder %s117, %s118
    %p132 = scmp.eq.s32.totalorder %s16, 1
    %p133 = por %p131, %p132
    %p135 = scmp.ne.s32.totalorder %s118, %s134
    %p136 = scmp.eq.s32.totalorder %s16, 0
    %p137 = por %p135, %p136
    %p138 = scmp.le.s32.totalorder 1, %s10
    %p139 = scmp.lt.s32.totalorder %s10, 3
    %p140 = pnand %p138, %p139
    %p141 = pneg %p140
    // Predicated region
    $region9: #{cat_up_forward.1} parent=5 // pred_check
      _
    $region10: #{cat_up_forward.1} parent=5 // pred_check_branch
      %143 = sbr.rel (%p140) target = $region12
    $region11: #{cat_up_forward.1} parent=5 // pred_region
      %s144 = ssub.s32 %s10, 1
      // Predicated region
      $region13: #{cat_up_forward.1} parent=11 // pred_check
        %p145 = pneg %p83
      $region14: #{cat_up_forward.1} parent=11 // pred_check_branch
        %147 = sbr.rel (%p145) target = $region16
      $region15: #{cat_up_forward.1} parent=11 // pred_region
        _
      $region16: #{cat_up_forward.1} parent=11 // pred_fallthru
        _
      // Predicated region
      $region17: #{cat_up_forward.1} parent=11 // pred_check
        %p148 = pneg %p104
      $region18: #{cat_up_forward.1} parent=11 // pred_check_branch
        %150 = sbr.rel (%p148) target = $region20
      $region19: #{cat_up_forward.1} parent=11 // pred_region
        _
      $region20: #{cat_up_forward.1} parent=11 // pred_fallthru
        _
    $region12: #{cat_up_forward.1} parent=5 // pred_fallthru
      _
    %p151 = scmp.lt.s32.totalorder %s10, 2
    // Predicated region
    $region21: #{cat_up_forward.1} parent=5 // pred_check
      %p152 = pneg %p151
    $region22: #{cat_up_forward.1} parent=5 // pred_check_branch
      %154 = sbr.rel (%p152) target = $region24
    $region23: #{cat_up_forward.1} parent=5 // pred_region
      // Predicated region
      $region25: #{cat_up_forward.1} parent=23 // pred_check
        %p155 = pneg %p30
      $region26: #{cat_up_forward.1} parent=23 // pred_check_branch
        %157 = sbr.rel (%p155) target = $region28
      $region27: #{cat_up_forward.1} parent=23 // pred_region
        %p158 = scmp.lt.s32.totalorder %s10, 1
        %s159 = scalar_select %p158, %s10, 1
        %s160 = smul.addr %s159, 32
        %s161 = smul.addr %s160, 8
        %s162 = scalar_lea.vmem %s0, %s161
      $region28: #{cat_up_forward.1} parent=23 // pred_fallthru
        _
      // Predicated region
      $region29: #{cat_up_forward.1} parent=23 // pred_check
        %p163 = pneg %p56
      $region30: #{cat_up_forward.1} parent=23 // pred_check_branch
        %165 = sbr.rel (%p163) target = $region32
      $region31: #{cat_up_forward.1} parent=23 // pred_region
        %p166 = scmp.lt.s32.totalorder %s10, 1
        %s167 = scalar_select %p166, %s10, 1
        %s168 = smul.addr %s167, 32
        %s169 = smul.addr %s168, 8
        %s170 = scalar_lea.vmem %s1, %s169
      $region32: #{cat_up_forward.1} parent=23 // pred_fallthru
        _
    $region24: #{cat_up_forward.1} parent=5 // pred_fallthru
      _
    %p171 = scmp.le.s32.totalorder 1, %s10
    %p172 = scmp.lt.s32.totalorder %s10, 3
    %p173 = pnand %p171, %p172
    %p174 = pneg %p173
    // Predicated region
    $region33: #{cat_up_forward.1} parent=5 // pred_check
      _
    $region34: #{cat_up_forward.1} parent=5 // pred_check_branch
      %176 = sbr.rel (%p173) target = $region36
    $region35: #{cat_up_forward.1} parent=5 // pred_region
      %s177 = ssub.s32 %s10, 1
      %p178 = scmp.lt.s32.totalorder %s15, 1
      %s179 = scalar_select %p178, %s15, 1
      %s180 = smul.addr %s179, 32
      %s181 = smul.addr %s180, 8
      %s182 = scalar_lea.vmem %s0, %s181
      %p183 = pneg %p36
      %p184 = pneg %p33
      %p185 = scmp.lt.s32.totalorder %s15, 1
      %s186 = scalar_select %p185, %s15, 1
      %s187 = smul.addr %s186, 32
      %s188 = smul.addr %s187, 8
      %s189 = scalar_lea.vmem %s1, %s188
      %p190 = pneg %p62
      %p191 = pneg %p59
      %p192 = pneg %p83
      %p193 = pneg %p80
      %p194 = pneg %p104
      %p195 = pneg %p101
      %p196 = pneg %p130
      %p197 = pneg %p127
      %p198 = scmp.lt.s32.totalorder %s15, 1
      %s199 = scalar_select %p198, %s15, 1
      %s200 = smul.addr %s199, 2
      %s201 = smul.addr %s200, 8
      %s202 = scalar_lea.vmem %s4, %s201
      %p203 = scmp.lt.s32.totalorder %s15, 1
      %s204 = scalar_select %p203, %s15, 1
      %s205 = smul.addr %s204, 32
      %s206 = smul.addr %s205, 8
      %s207 = scalar_lea.vmem %s0, %s206
      %p208 = scmp.lt.s32.totalorder %s15, 1
      %s209 = scalar_select %p208, %s15, 1
      %s210 = smul.addr %s209, 32
      %s211 = smul.addr %s210, 8
      %s212 = scalar_lea.vmem %s1, %s211
      %p213 = scmp.lt.s32.totalorder %s15, 1
      %s214 = scalar_select %p213, %s15, 1
      %s215 = smul.addr %s214, 2
      %s216 = smul.addr %s215, 8
      %s217 = scalar_lea.vmem %s4, %s216
      %vm218 = vcmask 64512
      %219 = vst.msk [vmem:[#allocation2] sm:$0xff] %vm218, 0.0
      %220 = vst.msk [vmem:[#allocation2 + $0x8] sm:$0xff] %vm218, 0.0
      %221 = vst.msk [vmem:[#allocation2 + $0x10] sm:$0xff] %vm218, 0.0
      %222 = vst.msk [vmem:[#allocation2 + $0x18] sm:$0xff] %vm218, 0.0
      %223 = vst.msk [vmem:[#allocation2 + $0x20] sm:$0xff] %vm218, 0.0
      %224 = vst.msk [vmem:[#allocation2 + $0x28] sm:$0xff] %vm218, 0.0
      %225 = vst.msk [vmem:[#allocation2 + $0x30] sm:$0xff] %vm218, 0.0
      %226 = vst.msk [vmem:[#allocation2 + $0x38] sm:$0xff] %vm218, 0.0
      %227 = vst.msk [vmem:[#allocation2 + $0x40] sm:$0xff] %vm218, 0.0
      %228 = vst.msk [vmem:[#allocation2 + $0x48] sm:$0xff] %vm218, 0.0
      %229 = vst.msk [vmem:[#allocation2 + $0x50] sm:$0xff] %vm218, 0.0
      %230 = vst.msk [vmem:[#allocation2 + $0x58] sm:$0xff] %vm218, 0.0
      %231 = vst.msk [vmem:[#allocation2 + $0x60] sm:$0xff] %vm218, 0.0
      %232 = vst.msk [vmem:[#allocation2 + $0x68] sm:$0xff] %vm218, 0.0
      %233 = vst.msk [vmem:[#allocation2 + $0x70] sm:$0xff] %vm218, 0.0
      %234 = vst.msk [vmem:[#allocation2 + $0x78] sm:$0xff] %vm218, 0.0
      %235 = vst.msk [vmem:[#allocation2 + $0x80] sm:$0xff] %vm218, 0.0
      %236 = vst.msk [vmem:[#allocation2 + $0x88] sm:$0xff] %vm218, 0.0
      %237 = vst.msk [vmem:[#allocation2 + $0x90] sm:$0xff] %vm218, 0.0
      %238 = vst.msk [vmem:[#allocation2 + $0x98] sm:$0xff] %vm218, 0.0
      %239 = vst.msk [vmem:[#allocation2 + $0xa0] sm:$0xff] %vm218, 0.0
      %240 = vst.msk [vmem:[#allocation2 + $0xa8] sm:$0xff] %vm218, 0.0
      %241 = vst.msk [vmem:[#allocation2 + $0xb0] sm:$0xff] %vm218, 0.0
      %242 = vst.msk [vmem:[#allocation2 + $0xb8] sm:$0xff] %vm218, 0.0
      %243 = vst.msk [vmem:[#allocation2 + $0xc0] sm:$0xff] %vm218, 0.0
      %244 = vst.msk [vmem:[#allocation2 + $0xc8] sm:$0xff] %vm218, 0.0
      %245 = vst.msk [vmem:[#allocation2 + $0xd0] sm:$0xff] %vm218, 0.0
      %246 = vst.msk [vmem:[#allocation2 + $0xd8] sm:$0xff] %vm218, 0.0
      %247 = vst.msk [vmem:[#allocation2 + $0xe0] sm:$0xff] %vm218, 0.0
      %248 = vst.msk [vmem:[#allocation2 + $0xe8] sm:$0xff] %vm218, 0.0
      %249 = vst.msk [vmem:[#allocation2 + $0xf0] sm:$0xff] %vm218, 0.0
      %250 = vst.msk [vmem:[#allocation2 + $0xf8] sm:$0xff] %vm218, 0.0
      %251 = vst.msk [vmem:[#allocation2 + $0x100] sm:$0xff] %vm218, 0.0
      %252 = vst.msk [vmem:[#allocation2 + $0x108] sm:$0xff] %vm218, 0.0
      %253 = vst.msk [vmem:[#allocation2 + $0x110] sm:$0xff] %vm218, 0.0
      %254 = vst.msk [vmem:[#allocation2 + $0x118] sm:$0xff] %vm218, 0.0
      %255 = vst.msk [vmem:[#allocation2 + $0x120] sm:$0xff] %vm218, 0.0
      %256 = vst.msk [vmem:[#allocation2 + $0x128] sm:$0xff] %vm218, 0.0
      %257 = vst.msk [vmem:[#allocation2 + $0x130] sm:$0xff] %vm218, 0.0
      %258 = vst.msk [vmem:[#allocation2 + $0x138] sm:$0xff] %vm218, 0.0
      %259 = vst.msk [vmem:[#allocation2 + $0x140] sm:$0xff] %vm218, 0.0
      %260 = vst.msk [vmem:[#allocation2 + $0x148] sm:$0xff] %vm218, 0.0
      %261 = vst.msk [vmem:[#allocation2 + $0x150] sm:$0xff] %vm218, 0.0
      %262 = vst.msk [vmem:[#allocation2 + $0x158] sm:$0xff] %vm218, 0.0
      %263 = vst.msk [vmem:[#allocation2 + $0x160] sm:$0xff] %vm218, 0.0
      %264 = vst.msk [vmem:[#allocation2 + $0x168] sm:$0xff] %vm218, 0.0
      %265 = vst.msk [vmem:[#allocation2 + $0x170] sm:$0xff] %vm218, 0.0
      %266 = vst.msk [vmem:[#allocation2 + $0x178] sm:$0xff] %vm218, 0.0
      %267 = vst.msk [vmem:[#allocation2 + $0x180] sm:$0xff] %vm218, 0.0
      %268 = vst.msk [vmem:[#allocation2 + $0x188] sm:$0xff] %vm218, 0.0
      %269 = vst.msk [vmem:[#allocation2 + $0x190] sm:$0xff] %vm218, 0.0
      %270 = vst.msk [vmem:[#allocation2 + $0x198] sm:$0xff] %vm218, 0.0
      %271 = vst.msk [vmem:[#allocation2 + $0x1a0] sm:$0xff] %vm218, 0.0
      %272 = vst.msk [vmem:[#allocation2 + $0x1a8] sm:$0xff] %vm218, 0.0
      %273 = vst.msk [vmem:[#allocation2 + $0x1b0] sm:$0xff] %vm218, 0.0
      %274 = vst.msk [vmem:[#allocation2 + $0x1b8] sm:$0xff] %vm218, 0.0
      %275 = vst.msk [vmem:[#allocation2 + $0x1c0] sm:$0xff] %vm218, 0.0
      %276 = vst.msk [vmem:[#allocation2 + $0x1c8] sm:$0xff] %vm218, 0.0
      %277 = vst.msk [vmem:[#allocation2 + $0x1d0] sm:$0xff] %vm218, 0.0
      %278 = vst.msk [vmem:[#allocation2 + $0x1d8] sm:$0xff] %vm218, 0.0
      %279 = vst.msk [vmem:[#allocation2 + $0x1e0] sm:$0xff] %vm218, 0.0
      %280 = vst.msk [vmem:[#allocation2 + $0x1e8] sm:$0xff] %vm218, 0.0
      %281 = vst.msk [vmem:[#allocation2 + $0x1f0] sm:$0xff] %vm218, 0.0
      %282 = vst.msk [vmem:[#allocation2 + $0x1f8] sm:$0xff] %vm218, 0.0
      %283 = vst.msk [vmem:[#allocation2 + $0x200] sm:$0xff] %vm218, 0.0
      %284 = vst.msk [vmem:[#allocation2 + $0x208] sm:$0xff] %vm218, 0.0
      %285 = vst.msk [vmem:[#allocation2 + $0x210] sm:$0xff] %vm218, 0.0
      %286 = vst.msk [vmem:[#allocation2 + $0x218] sm:$0xff] %vm218, 0.0
      %287 = vst.msk [vmem:[#allocation2 + $0x220] sm:$0xff] %vm218, 0.0
      %288 = vst.msk [vmem:[#allocation2 + $0x228] sm:$0xff] %vm218, 0.0
      %289 = vst.msk [vmem:[#allocation2 + $0x230] sm:$0xff] %vm218, 0.0
      %290 = vst.msk [vmem:[#allocation2 + $0x238] sm:$0xff] %vm218, 0.0
      %291 = vst.msk [vmem:[#allocation3] sm:$0xff] %vm218, 0.0
      %292 = vst.msk [vmem:[#allocation3 + $0x8] sm:$0xff] %vm218, 0.0
      %293 = vst.msk [vmem:[#allocation3 + $0x10] sm:$0xff] %vm218, 0.0
      %294 = vst.msk [vmem:[#allocation3 + $0x18] sm:$0xff] %vm218, 0.0
      %295 = vst.msk [vmem:[#allocation3 + $0x20] sm:$0xff] %vm218, 0.0
      %296 = vst.msk [vmem:[#allocation3 + $0x28] sm:$0xff] %vm218, 0.0
      %297 = vst.msk [vmem:[#allocation3 + $0x30] sm:$0xff] %vm218, 0.0
      %298 = vst.msk [vmem:[#allocation3 + $0x38] sm:$0xff] %vm218, 0.0
      %299 = vst.msk [vmem:[#allocation3 + $0x40] sm:$0xff] %vm218, 0.0
      %300 = vst.msk [vmem:[#allocation3 + $0x48] sm:$0xff] %vm218, 0.0
      %301 = vst.msk [vmem:[#allocation3 + $0x50] sm:$0xff] %vm218, 0.0
      %302 = vst.msk [vmem:[#allocation3 + $0x58] sm:$0xff] %vm218, 0.0
      %303 = vst.msk [vmem:[#allocation3 + $0x60] sm:$0xff] %vm218, 0.0
      %304 = vst.msk [vmem:[#allocation3 + $0x68] sm:$0xff] %vm218, 0.0
      %305 = vst.msk [vmem:[#allocation3 + $0x70] sm:$0xff] %vm218, 0.0
      %306 = vst.msk [vmem:[#allocation3 + $0x78] sm:$0xff] %vm218, 0.0
      %307 = vst.msk [vmem:[#allocation3 + $0x80] sm:$0xff] %vm218, 0.0
      %308 = vst.msk [vmem:[#allocation3 + $0x88] sm:$0xff] %vm218, 0.0
      %309 = vst.msk [vmem:[#allocation3 + $0x90] sm:$0xff] %vm218, 0.0
      %310 = vst.msk [vmem:[#allocation3 + $0x98] sm:$0xff] %vm218, 0.0
      %311 = vst.msk [vmem:[#allocation3 + $0xa0] sm:$0xff] %vm218, 0.0
      %312 = vst.msk [vmem:[#allocation3 + $0xa8] sm:$0xff] %vm218, 0.0
      %313 = vst.msk [vmem:[#allocation3 + $0xb0] sm:$0xff] %vm218, 0.0
      %314 = vst.msk [vmem:[#allocation3 + $0xb8] sm:$0xff] %vm218, 0.0
      %315 = vst.msk [vmem:[#allocation3 + $0xc0] sm:$0xff] %vm218, 0.0
      %316 = vst.msk [vmem:[#allocation3 + $0xc8] sm:$0xff] %vm218, 0.0
      %317 = vst.msk [vmem:[#allocation3 + $0xd0] sm:$0xff] %vm218, 0.0
      %318 = vst.msk [vmem:[#allocation3 + $0xd8] sm:$0xff] %vm218, 0.0
      %319 = vst.msk [vmem:[#allocation3 + $0xe0] sm:$0xff] %vm218, 0.0
      %320 = vst.msk [vmem:[#allocation3 + $0xe8] sm:$0xff] %vm218, 0.0
      %321 = vst.msk [vmem:[#allocation3 + $0xf0] sm:$0xff] %vm218, 0.0
      %322 = vst.msk [vmem:[#allocation3 + $0xf8] sm:$0xff] %vm218, 0.0
      %323 = vst.msk [vmem:[#allocation3 + $0x100] sm:$0xff] %vm218, 0.0
      %324 = vst.msk [vmem:[#allocation3 + $0x108] sm:$0xff] %vm218, 0.0
      %325 = vst.msk [vmem:[#allocation3 + $0x110] sm:$0xff] %vm218, 0.0
      %326 = vst.msk [vmem:[#allocation3 + $0x118] sm:$0xff] %vm218, 0.0
      %327 = vst.msk [vmem:[#allocation3 + $0x120] sm:$0xff] %vm218, 0.0
      %328 = vst.msk [vmem:[#allocation3 + $0x128] sm:$0xff] %vm218, 0.0
      %329 = vst.msk [vmem:[#allocation3 + $0x130] sm:$0xff] %vm218, 0.0
      %330 = vst.msk [vmem:[#allocation3 + $0x138] sm:$0xff] %vm218, 0.0
      %331 = vst.msk [vmem:[#allocation3 + $0x140] sm:$0xff] %vm218, 0.0
      %332 = vst.msk [vmem:[#allocation3 + $0x148] sm:$0xff] %vm218, 0.0
      %333 = vst.msk [vmem:[#allocation3 + $0x150] sm:$0xff] %vm218, 0.0
      %334 = vst.msk [vmem:[#allocation3 + $0x158] sm:$0xff] %vm218, 0.0
      %335 = vst.msk [vmem:[#allocation3 + $0x160] sm:$0xff] %vm218, 0.0
      %336 = vst.msk [vmem:[#allocation3 + $0x168] sm:$0xff] %vm218, 0.0
      %337 = vst.msk [vmem:[#allocation3 + $0x170] sm:$0xff] %vm218, 0.0
      %338 = vst.msk [vmem:[#allocation3 + $0x178] sm:$0xff] %vm218, 0.0
      %339 = vst.msk [vmem:[#allocation3 + $0x180] sm:$0xff] %vm218, 0.0
      %340 = vst.msk [vmem:[#allocation3 + $0x188] sm:$0xff] %vm218, 0.0
      %341 = vst.msk [vmem:[#allocation3 + $0x190] sm:$0xff] %vm218, 0.0
      %342 = vst.msk [vmem:[#allocation3 + $0x198] sm:$0xff] %vm218, 0.0
      %343 = vst.msk [vmem:[#allocation3 + $0x1a0] sm:$0xff] %vm218, 0.0
      %344 = vst.msk [vmem:[#allocation3 + $0x1a8] sm:$0xff] %vm218, 0.0
      %345 = vst.msk [vmem:[#allocation3 + $0x1b0] sm:$0xff] %vm218, 0.0
      %346 = vst.msk [vmem:[#allocation3 + $0x1b8] sm:$0xff] %vm218, 0.0
      %347 = vst.msk [vmem:[#allocation3 + $0x1c0] sm:$0xff] %vm218, 0.0
      %348 = vst.msk [vmem:[#allocation3 + $0x1c8] sm:$0xff] %vm218, 0.0
      %349 = vst.msk [vmem:[#allocation3 + $0x1d0] sm:$0xff] %vm218, 0.0
      %350 = vst.msk [vmem:[#allocation3 + $0x1d8] sm:$0xff] %vm218, 0.0
      %351 = vst.msk [vmem:[#allocation3 + $0x1e0] sm:$0xff] %vm218, 0.0
      %352 = vst.msk [vmem:[#allocation3 + $0x1e8] sm:$0xff] %vm218, 0.0
      %353 = vst.msk [vmem:[#allocation3 + $0x1f0] sm:$0xff] %vm218, 0.0
      %354 = vst.msk [vmem:[#allocation3 + $0x1f8] sm:$0xff] %vm218, 0.0
      %355 = vst.msk [vmem:[#allocation3 + $0x200] sm:$0xff] %vm218, 0.0
      %356 = vst.msk [vmem:[#allocation3 + $0x208] sm:$0xff] %vm218, 0.0
      %357 = vst.msk [vmem:[#allocation3 + $0x210] sm:$0xff] %vm218, 0.0
      %358 = vst.msk [vmem:[#allocation3 + $0x218] sm:$0xff] %vm218, 0.0
      %359 = vst.msk [vmem:[#allocation3 + $0x220] sm:$0xff] %vm218, 0.0
      %360 = vst.msk [vmem:[#allocation3 + $0x228] sm:$0xff] %vm218, 0.0
      %361 = vst.msk [vmem:[#allocation3 + $0x230] sm:$0xff] %vm218, 0.0
      %362 = vst.msk [vmem:[#allocation3 + $0x238] sm:$0xff] %vm218, 0.0
      %v363 = vld [vmem:[%s207] sm:$0xff]
      %v364 = vld [vmem:[%s207 + $0x8] sm:$0xff]
      %v365 = vld [vmem:[%s207 + $0x10] sm:$0xff]
      %v366 = vld [vmem:[%s207 + $0x18] sm:$0xff]
      %v367 = vld [vmem:[%s207 + $0x20] sm:$0xff]
      %v368 = vld [vmem:[%s207 + $0x28] sm:$0xff]
      %v369 = vld [vmem:[%s207 + $0x30] sm:$0xff]
      %v370 = vld [vmem:[%s207 + $0x38] sm:$0xff]
      %v371 = vld [vmem:[%s207 + $0x40] sm:$0xff]
      %v372 = vld [vmem:[%s207 + $0x48] sm:$0xff]
      %v373 = vld [vmem:[%s207 + $0x50] sm:$0xff]
      %v374 = vld [vmem:[%s207 + $0x58] sm:$0xff]
      %v375 = vld [vmem:[%s207 + $0x60] sm:$0xff]
      %v376 = vld [vmem:[%s207 + $0x68] sm:$0xff]
      %v377 = vld [vmem:[%s207 + $0x70] sm:$0xff]
      %v378 = vld [vmem:[%s207 + $0x78] sm:$0xff]
      %v379 = vld [vmem:[%s207 + $0x80] sm:$0xff]
      %v380 = vld [vmem:[%s207 + $0x88] sm:$0xff]
      %v381 = vld [vmem:[%s207 + $0x90] sm:$0xff]
      %v382 = vld [vmem:[%s207 + $0x98] sm:$0xff]
      %v383 = vld [vmem:[%s207 + $0xa0] sm:$0xff]
      %v384 = vld [vmem:[%s207 + $0xa8] sm:$0xff]
      %v385 = vld [vmem:[%s207 + $0xb0] sm:$0xff]
      %v386 = vld [vmem:[%s207 + $0xb8] sm:$0xff]
      %v387 = vld [vmem:[%s207 + $0xc0] sm:$0xff]
      %v388 = vld [vmem:[%s207 + $0xc8] sm:$0xff]
      %v389 = vld [vmem:[%s207 + $0xd0] sm:$0xff]
      %v390 = vld [vmem:[%s207 + $0xd8] sm:$0xff]
      %v391 = vld [vmem:[%s207 + $0xe0] sm:$0xff]
      %v392 = vld [vmem:[%s207 + $0xe8] sm:$0xff]
      %v393 = vld [vmem:[%s207 + $0xf0] sm:$0xff]
      %v394 = vld [vmem:[%s207 + $0xf8] sm:$0xff]
      %v395 = vld [vmem:[%s212] sm:$0xff]
      %v396 = vld [vmem:[%s212 + $0x8] sm:$0xff]
      %v397 = vld [vmem:[%s212 + $0x10] sm:$0xff]
      %v398 = vld [vmem:[%s212 + $0x18] sm:$0xff]
      %v399 = vld [vmem:[%s212 + $0x20] sm:$0xff]
      %v400 = vld [vmem:[%s212 + $0x28] sm:$0xff]
      %v401 = vld [vmem:[%s212 + $0x30] sm:$0xff]
      %v402 = vld [vmem:[%s212 + $0x38] sm:$0xff]
      %v403 = vld [vmem:[%s212 + $0x40] sm:$0xff]
      %v404 = vld [vmem:[%s212 + $0x48] sm:$0xff]
      %v405 = vld [vmem:[%s212 + $0x50] sm:$0xff]
      %v406 = vld [vmem:[%s212 + $0x58] sm:$0xff]
      %v407 = vld [vmem:[%s212 + $0x60] sm:$0xff]
      %v408 = vld [vmem:[%s212 + $0x68] sm:$0xff]
      %v409 = vld [vmem:[%s212 + $0x70] sm:$0xff]
      %v410 = vld [vmem:[%s212 + $0x78] sm:$0xff]
      %v411 = vld [vmem:[%s212 + $0x80] sm:$0xff]
      %v412 = vld [vmem:[%s212 + $0x88] sm:$0xff]
      %v413 = vld [vmem:[%s212 + $0x90] sm:$0xff]
      %v414 = vld [vmem:[%s212 + $0x98] sm:$0xff]
      %v415 = vld [vmem:[%s212 + $0xa0] sm:$0xff]
      %v416 = vld [vmem:[%s212 + $0xa8] sm:$0xff]
      %v417 = vld [vmem:[%s212 + $0xb0] sm:$0xff]
      %v418 = vld [vmem:[%s212 + $0xb8] sm:$0xff]
      %v419 = vld [vmem:[%s212 + $0xc0] sm:$0xff]
      %v420 = vld [vmem:[%s212 + $0xc8] sm:$0xff]
      %v421 = vld [vmem:[%s212 + $0xd0] sm:$0xff]
      %v422 = vld [vmem:[%s212 + $0xd8] sm:$0xff]
      %v423 = vld [vmem:[%s212 + $0xe0] sm:$0xff]
      %v424 = vld [vmem:[%s212 + $0xe8] sm:$0xff]
      %v425 = vld [vmem:[%s212 + $0xf0] sm:$0xff]
      %v426 = vld [vmem:[%s212 + $0xf8] sm:$0xff]
      %459 = vrot.lane.b32.xlu0 %v395, 4
      %v460 = vpop.permute.xlu0 %459
      %461 = vrot.lane.b32.xlu0 %v396, 4
      %v462 = vpop.permute.xlu0 %461
      %463 = vrot.lane.b32.xlu0 %v397, 4
      %v464 = vpop.permute.xlu0 %463
      %465 = vrot.lane.b32.xlu0 %v398, 4
      %v466 = vpop.permute.xlu0 %465
      %467 = vrot.lane.b32.xlu0 %v399, 4
      %v468 = vpop.permute.xlu0 %467
      %469 = vrot.lane.b32.xlu0 %v400, 4
      %v470 = vpop.permute.xlu0 %469
      %471 = vrot.lane.b32.xlu0 %v401, 4
      %v472 = vpop.permute.xlu0 %471
      %473 = vrot.lane.b32.xlu0 %v402, 4
      %v474 = vpop.permute.xlu0 %473
      %475 = vrot.lane.b32.xlu0 %v403, 4
      %v476 = vpop.permute.xlu0 %475
      %477 = vrot.lane.b32.xlu0 %v404, 4
      %v478 = vpop.permute.xlu0 %477
      %479 = vrot.lane.b32.xlu0 %v405, 4
      %v480 = vpop.permute.xlu0 %479
      %481 = vrot.lane.b32.xlu0 %v406, 4
      %v482 = vpop.permute.xlu0 %481
      %483 = vrot.lane.b32.xlu0 %v407, 4
      %v484 = vpop.permute.xlu0 %483
      %485 = vrot.lane.b32.xlu0 %v408, 4
      %v486 = vpop.permute.xlu0 %485
      %487 = vrot.lane.b32.xlu0 %v409, 4
      %v488 = vpop.permute.xlu0 %487
      %489 = vrot.lane.b32.xlu0 %v410, 4
      %v490 = vpop.permute.xlu0 %489
      %491 = vrot.lane.b32.xlu0 %v411, 4
      %v492 = vpop.permute.xlu0 %491
      %493 = vrot.lane.b32.xlu0 %v412, 4
      %v494 = vpop.permute.xlu0 %493
      %495 = vrot.lane.b32.xlu0 %v413, 4
      %v496 = vpop.permute.xlu0 %495
      %497 = vrot.lane.b32.xlu0 %v414, 4
      %v498 = vpop.permute.xlu0 %497
      %499 = vrot.lane.b32.xlu0 %v415, 4
      %v500 = vpop.permute.xlu0 %499
      %501 = vrot.lane.b32.xlu0 %v416, 4
      %v502 = vpop.permute.xlu0 %501
      %503 = vrot.lane.b32.xlu0 %v417, 4
      %v504 = vpop.permute.xlu0 %503
      %505 = vrot.lane.b32.xlu0 %v418, 4
      %v506 = vpop.permute.xlu0 %505
      %507 = vrot.lane.b32.xlu0 %v419, 4
      %v508 = vpop.permute.xlu0 %507
      %509 = vrot.lane.b32.xlu0 %v420, 4
      %v510 = vpop.permute.xlu0 %509
      %511 = vrot.lane.b32.xlu0 %v421, 4
      %v512 = vpop.permute.xlu0 %511
      %513 = vrot.lane.b32.xlu0 %v422, 4
      %v514 = vpop.permute.xlu0 %513
      %515 = vrot.lane.b32.xlu0 %v423, 4
      %v516 = vpop.permute.xlu0 %515
      %517 = vrot.lane.b32.xlu0 %v424, 4
      %v518 = vpop.permute.xlu0 %517
      %519 = vrot.lane.b32.xlu0 %v425, 4
      %v520 = vpop.permute.xlu0 %519
      %521 = vrot.lane.b32.xlu0 %v426, 4
      %v522 = vpop.permute.xlu0 %521
      %vm555 = vcmask 31744
      %v556 = vsel %vm555, %v363, %v460
      %v557 = vsel %vm555, %v364, %v462
      %v558 = vsel %vm555, %v365, %v464
      %v559 = vsel %vm555, %v366, %v466
      %v560 = vsel %vm555, %v367, %v468
      %v561 = vsel %vm555, %v368, %v470
      %v562 = vsel %vm555, %v369, %v472
      %v563 = vsel %vm555, %v370, %v474
      %v564 = vsel %vm555, %v371, %v476
      %v565 = vsel %vm555, %v372, %v478
      %v566 = vsel %vm555, %v373, %v480
      %v567 = vsel %vm555, %v374, %v482
      %v568 = vsel %vm555, %v375, %v484
      %v569 = vsel %vm555, %v376, %v486
      %v570 = vsel %vm555, %v377, %v488
      %v571 = vsel %vm555, %v378, %v490
      %v572 = vsel %vm555, %v379, %v492
      %v573 = vsel %vm555, %v380, %v494
      %v574 = vsel %vm555, %v381, %v496
      %v575 = vsel %vm555, %v382, %v498
      %v576 = vsel %vm555, %v383, %v500
      %v577 = vsel %vm555, %v384, %v502
      %v578 = vsel %vm555, %v385, %v504
      %v579 = vsel %vm555, %v386, %v506
      %v580 = vsel %vm555, %v387, %v508
      %v581 = vsel %vm555, %v388, %v510
      %v582 = vsel %vm555, %v389, %v512
      %v583 = vsel %vm555, %v390, %v514
      %v584 = vsel %vm555, %v391, %v516
      %v585 = vsel %vm555, %v392, %v518
      %v586 = vsel %vm555, %v393, %v520
      %v587 = vsel %vm555, %v394, %v522
      %s588 = scalar_lea.vmem [#allocation2], 32
      %589 = vst.msk [vmem:[%s588 + $0x8] sm:$0xff] %vm218, %v556
      %590 = vst.msk [vmem:[%s588 + $0x10] sm:$0xff] %vm218, %v557
      %591 = vst.msk [vmem:[%s588 + $0x28] sm:$0xff] %vm218, %v558
      %592 = vst.msk [vmem:[%s588 + $0x30] sm:$0xff] %vm218, %v559
      %593 = vst.msk [vmem:[%s588 + $0x48] sm:$0xff] %vm218, %v560
      %594 = vst.msk [vmem:[%s588 + $0x50] sm:$0xff] %vm218, %v561
      %595 = vst.msk [vmem:[%s588 + $0x68] sm:$0xff] %vm218, %v562
      %596 = vst.msk [vmem:[%s588 + $0x70] sm:$0xff] %vm218, %v563
      %597 = vst.msk [vmem:[%s588 + $0x88] sm:$0xff] %vm218, %v564
      %598 = vst.msk [vmem:[%s588 + $0x90] sm:$0xff] %vm218, %v565
      %599 = vst.msk [vmem:[%s588 + $0xa8] sm:$0xff] %vm218, %v566
      %600 = vst.msk [vmem:[%s588 + $0xb0] sm:$0xff] %vm218, %v567
      %601 = vst.msk [vmem:[%s588 + $0xc8] sm:$0xff] %vm218, %v568
      %602 = vst.msk [vmem:[%s588 + $0xd0] sm:$0xff] %vm218, %v569
      %603 = vst.msk [vmem:[%s588 + $0xe8] sm:$0xff] %vm218, %v570
      %604 = vst.msk [vmem:[%s588 + $0xf0] sm:$0xff] %vm218, %v571
      %605 = vst.msk [vmem:[%s588 + $0x108] sm:$0xff] %vm218, %v572
      %606 = vst.msk [vmem:[%s588 + $0x110] sm:$0xff] %vm218, %v573
      %607 = vst.msk [vmem:[%s588 + $0x128] sm:$0xff] %vm218, %v574
      %608 = vst.msk [vmem:[%s588 + $0x130] sm:$0xff] %vm218, %v575
      %609 = vst.msk [vmem:[%s588 + $0x148] sm:$0xff] %vm218, %v576
      %610 = vst.msk [vmem:[%s588 + $0x150] sm:$0xff] %vm218, %v577
      %611 = vst.msk [vmem:[%s588 + $0x168] sm:$0xff] %vm218, %v578
      %612 = vst.msk [vmem:[%s588 + $0x170] sm:$0xff] %vm218, %v579
      %613 = vst.msk [vmem:[%s588 + $0x188] sm:$0xff] %vm218, %v580
      %614 = vst.msk [vmem:[%s588 + $0x190] sm:$0xff] %vm218, %v581
      %615 = vst.msk [vmem:[%s588 + $0x1a8] sm:$0xff] %vm218, %v582
      %616 = vst.msk [vmem:[%s588 + $0x1b0] sm:$0xff] %vm218, %v583
      %617 = vst.msk [vmem:[%s588 + $0x1c8] sm:$0xff] %vm218, %v584
      %618 = vst.msk [vmem:[%s588 + $0x1d0] sm:$0xff] %vm218, %v585
      %619 = vst.msk [vmem:[%s588 + $0x1e8] sm:$0xff] %vm218, %v586
      %620 = vst.msk [vmem:[%s588 + $0x1f0] sm:$0xff] %vm218, %v587
      %v621 = vld [vmem:[#allocation2 + $0x7] sm:$0xff]
      %v622 = vld [vmem:[#allocation2 + $0xf] sm:$0xff]
      %v623 = vld [vmem:[#allocation2 + $0x27] sm:$0xff]
      %v624 = vld [vmem:[#allocation2 + $0x2f] sm:$0xff]
      %v625 = vld [vmem:[#allocation2 + $0x47] sm:$0xff]
      %v626 = vld [vmem:[#allocation2 + $0x4f] sm:$0xff]
      %v627 = vld [vmem:[#allocation2 + $0x67] sm:$0xff]
      %v628 = vld [vmem:[#allocation2 + $0x6f] sm:$0xff]
      %v629 = vld [vmem:[#allocation2 + $0x87] sm:$0xff]
      %v630 = vld [vmem:[#allocation2 + $0x8f] sm:$0xff]
      %v631 = vld [vmem:[#allocation2 + $0xa7] sm:$0xff]
      %v632 = vld [vmem:[#allocation2 + $0xaf] sm:$0xff]
      %v633 = vld [vmem:[#allocation2 + $0xc7] sm:$0xff]
      %v634 = vld [vmem:[#allocation2 + $0xcf] sm:$0xff]
      %v635 = vld [vmem:[#allocation2 + $0xe7] sm:$0xff]
      %v636 = vld [vmem:[#allocation2 + $0xef] sm:$0xff]
      %v637 = vld [vmem:[#allocation2 + $0x107] sm:$0xff]
      %v638 = vld [vmem:[#allocation2 + $0x10f] sm:$0xff]
      %v639 = vld [vmem:[#allocation2 + $0x127] sm:$0xff]
      %v640 = vld [vmem:[#allocation2 + $0x12f] sm:$0xff]
      %v641 = vld [vmem:[#allocation2 + $0x147] sm:$0xff]
      %v642 = vld [vmem:[#allocation2 + $0x14f] sm:$0xff]
      %v643 = vld [vmem:[#allocation2 + $0x167] sm:$0xff]
      %v644 = vld [vmem:[#allocation2 + $0x16f] sm:$0xff]
      %v645 = vld [vmem:[#allocation2 + $0x187] sm:$0xff]
      %v646 = vld [vmem:[#allocation2 + $0x18f] sm:$0xff]
      %v647 = vld [vmem:[#allocation2 + $0x1a7] sm:$0xff]
      %v648 = vld [vmem:[#allocation2 + $0x1af] sm:$0xff]
      %v649 = vld [vmem:[#allocation2 + $0x1c7] sm:$0xff]
      %v650 = vld [vmem:[#allocation2 + $0x1cf] sm:$0xff]
      %v651 = vld [vmem:[#allocation2 + $0x1e7] sm:$0xff]
      %v652 = vld [vmem:[#allocation2 + $0x1ef] sm:$0xff]
      %v653 = vld [vmem:[#allocation2 + $0x8] sm:$0xff]
      %v654 = vld [vmem:[#allocation2 + $0x10] sm:$0xff]
      %v655 = vld [vmem:[#allocation2 + $0x28] sm:$0xff]
      %v656 = vld [vmem:[#allocation2 + $0x30] sm:$0xff]
      %v657 = vld [vmem:[#allocation2 + $0x48] sm:$0xff]
      %v658 = vld [vmem:[#allocation2 + $0x50] sm:$0xff]
      %v659 = vld [vmem:[#allocation2 + $0x68] sm:$0xff]
      %v660 = vld [vmem:[#allocation2 + $0x70] sm:$0xff]
      %v661 = vld [vmem:[#allocation2 + $0x88] sm:$0xff]
      %v662 = vld [vmem:[#allocation2 + $0x90] sm:$0xff]
      %v663 = vld [vmem:[#allocation2 + $0xa8] sm:$0xff]
      %v664 = vld [vmem:[#allocation2 + $0xb0] sm:$0xff]
      %v665 = vld [vmem:[#allocation2 + $0xc8] sm:$0xff]
      %v666 = vld [vmem:[#allocation2 + $0xd0] sm:$0xff]
      %v667 = vld [vmem:[#allocation2 + $0xe8] sm:$0xff]
      %v668 = vld [vmem:[#allocation2 + $0xf0] sm:$0xff]
      %v669 = vld [vmem:[#allocation2 + $0x108] sm:$0xff]
      %v670 = vld [vmem:[#allocation2 + $0x110] sm:$0xff]
      %v671 = vld [vmem:[#allocation2 + $0x128] sm:$0xff]
      %v672 = vld [vmem:[#allocation2 + $0x130] sm:$0xff]
      %v673 = vld [vmem:[#allocation2 + $0x148] sm:$0xff]
      %v674 = vld [vmem:[#allocation2 + $0x150] sm:$0xff]
      %v675 = vld [vmem:[#allocation2 + $0x168] sm:$0xff]
      %v676 = vld [vmem:[#allocation2 + $0x170] sm:$0xff]
      %v677 = vld [vmem:[#allocation2 + $0x188] sm:$0xff]
      %v678 = vld [vmem:[#allocation2 + $0x190] sm:$0xff]
      %v679 = vld [vmem:[#allocation2 + $0x1a8] sm:$0xff]
      %v680 = vld [vmem:[#allocation2 + $0x1b0] sm:$0xff]
      %v681 = vld [vmem:[#allocation2 + $0x1c8] sm:$0xff]
      %v682 = vld [vmem:[#allocation2 + $0x1d0] sm:$0xff]
      %v683 = vld [vmem:[#allocation2 + $0x1e8] sm:$0xff]
      %v684 = vld [vmem:[#allocation2 + $0x1f0] sm:$0xff]
      %v685 = vld [vmem:[#allocation2 + $0x9] sm:$0xff]
      %v686 = vld [vmem:[#allocation2 + $0x11] sm:$0xff]
      %v687 = vld [vmem:[#allocation2 + $0x29] sm:$0xff]
      %v688 = vld [vmem:[#allocation2 + $0x31] sm:$0xff]
      %v689 = vld [vmem:[#allocation2 + $0x49] sm:$0xff]
      %v690 = vld [vmem:[#allocation2 + $0x51] sm:$0xff]
      %v691 = vld [vmem:[#allocation2 + $0x69] sm:$0xff]
      %v692 = vld [vmem:[#allocation2 + $0x71] sm:$0xff]
      %v693 = vld [vmem:[#allocation2 + $0x89] sm:$0xff]
      %v694 = vld [vmem:[#allocation2 + $0x91] sm:$0xff]
      %v695 = vld [vmem:[#allocation2 + $0xa9] sm:$0xff]
      %v696 = vld [vmem:[#allocation2 + $0xb1] sm:$0xff]
      %v697 = vld [vmem:[#allocation2 + $0xc9] sm:$0xff]
      %v698 = vld [vmem:[#allocation2 + $0xd1] sm:$0xff]
      %v699 = vld [vmem:[#allocation2 + $0xe9] sm:$0xff]
      %v700 = vld [vmem:[#allocation2 + $0xf1] sm:$0xff]
      %v701 = vld [vmem:[#allocation2 + $0x109] sm:$0xff]
      %v702 = vld [vmem:[#allocation2 + $0x111] sm:$0xff]
      %v703 = vld [vmem:[#allocation2 + $0x129] sm:$0xff]
      %v704 = vld [vmem:[#allocation2 + $0x131] sm:$0xff]
      %v705 = vld [vmem:[#allocation2 + $0x149] sm:$0xff]
      %v706 = vld [vmem:[#allocation2 + $0x151] sm:$0xff]
      %v707 = vld [vmem:[#allocation2 + $0x169] sm:$0xff]
      %v708 = vld [vmem:[#allocation2 + $0x171] sm:$0xff]
      %v709 = vld [vmem:[#allocation2 + $0x189] sm:$0xff]
      %v710 = vld [vmem:[#allocation2 + $0x191] sm:$0xff]
      %v711 = vld [vmem:[#allocation2 + $0x1a9] sm:$0xff]
      %v712 = vld [vmem:[#allocation2 + $0x1b1] sm:$0xff]
      %v713 = vld [vmem:[#allocation2 + $0x1c9] sm:$0xff]
      %v714 = vld [vmem:[#allocation2 + $0x1d1] sm:$0xff]
      %v715 = vld [vmem:[#allocation2 + $0x1e9] sm:$0xff]
      %v716 = vld [vmem:[#allocation2 + $0x1f1] sm:$0xff]
      %v717 = vld [vmem:[%s588 + $0x7] sm:$0xff]
      %v718 = vld [vmem:[%s588 + $0xf] sm:$0xff]
      %v719 = vld [vmem:[%s588 + $0x27] sm:$0xff]
      %v720 = vld [vmem:[%s588 + $0x2f] sm:$0xff]
      %v721 = vld [vmem:[%s588 + $0x47] sm:$0xff]
      %v722 = vld [vmem:[%s588 + $0x4f] sm:$0xff]
      %v723 = vld [vmem:[%s588 + $0x67] sm:$0xff]
      %v724 = vld [vmem:[%s588 + $0x6f] sm:$0xff]
      %v725 = vld [vmem:[%s588 + $0x87] sm:$0xff]
      %v726 = vld [vmem:[%s588 + $0x8f] sm:$0xff]
      %v727 = vld [vmem:[%s588 + $0xa7] sm:$0xff]
      %v728 = vld [vmem:[%s588 + $0xaf] sm:$0xff]
      %v729 = vld [vmem:[%s588 + $0xc7] sm:$0xff]
      %v730 = vld [vmem:[%s588 + $0xcf] sm:$0xff]
      %v731 = vld [vmem:[%s588 + $0xe7] sm:$0xff]
      %v732 = vld [vmem:[%s588 + $0xef] sm:$0xff]
      %v733 = vld [vmem:[%s588 + $0x107] sm:$0xff]
      %v734 = vld [vmem:[%s588 + $0x10f] sm:$0xff]
      %v735 = vld [vmem:[%s588 + $0x127] sm:$0xff]
      %v736 = vld [vmem:[%s588 + $0x12f] sm:$0xff]
      %v737 = vld [vmem:[%s588 + $0x147] sm:$0xff]
      %v738 = vld [vmem:[%s588 + $0x14f] sm:$0xff]
      %v739 = vld [vmem:[%s588 + $0x167] sm:$0xff]
      %v740 = vld [vmem:[%s588 + $0x16f] sm:$0xff]
      %v741 = vld [vmem:[%s588 + $0x187] sm:$0xff]
      %v742 = vld [vmem:[%s588 + $0x18f] sm:$0xff]
      %v743 = vld [vmem:[%s588 + $0x1a7] sm:$0xff]
      %v744 = vld [vmem:[%s588 + $0x1af] sm:$0xff]
      %v745 = vld [vmem:[%s588 + $0x1c7] sm:$0xff]
      %v746 = vld [vmem:[%s588 + $0x1cf] sm:$0xff]
      %v747 = vld [vmem:[%s588 + $0x1e7] sm:$0xff]
      %v748 = vld [vmem:[%s588 + $0x1ef] sm:$0xff]
      %v749 = vld [vmem:[%s588 + $0x8] sm:$0xff]
      %v750 = vld [vmem:[%s588 + $0x10] sm:$0xff]
      %v751 = vld [vmem:[%s588 + $0x28] sm:$0xff]
      %v752 = vld [vmem:[%s588 + $0x30] sm:$0xff]
      %v753 = vld [vmem:[%s588 + $0x48] sm:$0xff]
      %v754 = vld [vmem:[%s588 + $0x50] sm:$0xff]
      %v755 = vld [vmem:[%s588 + $0x68] sm:$0xff]
      %v756 = vld [vmem:[%s588 + $0x70] sm:$0xff]
      %v757 = vld [vmem:[%s588 + $0x88] sm:$0xff]
      %v758 = vld [vmem:[%s588 + $0x90] sm:$0xff]
      %v759 = vld [vmem:[%s588 + $0xa8] sm:$0xff]
      %v760 = vld [vmem:[%s588 + $0xb0] sm:$0xff]
      %v761 = vld [vmem:[%s588 + $0xc8] sm:$0xff]
      %v762 = vld [vmem:[%s588 + $0xd0] sm:$0xff]
      %v763 = vld [vmem:[%s588 + $0xe8] sm:$0xff]
      %v764 = vld [vmem:[%s588 + $0xf0] sm:$0xff]
      %v765 = vld [vmem:[%s588 + $0x108] sm:$0xff]
      %v766 = vld [vmem:[%s588 + $0x110] sm:$0xff]
      %v767 = vld [vmem:[%s588 + $0x128] sm:$0xff]
      %v768 = vld [vmem:[%s588 + $0x130] sm:$0xff]
      %v769 = vld [vmem:[%s588 + $0x148] sm:$0xff]
      %v770 = vld [vmem:[%s588 + $0x150] sm:$0xff]
      %v771 = vld [vmem:[%s588 + $0x168] sm:$0xff]
      %v772 = vld [vmem:[%s588 + $0x170] sm:$0xff]
      %v773 = vld [vmem:[%s588 + $0x188] sm:$0xff]
      %v774 = vld [vmem:[%s588 + $0x190] sm:$0xff]
      %v775 = vld [vmem:[%s588 + $0x1a8] sm:$0xff]
      %v776 = vld [vmem:[%s588 + $0x1b0] sm:$0xff]
      %v777 = vld [vmem:[%s588 + $0x1c8] sm:$0xff]
      %v778 = vld [vmem:[%s588 + $0x1d0] sm:$0xff]
      %v779 = vld [vmem:[%s588 + $0x1e8] sm:$0xff]
      %v780 = vld [vmem:[%s588 + $0x1f0] sm:$0xff]
      %v781 = vld [vmem:[%s588 + $0x9] sm:$0xff]
      %v782 = vld [vmem:[%s588 + $0x11] sm:$0xff]
      %v783 = vld [vmem:[%s588 + $0x29] sm:$0xff]
      %v784 = vld [vmem:[%s588 + $0x31] sm:$0xff]
      %v785 = vld [vmem:[%s588 + $0x49] sm:$0xff]
      %v786 = vld [vmem:[%s588 + $0x51] sm:$0xff]
      %v787 = vld [vmem:[%s588 + $0x69] sm:$0xff]
      %v788 = vld [vmem:[%s588 + $0x71] sm:$0xff]
      %v789 = vld [vmem:[%s588 + $0x89] sm:$0xff]
      %v790 = vld [vmem:[%s588 + $0x91] sm:$0xff]
      %v791 = vld [vmem:[%s588 + $0xa9] sm:$0xff]
      %v792 = vld [vmem:[%s588 + $0xb1] sm:$0xff]
      %v793 = vld [vmem:[%s588 + $0xc9] sm:$0xff]
      %v794 = vld [vmem:[%s588 + $0xd1] sm:$0xff]
      %v795 = vld [vmem:[%s588 + $0xe9] sm:$0xff]
      %v796 = vld [vmem:[%s588 + $0xf1] sm:$0xff]
      %v797 = vld [vmem:[%s588 + $0x109] sm:$0xff]
      %v798 = vld [vmem:[%s588 + $0x111] sm:$0xff]
      %v799 = vld [vmem:[%s588 + $0x129] sm:$0xff]
      %v800 = vld [vmem:[%s588 + $0x131] sm:$0xff]
      %v801 = vld [vmem:[%s588 + $0x149] sm:$0xff]
      %v802 = vld [vmem:[%s588 + $0x151] sm:$0xff]
      %v803 = vld [vmem:[%s588 + $0x169] sm:$0xff]
      %v804 = vld [vmem:[%s588 + $0x171] sm:$0xff]
      %v805 = vld [vmem:[%s588 + $0x189] sm:$0xff]
      %v806 = vld [vmem:[%s588 + $0x191] sm:$0xff]
      %v807 = vld [vmem:[%s588 + $0x1a9] sm:$0xff]
      %v808 = vld [vmem:[%s588 + $0x1b1] sm:$0xff]
      %v809 = vld [vmem:[%s588 + $0x1c9] sm:$0xff]
      %v810 = vld [vmem:[%s588 + $0x1d1] sm:$0xff]
      %v811 = vld [vmem:[%s588 + $0x1e9] sm:$0xff]
      %v812 = vld [vmem:[%s588 + $0x1f1] sm:$0xff]
      %s813 = scalar_lea.vmem [#allocation2], 64
      %v814 = vld [vmem:[%s813 + $0x7] sm:$0xff]
      %v815 = vld [vmem:[%s813 + $0xf] sm:$0xff]
      %v816 = vld [vmem:[%s813 + $0x27] sm:$0xff]
      %v817 = vld [vmem:[%s813 + $0x2f] sm:$0xff]
      %v818 = vld [vmem:[%s813 + $0x47] sm:$0xff]
      %v819 = vld [vmem:[%s813 + $0x4f] sm:$0xff]
      %v820 = vld [vmem:[%s813 + $0x67] sm:$0xff]
      %v821 = vld [vmem:[%s813 + $0x6f] sm:$0xff]
      %v822 = vld [vmem:[%s813 + $0x87] sm:$0xff]
      %v823 = vld [vmem:[%s813 + $0x8f] sm:$0xff]
      %v824 = vld [vmem:[%s813 + $0xa7] sm:$0xff]
      %v825 = vld [vmem:[%s813 + $0xaf] sm:$0xff]
      %v826 = vld [vmem:[%s813 + $0xc7] sm:$0xff]
      %v827 = vld [vmem:[%s813 + $0xcf] sm:$0xff]
      %v828 = vld [vmem:[%s813 + $0xe7] sm:$0xff]
      %v829 = vld [vmem:[%s813 + $0xef] sm:$0xff]
      %v830 = vld [vmem:[%s813 + $0x107] sm:$0xff]
      %v831 = vld [vmem:[%s813 + $0x10f] sm:$0xff]
      %v832 = vld [vmem:[%s813 + $0x127] sm:$0xff]
      %v833 = vld [vmem:[%s813 + $0x12f] sm:$0xff]
      %v834 = vld [vmem:[%s813 + $0x147] sm:$0xff]
      %v835 = vld [vmem:[%s813 + $0x14f] sm:$0xff]
      %v836 = vld [vmem:[%s813 + $0x167] sm:$0xff]
      %v837 = vld [vmem:[%s813 + $0x16f] sm:$0xff]
      %v838 = vld [vmem:[%s813 + $0x187] sm:$0xff]
      %v839 = vld [vmem:[%s813 + $0x18f] sm:$0xff]
      %v840 = vld [vmem:[%s813 + $0x1a7] sm:$0xff]
      %v841 = vld [vmem:[%s813 + $0x1af] sm:$0xff]
      %v842 = vld [vmem:[%s813 + $0x1c7] sm:$0xff]
      %v843 = vld [vmem:[%s813 + $0x1cf] sm:$0xff]
      %v844 = vld [vmem:[%s813 + $0x1e7] sm:$0xff]
      %v845 = vld [vmem:[%s813 + $0x1ef] sm:$0xff]
      %v846 = vld [vmem:[%s813 + $0x8] sm:$0xff]
      %v847 = vld [vmem:[%s813 + $0x10] sm:$0xff]
      %v848 = vld [vmem:[%s813 + $0x28] sm:$0xff]
      %v849 = vld [vmem:[%s813 + $0x30] sm:$0xff]
      %v850 = vld [vmem:[%s813 + $0x48] sm:$0xff]
      %v851 = vld [vmem:[%s813 + $0x50] sm:$0xff]
      %v852 = vld [vmem:[%s813 + $0x68] sm:$0xff]
      %v853 = vld [vmem:[%s813 + $0x70] sm:$0xff]
      %v854 = vld [vmem:[%s813 + $0x88] sm:$0xff]
      %v855 = vld [vmem:[%s813 + $0x90] sm:$0xff]
      %v856 = vld [vmem:[%s813 + $0xa8] sm:$0xff]
      %v857 = vld [vmem:[%s813 + $0xb0] sm:$0xff]
      %v858 = vld [vmem:[%s813 + $0xc8] sm:$0xff]
      %v859 = vld [vmem:[%s813 + $0xd0] sm:$0xff]
      %v860 = vld [vmem:[%s813 + $0xe8] sm:$0xff]
      %v861 = vld [vmem:[%s813 + $0xf0] sm:$0xff]
      %v862 = vld [vmem:[%s813 + $0x108] sm:$0xff]
      %v863 = vld [vmem:[%s813 + $0x110] sm:$0xff]
      %v864 = vld [vmem:[%s813 + $0x128] sm:$0xff]
      %v865 = vld [vmem:[%s813 + $0x130] sm:$0xff]
      %v866 = vld [vmem:[%s813 + $0x148] sm:$0xff]
      %v867 = vld [vmem:[%s813 + $0x150] sm:$0xff]
      %v868 = vld [vmem:[%s813 + $0x168] sm:$0xff]
      %v869 = vld [vmem:[%s813 + $0x170] sm:$0xff]
      %v870 = vld [vmem:[%s813 + $0x188] sm:$0xff]
      %v871 = vld [vmem:[%s813 + $0x190] sm:$0xff]
      %v872 = vld [vmem:[%s813 + $0x1a8] sm:$0xff]
      %v873 = vld [vmem:[%s813 + $0x1b0] sm:$0xff]
      %v874 = vld [vmem:[%s813 + $0x1c8] sm:$0xff]
      %v875 = vld [vmem:[%s813 + $0x1d0] sm:$0xff]
      %v876 = vld [vmem:[%s813 + $0x1e8] sm:$0xff]
      %v877 = vld [vmem:[%s813 + $0x1f0] sm:$0xff]
      %v878 = vld [vmem:[%s813 + $0x9] sm:$0xff]
      %v879 = vld [vmem:[%s813 + $0x11] sm:$0xff]
      %v880 = vld [vmem:[%s813 + $0x29] sm:$0xff]
      %v881 = vld [vmem:[%s813 + $0x31] sm:$0xff]
      %v882 = vld [vmem:[%s813 + $0x49] sm:$0xff]
      %v883 = vld [vmem:[%s813 + $0x51] sm:$0xff]
      %v884 = vld [vmem:[%s813 + $0x69] sm:$0xff]
      %v885 = vld [vmem:[%s813 + $0x71] sm:$0xff]
      %v886 = vld [vmem:[%s813 + $0x89] sm:$0xff]
      %v887 = vld [vmem:[%s813 + $0x91] sm:$0xff]
      %v888 = vld [vmem:[%s813 + $0xa9] sm:$0xff]
      %v889 = vld [vmem:[%s813 + $0xb1] sm:$0xff]
      %v890 = vld [vmem:[%s813 + $0xc9] sm:$0xff]
      %v891 = vld [vmem:[%s813 + $0xd1] sm:$0xff]
      %v892 = vld [vmem:[%s813 + $0xe9] sm:$0xff]
      %v893 = vld [vmem:[%s813 + $0xf1] sm:$0xff]
      %v894 = vld [vmem:[%s813 + $0x109] sm:$0xff]
      %v895 = vld [vmem:[%s813 + $0x111] sm:$0xff]
      %v896 = vld [vmem:[%s813 + $0x129] sm:$0xff]
      %v897 = vld [vmem:[%s813 + $0x131] sm:$0xff]
      %v898 = vld [vmem:[%s813 + $0x149] sm:$0xff]
      %v899 = vld [vmem:[%s813 + $0x151] sm:$0xff]
      %v900 = vld [vmem:[%s813 + $0x169] sm:$0xff]
      %v901 = vld [vmem:[%s813 + $0x171] sm:$0xff]
      %v902 = vld [vmem:[%s813 + $0x189] sm:$0xff]
      %v903 = vld [vmem:[%s813 + $0x191] sm:$0xff]
      %v904 = vld [vmem:[%s813 + $0x1a9] sm:$0xff]
      %v905 = vld [vmem:[%s813 + $0x1b1] sm:$0xff]
      %v906 = vld [vmem:[%s813 + $0x1c9] sm:$0xff]
      %v907 = vld [vmem:[%s813 + $0x1d1] sm:$0xff]
      %v908 = vld [vmem:[%s813 + $0x1e9] sm:$0xff]
      %v909 = vld [vmem:[%s813 + $0x1f1] sm:$0xff]
      %942 = vrot.lane.b32.xlu0 %v653, 8
      %v943 = vpop.permute.xlu0 %942
      %944 = vrot.lane.b32.xlu0 %v654, 8
      %v945 = vpop.permute.xlu0 %944
      %946 = vrot.lane.b32.xlu0 %v655, 8
      %v947 = vpop.permute.xlu0 %946
      %948 = vrot.lane.b32.xlu0 %v656, 8
      %v949 = vpop.permute.xlu0 %948
      %950 = vrot.lane.b32.xlu0 %v657, 8
      %v951 = vpop.permute.xlu0 %950
      %952 = vrot.lane.b32.xlu0 %v658, 8
      %v953 = vpop.permute.xlu0 %952
      %954 = vrot.lane.b32.xlu0 %v659, 8
      %v955 = vpop.permute.xlu0 %954
      %956 = vrot.lane.b32.xlu0 %v660, 8
      %v957 = vpop.permute.xlu0 %956
      %958 = vrot.lane.b32.xlu0 %v661, 8
      %v959 = vpop.permute.xlu0 %958
      %960 = vrot.lane.b32.xlu0 %v662, 8
      %v961 = vpop.permute.xlu0 %960
      %962 = vrot.lane.b32.xlu0 %v663, 8
      %v963 = vpop.permute.xlu0 %962
      %964 = vrot.lane.b32.xlu0 %v664, 8
      %v965 = vpop.permute.xlu0 %964
      %966 = vrot.lane.b32.xlu0 %v665, 8
      %v967 = vpop.permute.xlu0 %966
      %968 = vrot.lane.b32.xlu0 %v666, 8
      %v969 = vpop.permute.xlu0 %968
      %970 = vrot.lane.b32.xlu0 %v667, 8
      %v971 = vpop.permute.xlu0 %970
      %972 = vrot.lane.b32.xlu0 %v668, 8
      %v973 = vpop.permute.xlu0 %972
      %974 = vrot.lane.b32.xlu0 %v669, 8
      %v975 = vpop.permute.xlu0 %974
      %976 = vrot.lane.b32.xlu0 %v670, 8
      %v977 = vpop.permute.xlu0 %976
      %978 = vrot.lane.b32.xlu0 %v671, 8
      %v979 = vpop.permute.xlu0 %978
      %980 = vrot.lane.b32.xlu0 %v672, 8
      %v981 = vpop.permute.xlu0 %980
      %982 = vrot.lane.b32.xlu0 %v673, 8
      %v983 = vpop.permute.xlu0 %982
      %984 = vrot.lane.b32.xlu0 %v674, 8
      %v985 = vpop.permute.xlu0 %984
      %986 = vrot.lane.b32.xlu0 %v675, 8
      %v987 = vpop.permute.xlu0 %986
      %988 = vrot.lane.b32.xlu0 %v676, 8
      %v989 = vpop.permute.xlu0 %988
      %990 = vrot.lane.b32.xlu0 %v677, 8
      %v991 = vpop.permute.xlu0 %990
      %992 = vrot.lane.b32.xlu0 %v678, 8
      %v993 = vpop.permute.xlu0 %992
      %994 = vrot.lane.b32.xlu0 %v679, 8
      %v995 = vpop.permute.xlu0 %994
      %996 = vrot.lane.b32.xlu0 %v680, 8
      %v997 = vpop.permute.xlu0 %996
      %998 = vrot.lane.b32.xlu0 %v681, 8
      %v999 = vpop.permute.xlu0 %998
      %1000 = vrot.lane.b32.xlu0 %v682, 8
      %v1001 = vpop.permute.xlu0 %1000
      %1002 = vrot.lane.b32.xlu0 %v683, 8
      %v1003 = vpop.permute.xlu0 %1002
      %1004 = vrot.lane.b32.xlu0 %v684, 8
      %v1005 = vpop.permute.xlu0 %1004
      %1070 = vrot.lane.b32.xlu0 %v685, 16
      %v1071 = vpop.permute.xlu0 %1070
      %1072 = vrot.lane.b32.xlu0 %v686, 16
      %v1073 = vpop.permute.xlu0 %1072
      %1074 = vrot.lane.b32.xlu0 %v687, 16
      %v1075 = vpop.permute.xlu0 %1074
      %1076 = vrot.lane.b32.xlu0 %v688, 16
      %v1077 = vpop.permute.xlu0 %1076
      %1078 = vrot.lane.b32.xlu0 %v689, 16
      %v1079 = vpop.permute.xlu0 %1078
      %1080 = vrot.lane.b32.xlu0 %v690, 16
      %v1081 = vpop.permute.xlu0 %1080
      %1082 = vrot.lane.b32.xlu0 %v691, 16
      %v1083 = vpop.permute.xlu0 %1082
      %1084 = vrot.lane.b32.xlu0 %v692, 16
      %v1085 = vpop.permute.xlu0 %1084
      %1086 = vrot.lane.b32.xlu0 %v693, 16
      %v1087 = vpop.permute.xlu0 %1086
      %1088 = vrot.lane.b32.xlu0 %v694, 16
      %v1089 = vpop.permute.xlu0 %1088
      %1090 = vrot.lane.b32.xlu0 %v695, 16
      %v1091 = vpop.permute.xlu0 %1090
      %1092 = vrot.lane.b32.xlu0 %v696, 16
      %v1093 = vpop.permute.xlu0 %1092
      %1094 = vrot.lane.b32.xlu0 %v697, 16
      %v1095 = vpop.permute.xlu0 %1094
      %1096 = vrot.lane.b32.xlu0 %v698, 16
      %v1097 = vpop.permute.xlu0 %1096
      %1098 = vrot.lane.b32.xlu0 %v699, 16
      %v1099 = vpop.permute.xlu0 %1098
      %1100 = vrot.lane.b32.xlu0 %v700, 16
      %v1101 = vpop.permute.xlu0 %1100
      %1102 = vrot.lane.b32.xlu0 %v701, 16
      %v1103 = vpop.permute.xlu0 %1102
      %1104 = vrot.lane.b32.xlu0 %v702, 16
      %v1105 = vpop.permute.xlu0 %1104
      %1106 = vrot.lane.b32.xlu0 %v703, 16
      %v1107 = vpop.permute.xlu0 %1106
      %1108 = vrot.lane.b32.xlu0 %v704, 16
      %v1109 = vpop.permute.xlu0 %1108
      %1110 = vrot.lane.b32.xlu0 %v705, 16
      %v1111 = vpop.permute.xlu0 %1110
      %1112 = vrot.lane.b32.xlu0 %v706, 16
      %v1113 = vpop.permute.xlu0 %1112
      %1114 = vrot.lane.b32.xlu0 %v707, 16
      %v1115 = vpop.permute.xlu0 %1114
      %1116 = vrot.lane.b32.xlu0 %v708, 16
      %v1117 = vpop.permute.xlu0 %1116
      %1118 = vrot.lane.b32.xlu0 %v709, 16
      %v1119 = vpop.permute.xlu0 %1118
      %1120 = vrot.lane.b32.xlu0 %v710, 16
      %v1121 = vpop.permute.xlu0 %1120
      %1122 = vrot.lane.b32.xlu0 %v711, 16
      %v1123 = vpop.permute.xlu0 %1122
      %1124 = vrot.lane.b32.xlu0 %v712, 16
      %v1125 = vpop.permute.xlu0 %1124
      %1126 = vrot.lane.b32.xlu0 %v713, 16
      %v1127 = vpop.permute.xlu0 %1126
      %1128 = vrot.lane.b32.xlu0 %v714, 16
      %v1129 = vpop.permute.xlu0 %1128
      %1130 = vrot.lane.b32.xlu0 %v715, 16
      %v1131 = vpop.permute.xlu0 %1130
      %1132 = vrot.lane.b32.xlu0 %v716, 16
      %v1133 = vpop.permute.xlu0 %1132
      %1198 = vrot.lane.b32.xlu0 %v717, 24
      %v1199 = vpop.permute.xlu0 %1198
      %1200 = vrot.lane.b32.xlu0 %v718, 24
      %v1201 = vpop.permute.xlu0 %1200
      %1202 = vrot.lane.b32.xlu0 %v719, 24
      %v1203 = vpop.permute.xlu0 %1202
      %1204 = vrot.lane.b32.xlu0 %v720, 24
      %v1205 = vpop.permute.xlu0 %1204
      %1206 = vrot.lane.b32.xlu0 %v721, 24
      %v1207 = vpop.permute.xlu0 %1206
      %1208 = vrot.lane.b32.xlu0 %v722, 24
      %v1209 = vpop.permute.xlu0 %1208
      %1210 = vrot.lane.b32.xlu0 %v723, 24
      %v1211 = vpop.permute.xlu0 %1210
      %1212 = vrot.lane.b32.xlu0 %v724, 24
      %v1213 = vpop.permute.xlu0 %1212
      %1214 = vrot.lane.b32.xlu0 %v725, 24
      %v1215 = vpop.permute.xlu0 %1214
      %1216 = vrot.lane.b32.xlu0 %v726, 24
      %v1217 = vpop.permute.xlu0 %1216
      %1218 = vrot.lane.b32.xlu0 %v727, 24
      %v1219 = vpop.permute.xlu0 %1218
      %1220 = vrot.lane.b32.xlu0 %v728, 24
      %v1221 = vpop.permute.xlu0 %1220
      %1222 = vrot.lane.b32.xlu0 %v729, 24
      %v1223 = vpop.permute.xlu0 %1222
      %1224 = vrot.lane.b32.xlu0 %v730, 24
      %v1225 = vpop.permute.xlu0 %1224
      %1226 = vrot.lane.b32.xlu0 %v731, 24
      %v1227 = vpop.permute.xlu0 %1226
      %1228 = vrot.lane.b32.xlu0 %v732, 24
      %v1229 = vpop.permute.xlu0 %1228
      %1230 = vrot.lane.b32.xlu0 %v733, 24
      %v1231 = vpop.permute.xlu0 %1230
      %1232 = vrot.lane.b32.xlu0 %v734, 24
      %v1233 = vpop.permute.xlu0 %1232
      %1234 = vrot.lane.b32.xlu0 %v735, 24
      %v1235 = vpop.permute.xlu0 %1234
      %1236 = vrot.lane.b32.xlu0 %v736, 24
      %v1237 = vpop.permute.xlu0 %1236
      %1238 = vrot.lane.b32.xlu0 %v737, 24
      %v1239 = vpop.permute.xlu0 %1238
      %1240 = vrot.lane.b32.xlu0 %v738, 24
      %v1241 = vpop.permute.xlu0 %1240
      %1242 = vrot.lane.b32.xlu0 %v739, 24
      %v1243 = vpop.permute.xlu0 %1242
      %1244 = vrot.lane.b32.xlu0 %v740, 24
      %v1245 = vpop.permute.xlu0 %1244
      %1246 = vrot.lane.b32.xlu0 %v741, 24
      %v1247 = vpop.permute.xlu0 %1246
      %1248 = vrot.lane.b32.xlu0 %v742, 24
      %v1249 = vpop.permute.xlu0 %1248
      %1250 = vrot.lane.b32.xlu0 %v743, 24
      %v1251 = vpop.permute.xlu0 %1250
      %1252 = vrot.lane.b32.xlu0 %v744, 24
      %v1253 = vpop.permute.xlu0 %1252
      %1254 = vrot.lane.b32.xlu0 %v745, 24
      %v1255 = vpop.permute.xlu0 %1254
      %1256 = vrot.lane.b32.xlu0 %v746, 24
      %v1257 = vpop.permute.xlu0 %1256
      %1258 = vrot.lane.b32.xlu0 %v747, 24
      %v1259 = vpop.permute.xlu0 %1258
      %1260 = vrot.lane.b32.xlu0 %v748, 24
      %v1261 = vpop.permute.xlu0 %1260
      %1326 = vrot.lane.b32.xlu0 %v749, 32
      %v1327 = vpop.permute.xlu0 %1326
      %1328 = vrot.lane.b32.xlu0 %v750, 32
      %v1329 = vpop.permute.xlu0 %1328
      %1330 = vrot.lane.b32.xlu0 %v751, 32
      %v1331 = vpop.permute.xlu0 %1330
      %1332 = vrot.lane.b32.xlu0 %v752, 32
      %v1333 = vpop.permute.xlu0 %1332
      %1334 = vrot.lane.b32.xlu0 %v753, 32
      %v1335 = vpop.permute.xlu0 %1334
      %1336 = vrot.lane.b32.xlu0 %v754, 32
      %v1337 = vpop.permute.xlu0 %1336
      %1338 = vrot.lane.b32.xlu0 %v755, 32
      %v1339 = vpop.permute.xlu0 %1338
      %1340 = vrot.lane.b32.xlu0 %v756, 32
      %v1341 = vpop.permute.xlu0 %1340
      %1342 = vrot.lane.b32.xlu0 %v757, 32
      %v1343 = vpop.permute.xlu0 %1342
      %1344 = vrot.lane.b32.xlu0 %v758, 32
      %v1345 = vpop.permute.xlu0 %1344
      %1346 = vrot.lane.b32.xlu0 %v759, 32
      %v1347 = vpop.permute.xlu0 %1346
      %1348 = vrot.lane.b32.xlu0 %v760, 32
      %v1349 = vpop.permute.xlu0 %1348
      %1350 = vrot.lane.b32.xlu0 %v761, 32
      %v1351 = vpop.permute.xlu0 %1350
      %1352 = vrot.lane.b32.xlu0 %v762, 32
      %v1353 = vpop.permute.xlu0 %1352
      %1354 = vrot.lane.b32.xlu0 %v763, 32
      %v1355 = vpop.permute.xlu0 %1354
      %1356 = vrot.lane.b32.xlu0 %v764, 32
      %v1357 = vpop.permute.xlu0 %1356
      %1358 = vrot.lane.b32.xlu0 %v765, 32
      %v1359 = vpop.permute.xlu0 %1358
      %1360 = vrot.lane.b32.xlu0 %v766, 32
      %v1361 = vpop.permute.xlu0 %1360
      %1362 = vrot.lane.b32.xlu0 %v767, 32
      %v1363 = vpop.permute.xlu0 %1362
      %1364 = vrot.lane.b32.xlu0 %v768, 32
      %v1365 = vpop.permute.xlu0 %1364
      %1366 = vrot.lane.b32.xlu0 %v769, 32
      %v1367 = vpop.permute.xlu0 %1366
      %1368 = vrot.lane.b32.xlu0 %v770, 32
      %v1369 = vpop.permute.xlu0 %1368
      %1370 = vrot.lane.b32.xlu0 %v771, 32
      %v1371 = vpop.permute.xlu0 %1370
      %1372 = vrot.lane.b32.xlu0 %v772, 32
      %v1373 = vpop.permute.xlu0 %1372
      %1374 = vrot.lane.b32.xlu0 %v773, 32
      %v1375 = vpop.permute.xlu0 %1374
      %1376 = vrot.lane.b32.xlu0 %v774, 32
      %v1377 = vpop.permute.xlu0 %1376
      %1378 = vrot.lane.b32.xlu0 %v775, 32
      %v1379 = vpop.permute.xlu0 %1378
      %1380 = vrot.lane.b32.xlu0 %v776, 32
      %v1381 = vpop.permute.xlu0 %1380
      %1382 = vrot.lane.b32.xlu0 %v777, 32
      %v1383 = vpop.permute.xlu0 %1382
      %1384 = vrot.lane.b32.xlu0 %v778, 32
      %v1385 = vpop.permute.xlu0 %1384
      %1386 = vrot.lane.b32.xlu0 %v779, 32
      %v1387 = vpop.permute.xlu0 %1386
      %1388 = vrot.lane.b32.xlu0 %v780, 32
      %v1389 = vpop.permute.xlu0 %1388
      %1454 = vrot.lane.b32.xlu0 %v781, 40
      %v1455 = vpop.permute.xlu0 %1454
      %1456 = vrot.lane.b32.xlu0 %v782, 40
      %v1457 = vpop.permute.xlu0 %1456
      %1458 = vrot.lane.b32.xlu0 %v783, 40
      %v1459 = vpop.permute.xlu0 %1458
      %1460 = vrot.lane.b32.xlu0 %v784, 40
      %v1461 = vpop.permute.xlu0 %1460
      %1462 = vrot.lane.b32.xlu0 %v785, 40
      %v1463 = vpop.permute.xlu0 %1462
      %1464 = vrot.lane.b32.xlu0 %v786, 40
      %v1465 = vpop.permute.xlu0 %1464
      %1466 = vrot.lane.b32.xlu0 %v787, 40
      %v1467 = vpop.permute.xlu0 %1466
      %1468 = vrot.lane.b32.xlu0 %v788, 40
      %v1469 = vpop.permute.xlu0 %1468
      %1470 = vrot.lane.b32.xlu0 %v789, 40
      %v1471 = vpop.permute.xlu0 %1470
      %1472 = vrot.lane.b32.xlu0 %v790, 40
      %v1473 = vpop.permute.xlu0 %1472
      %1474 = vrot.lane.b32.xlu0 %v791, 40
      %v1475 = vpop.permute.xlu0 %1474
      %1476 = vrot.lane.b32.xlu0 %v792, 40
      %v1477 = vpop.permute.xlu0 %1476
      %1478 = vrot.lane.b32.xlu0 %v793, 40
      %v1479 = vpop.permute.xlu0 %1478
      %1480 = vrot.lane.b32.xlu0 %v794, 40
      %v1481 = vpop.permute.xlu0 %1480
      %1482 = vrot.lane.b32.xlu0 %v795, 40
      %v1483 = vpop.permute.xlu0 %1482
      %1484 = vrot.lane.b32.xlu0 %v796, 40
      %v1485 = vpop.permute.xlu0 %1484
      %1486 = vrot.lane.b32.xlu0 %v797, 40
      %v1487 = vpop.permute.xlu0 %1486
      %1488 = vrot.lane.b32.xlu0 %v798, 40
      %v1489 = vpop.permute.xlu0 %1488
      %1490 = vrot.lane.b32.xlu0 %v799, 40
      %v1491 = vpop.permute.xlu0 %1490
      %1492 = vrot.lane.b32.xlu0 %v800, 40
      %v1493 = vpop.permute.xlu0 %1492
      %1494 = vrot.lane.b32.xlu0 %v801, 40
      %v1495 = vpop.permute.xlu0 %1494
      %1496 = vrot.lane.b32.xlu0 %v802, 40
      %v1497 = vpop.permute.xlu0 %1496
      %1498 = vrot.lane.b32.xlu0 %v803, 40
      %v1499 = vpop.permute.xlu0 %1498
      %1500 = vrot.lane.b32.xlu0 %v804, 40
      %v1501 = vpop.permute.xlu0 %1500
      %1502 = vrot.lane.b32.xlu0 %v805, 40
      %v1503 = vpop.permute.xlu0 %1502
      %1504 = vrot.lane.b32.xlu0 %v806, 40
      %v1505 = vpop.permute.xlu0 %1504
      %1506 = vrot.lane.b32.xlu0 %v807, 40
      %v1507 = vpop.permute.xlu0 %1506
      %1508 = vrot.lane.b32.xlu0 %v808, 40
      %v1509 = vpop.permute.xlu0 %1508
      %1510 = vrot.lane.b32.xlu0 %v809, 40
      %v1511 = vpop.permute.xlu0 %1510
      %1512 = vrot.lane.b32.xlu0 %v810, 40
      %v1513 = vpop.permute.xlu0 %1512
      %1514 = vrot.lane.b32.xlu0 %v811, 40
      %v1515 = vpop.permute.xlu0 %1514
      %1516 = vrot.lane.b32.xlu0 %v812, 40
      %v1517 = vpop.permute.xlu0 %1516
      %1582 = vrot.lane.b32.xlu0 %v814, 48
      %v1583 = vpop.permute.xlu0 %1582
      %1584 = vrot.lane.b32.xlu0 %v815, 48
      %v1585 = vpop.permute.xlu0 %1584
      %1586 = vrot.lane.b32.xlu0 %v816, 48
      %v1587 = vpop.permute.xlu0 %1586
      %1588 = vrot.lane.b32.xlu0 %v817, 48
      %v1589 = vpop.permute.xlu0 %1588
      %1590 = vrot.lane.b32.xlu0 %v818, 48
      %v1591 = vpop.permute.xlu0 %1590
      %1592 = vrot.lane.b32.xlu0 %v819, 48
      %v1593 = vpop.permute.xlu0 %1592
      %1594 = vrot.lane.b32.xlu0 %v820, 48
      %v1595 = vpop.permute.xlu0 %1594
      %1596 = vrot.lane.b32.xlu0 %v821, 48
      %v1597 = vpop.permute.xlu0 %1596
      %1598 = vrot.lane.b32.xlu0 %v822, 48
      %v1599 = vpop.permute.xlu0 %1598
      %1600 = vrot.lane.b32.xlu0 %v823, 48
      %v1601 = vpop.permute.xlu0 %1600
      %1602 = vrot.lane.b32.xlu0 %v824, 48
      %v1603 = vpop.permute.xlu0 %1602
      %1604 = vrot.lane.b32.xlu0 %v825, 48
      %v1605 = vpop.permute.xlu0 %1604
      %1606 = vrot.lane.b32.xlu0 %v826, 48
      %v1607 = vpop.permute.xlu0 %1606
      %1608 = vrot.lane.b32.xlu0 %v827, 48
      %v1609 = vpop.permute.xlu0 %1608
      %1610 = vrot.lane.b32.xlu0 %v828, 48
      %v1611 = vpop.permute.xlu0 %1610
      %1612 = vrot.lane.b32.xlu0 %v829, 48
      %v1613 = vpop.permute.xlu0 %1612
      %1614 = vrot.lane.b32.xlu0 %v830, 48
      %v1615 = vpop.permute.xlu0 %1614
      %1616 = vrot.lane.b32.xlu0 %v831, 48
      %v1617 = vpop.permute.xlu0 %1616
      %1618 = vrot.lane.b32.xlu0 %v832, 48
      %v1619 = vpop.permute.xlu0 %1618
      %1620 = vrot.lane.b32.xlu0 %v833, 48
      %v1621 = vpop.permute.xlu0 %1620
      %1622 = vrot.lane.b32.xlu0 %v834, 48
      %v1623 = vpop.permute.xlu0 %1622
      %1624 = vrot.lane.b32.xlu0 %v835, 48
      %v1625 = vpop.permute.xlu0 %1624
      %1626 = vrot.lane.b32.xlu0 %v836, 48
      %v1627 = vpop.permute.xlu0 %1626
      %1628 = vrot.lane.b32.xlu0 %v837, 48
      %v1629 = vpop.permute.xlu0 %1628
      %1630 = vrot.lane.b32.xlu0 %v838, 48
      %v1631 = vpop.permute.xlu0 %1630
      %1632 = vrot.lane.b32.xlu0 %v839, 48
      %v1633 = vpop.permute.xlu0 %1632
      %1634 = vrot.lane.b32.xlu0 %v840, 48
      %v1635 = vpop.permute.xlu0 %1634
      %1636 = vrot.lane.b32.xlu0 %v841, 48
      %v1637 = vpop.permute.xlu0 %1636
      %1638 = vrot.lane.b32.xlu0 %v842, 48
      %v1639 = vpop.permute.xlu0 %1638
      %1640 = vrot.lane.b32.xlu0 %v843, 48
      %v1641 = vpop.permute.xlu0 %1640
      %1642 = vrot.lane.b32.xlu0 %v844, 48
      %v1643 = vpop.permute.xlu0 %1642
      %1644 = vrot.lane.b32.xlu0 %v845, 48
      %v1645 = vpop.permute.xlu0 %1644
      %1710 = vrot.lane.b32.xlu0 %v846, 56
      %v1711 = vpop.permute.xlu0 %1710
      %1712 = vrot.lane.b32.xlu0 %v847, 56
      %v1713 = vpop.permute.xlu0 %1712
      %1714 = vrot.lane.b32.xlu0 %v848, 56
      %v1715 = vpop.permute.xlu0 %1714
      %1716 = vrot.lane.b32.xlu0 %v849, 56
      %v1717 = vpop.permute.xlu0 %1716
      %1718 = vrot.lane.b32.xlu0 %v850, 56
      %v1719 = vpop.permute.xlu0 %1718
      %1720 = vrot.lane.b32.xlu0 %v851, 56
      %v1721 = vpop.permute.xlu0 %1720
      %1722 = vrot.lane.b32.xlu0 %v852, 56
      %v1723 = vpop.permute.xlu0 %1722
      %1724 = vrot.lane.b32.xlu0 %v853, 56
      %v1725 = vpop.permute.xlu0 %1724
      %1726 = vrot.lane.b32.xlu0 %v854, 56
      %v1727 = vpop.permute.xlu0 %1726
      %1728 = vrot.lane.b32.xlu0 %v855, 56
      %v1729 = vpop.permute.xlu0 %1728
      %1730 = vrot.lane.b32.xlu0 %v856, 56
      %v1731 = vpop.permute.xlu0 %1730
      %1732 = vrot.lane.b32.xlu0 %v857, 56
      %v1733 = vpop.permute.xlu0 %1732
      %1734 = vrot.lane.b32.xlu0 %v858, 56
      %v1735 = vpop.permute.xlu0 %1734
      %1736 = vrot.lane.b32.xlu0 %v859, 56
      %v1737 = vpop.permute.xlu0 %1736
      %1738 = vrot.lane.b32.xlu0 %v860, 56
      %v1739 = vpop.permute.xlu0 %1738
      %1740 = vrot.lane.b32.xlu0 %v861, 56
      %v1741 = vpop.permute.xlu0 %1740
      %1742 = vrot.lane.b32.xlu0 %v862, 56
      %v1743 = vpop.permute.xlu0 %1742
      %1744 = vrot.lane.b32.xlu0 %v863, 56
      %v1745 = vpop.permute.xlu0 %1744
      %1746 = vrot.lane.b32.xlu0 %v864, 56
      %v1747 = vpop.permute.xlu0 %1746
      %1748 = vrot.lane.b32.xlu0 %v865, 56
      %v1749 = vpop.permute.xlu0 %1748
      %1750 = vrot.lane.b32.xlu0 %v866, 56
      %v1751 = vpop.permute.xlu0 %1750
      %1752 = vrot.lane.b32.xlu0 %v867, 56
      %v1753 = vpop.permute.xlu0 %1752
      %1754 = vrot.lane.b32.xlu0 %v868, 56
      %v1755 = vpop.permute.xlu0 %1754
      %1756 = vrot.lane.b32.xlu0 %v869, 56
      %v1757 = vpop.permute.xlu0 %1756
      %1758 = vrot.lane.b32.xlu0 %v870, 56
      %v1759 = vpop.permute.xlu0 %1758
      %1760 = vrot.lane.b32.xlu0 %v871, 56
      %v1761 = vpop.permute.xlu0 %1760
      %1762 = vrot.lane.b32.xlu0 %v872, 56
      %v1763 = vpop.permute.xlu0 %1762
      %1764 = vrot.lane.b32.xlu0 %v873, 56
      %v1765 = vpop.permute.xlu0 %1764
      %1766 = vrot.lane.b32.xlu0 %v874, 56
      %v1767 = vpop.permute.xlu0 %1766
      %1768 = vrot.lane.b32.xlu0 %v875, 56
      %v1769 = vpop.permute.xlu0 %1768
      %1770 = vrot.lane.b32.xlu0 %v876, 56
      %v1771 = vpop.permute.xlu0 %1770
      %1772 = vrot.lane.b32.xlu0 %v877, 56
      %v1773 = vpop.permute.xlu0 %1772
      %1838 = vrot.lane.b32.xlu0 %v878, 64
      %v1839 = vpop.permute.xlu0 %1838
      %1840 = vrot.lane.b32.xlu0 %v879, 64
      %v1841 = vpop.permute.xlu0 %1840
      %1842 = vrot.lane.b32.xlu0 %v880, 64
      %v1843 = vpop.permute.xlu0 %1842
      %1844 = vrot.lane.b32.xlu0 %v881, 64
      %v1845 = vpop.permute.xlu0 %1844
      %1846 = vrot.lane.b32.xlu0 %v882, 64
      %v1847 = vpop.permute.xlu0 %1846
      %1848 = vrot.lane.b32.xlu0 %v883, 64
      %v1849 = vpop.permute.xlu0 %1848
      %1850 = vrot.lane.b32.xlu0 %v884, 64
      %v1851 = vpop.permute.xlu0 %1850
      %1852 = vrot.lane.b32.xlu0 %v885, 64
      %v1853 = vpop.permute.xlu0 %1852
      %1854 = vrot.lane.b32.xlu0 %v886, 64
      %v1855 = vpop.permute.xlu0 %1854
      %1856 = vrot.lane.b32.xlu0 %v887, 64
      %v1857 = vpop.permute.xlu0 %1856
      %1858 = vrot.lane.b32.xlu0 %v888, 64
      %v1859 = vpop.permute.xlu0 %1858
      %1860 = vrot.lane.b32.xlu0 %v889, 64
      %v1861 = vpop.permute.xlu0 %1860
      %1862 = vrot.lane.b32.xlu0 %v890, 64
      %v1863 = vpop.permute.xlu0 %1862
      %1864 = vrot.lane.b32.xlu0 %v891, 64
      %v1865 = vpop.permute.xlu0 %1864
      %1866 = vrot.lane.b32.xlu0 %v892, 64
      %v1867 = vpop.permute.xlu0 %1866
      %1868 = vrot.lane.b32.xlu0 %v893, 64
      %v1869 = vpop.permute.xlu0 %1868
      %1870 = vrot.lane.b32.xlu0 %v894, 64
      %v1871 = vpop.permute.xlu0 %1870
      %1872 = vrot.lane.b32.xlu0 %v895, 64
      %v1873 = vpop.permute.xlu0 %1872
      %1874 = vrot.lane.b32.xlu0 %v896, 64
      %v1875 = vpop.permute.xlu0 %1874
      %1876 = vrot.lane.b32.xlu0 %v897, 64
      %v1877 = vpop.permute.xlu0 %1876
      %1878 = vrot.lane.b32.xlu0 %v898, 64
      %v1879 = vpop.permute.xlu0 %1878
      %1880 = vrot.lane.b32.xlu0 %v899, 64
      %v1881 = vpop.permute.xlu0 %1880
      %1882 = vrot.lane.b32.xlu0 %v900, 64
      %v1883 = vpop.permute.xlu0 %1882
      %1884 = vrot.lane.b32.xlu0 %v901, 64
      %v1885 = vpop.permute.xlu0 %1884
      %1886 = vrot.lane.b32.xlu0 %v902, 64
      %v1887 = vpop.permute.xlu0 %1886
      %1888 = vrot.lane.b32.xlu0 %v903, 64
      %v1889 = vpop.permute.xlu0 %1888
      %1890 = vrot.lane.b32.xlu0 %v904, 64
      %v1891 = vpop.permute.xlu0 %1890
      %1892 = vrot.lane.b32.xlu0 %v905, 64
      %v1893 = vpop.permute.xlu0 %1892
      %1894 = vrot.lane.b32.xlu0 %v906, 64
      %v1895 = vpop.permute.xlu0 %1894
      %1896 = vrot.lane.b32.xlu0 %v907, 64
      %v1897 = vpop.permute.xlu0 %1896
      %1898 = vrot.lane.b32.xlu0 %v908, 64
      %v1899 = vpop.permute.xlu0 %1898
      %1900 = vrot.lane.b32.xlu0 %v909, 64
      %v1901 = vpop.permute.xlu0 %1900
      %v1934 = vsel %vm218, %v621, %v943
      %v1935 = vsel %vm218, %v622, %v945
      %v1936 = vsel %vm218, %v623, %v947
      %v1937 = vsel %vm218, %v624, %v949
      %v1938 = vsel %vm218, %v625, %v951
      %v1939 = vsel %vm218, %v626, %v953
      %v1940 = vsel %vm218, %v627, %v955
      %v1941 = vsel %vm218, %v628, %v957
      %v1942 = vsel %vm218, %v629, %v959
      %v1943 = vsel %vm218, %v630, %v961
      %v1944 = vsel %vm218, %v631, %v963
      %v1945 = vsel %vm218, %v632, %v965
      %v1946 = vsel %vm218, %v633, %v967
      %v1947 = vsel %vm218, %v634, %v969
      %v1948 = vsel %vm218, %v635, %v971
      %v1949 = vsel %vm218, %v636, %v973
      %v1950 = vsel %vm218, %v637, %v975
      %v1951 = vsel %vm218, %v638, %v977
      %v1952 = vsel %vm218, %v639, %v979
      %v1953 = vsel %vm218, %v640, %v981
      %v1954 = vsel %vm218, %v641, %v983
      %v1955 = vsel %vm218, %v642, %v985
      %v1956 = vsel %vm218, %v643, %v987
      %v1957 = vsel %vm218, %v644, %v989
      %v1958 = vsel %vm218, %v645, %v991
      %v1959 = vsel %vm218, %v646, %v993
      %v1960 = vsel %vm218, %v647, %v995
      %v1961 = vsel %vm218, %v648, %v997
      %v1962 = vsel %vm218, %v649, %v999
      %v1963 = vsel %vm218, %v650, %v1001
      %v1964 = vsel %vm218, %v651, %v1003
      %v1965 = vsel %vm218, %v652, %v1005
      %vm1966 = vcmask 130048
      %v1967 = vsel %vm1966, %v1934, %v1071
      %v1968 = vsel %vm1966, %v1935, %v1073
      %v1969 = vsel %vm1966, %v1936, %v1075
      %v1970 = vsel %vm1966, %v1937, %v1077
      %v1971 = vsel %vm1966, %v1938, %v1079
      %v1972 = vsel %vm1966, %v1939, %v1081
      %v1973 = vsel %vm1966, %v1940, %v1083
      %v1974 = vsel %vm1966, %v1941, %v1085
      %v1975 = vsel %vm1966, %v1942, %v1087
      %v1976 = vsel %vm1966, %v1943, %v1089
      %v1977 = vsel %vm1966, %v1944, %v1091
      %v1978 = vsel %vm1966, %v1945, %v1093
      %v1979 = vsel %vm1966, %v1946, %v1095
      %v1980 = vsel %vm1966, %v1947, %v1097
      %v1981 = vsel %vm1966, %v1948, %v1099
      %v1982 = vsel %vm1966, %v1949, %v1101
      %v1983 = vsel %vm1966, %v1950, %v1103
      %v1984 = vsel %vm1966, %v1951, %v1105
      %v1985 = vsel %vm1966, %v1952, %v1107
      %v1986 = vsel %vm1966, %v1953, %v1109
      %v1987 = vsel %vm1966, %v1954, %v1111
      %v1988 = vsel %vm1966, %v1955, %v1113
      %v1989 = vsel %vm1966, %v1956, %v1115
      %v1990 = vsel %vm1966, %v1957, %v1117
      %v1991 = vsel %vm1966, %v1958, %v1119
      %v1992 = vsel %vm1966, %v1959, %v1121
      %v1993 = vsel %vm1966, %v1960, %v1123
      %v1994 = vsel %vm1966, %v1961, %v1125
      %v1995 = vsel %vm1966, %v1962, %v1127
      %v1996 = vsel %vm1966, %v1963, %v1129
      %v1997 = vsel %vm1966, %v1964, %v1131
      %v1998 = vsel %vm1966, %v1965, %v1133
      %vm1999 = vcmask 195584
      %v2000 = vsel %vm1999, %v1967, %v1199
      %v2001 = vsel %vm1999, %v1968, %v1201
      %v2002 = vsel %vm1999, %v1969, %v1203
      %v2003 = vsel %vm1999, %v1970, %v1205
      %v2004 = vsel %vm1999, %v1971, %v1207
      %v2005 = vsel %vm1999, %v1972, %v1209
      %v2006 = vsel %vm1999, %v1973, %v1211
      %v2007 = vsel %vm1999, %v1974, %v1213
      %v2008 = vsel %vm1999, %v1975, %v1215
      %v2009 = vsel %vm1999, %v1976, %v1217
      %v2010 = vsel %vm1999, %v1977, %v1219
      %v2011 = vsel %vm1999, %v1978, %v1221
      %v2012 = vsel %vm1999, %v1979, %v1223
      %v2013 = vsel %vm1999, %v1980, %v1225
      %v2014 = vsel %vm1999, %v1981, %v1227
      %v2015 = vsel %vm1999, %v1982, %v1229
      %v2016 = vsel %vm1999, %v1983, %v1231
      %v2017 = vsel %vm1999, %v1984, %v1233
      %v2018 = vsel %vm1999, %v1985, %v1235
      %v2019 = vsel %vm1999, %v1986, %v1237
      %v2020 = vsel %vm1999, %v1987, %v1239
      %v2021 = vsel %vm1999, %v1988, %v1241
      %v2022 = vsel %vm1999, %v1989, %v1243
      %v2023 = vsel %vm1999, %v1990, %v1245
      %v2024 = vsel %vm1999, %v1991, %v1247
      %v2025 = vsel %vm1999, %v1992, %v1249
      %v2026 = vsel %vm1999, %v1993, %v1251
      %v2027 = vsel %vm1999, %v1994, %v1253
      %v2028 = vsel %vm1999, %v1995, %v1255
      %v2029 = vsel %vm1999, %v1996, %v1257
      %v2030 = vsel %vm1999, %v1997, %v1259
      %v2031 = vsel %vm1999, %v1998, %v1261
      %vm2032 = vcmask 261120
      %v2033 = vsel %vm2032, %v2000, %v1327
      %v2034 = vsel %vm2032, %v2001, %v1329
      %v2035 = vsel %vm2032, %v2002, %v1331
      %v2036 = vsel %vm2032, %v2003, %v1333
      %v2037 = vsel %vm2032, %v2004, %v1335
      %v2038 = vsel %vm2032, %v2005, %v1337
      %v2039 = vsel %vm2032, %v2006, %v1339
      %v2040 = vsel %vm2032, %v2007, %v1341
      %v2041 = vsel %vm2032, %v2008, %v1343
      %v2042 = vsel %vm2032, %v2009, %v1345
      %v2043 = vsel %vm2032, %v2010, %v1347
      %v2044 = vsel %vm2032, %v2011, %v1349
      %v2045 = vsel %vm2032, %v2012, %v1351
      %v2046 = vsel %vm2032, %v2013, %v1353
      %v2047 = vsel %vm2032, %v2014, %v1355
      %v2048 = vsel %vm2032, %v2015, %v1357
      %v2049 = vsel %vm2032, %v2016, %v1359
      %v2050 = vsel %vm2032, %v2017, %v1361
      %v2051 = vsel %vm2032, %v2018, %v1363
      %v2052 = vsel %vm2032, %v2019, %v1365
      %v2053 = vsel %vm2032, %v2020, %v1367
      %v2054 = vsel %vm2032, %v2021, %v1369
      %v2055 = vsel %vm2032, %v2022, %v1371
      %v2056 = vsel %vm2032, %v2023, %v1373
      %v2057 = vsel %vm2032, %v2024, %v1375
      %v2058 = vsel %vm2032, %v2025, %v1377
      %v2059 = vsel %vm2032, %v2026, %v1379
      %v2060 = vsel %vm2032, %v2027, %v1381
      %v2061 = vsel %vm2032, %v2028, %v1383
      %v2062 = vsel %vm2032, %v2029, %v1385
      %v2063 = vsel %vm2032, %v2030, %v1387
      %v2064 = vsel %vm2032, %v2031, %v1389
      %vm2065 = vcmask 326656
      %v2066 = vsel %vm2065, %v2033, %v1455
      %v2067 = vsel %vm2065, %v2034, %v1457
      %v2068 = vsel %vm2065, %v2035, %v1459
      %v2069 = vsel %vm2065, %v2036, %v1461
      %v2070 = vsel %vm2065, %v2037, %v1463
      %v2071 = vsel %vm2065, %v2038, %v1465
      %v2072 = vsel %vm2065, %v2039, %v1467
      %v2073 = vsel %vm2065, %v2040, %v1469
      %v2074 = vsel %vm2065, %v2041, %v1471
      %v2075 = vsel %vm2065, %v2042, %v1473
      %v2076 = vsel %vm2065, %v2043, %v1475
      %v2077 = vsel %vm2065, %v2044, %v1477
      %v2078 = vsel %vm2065, %v2045, %v1479
      %v2079 = vsel %vm2065, %v2046, %v1481
      %v2080 = vsel %vm2065, %v2047, %v1483
      %v2081 = vsel %vm2065, %v2048, %v1485
      %v2082 = vsel %vm2065, %v2049, %v1487
      %v2083 = vsel %vm2065, %v2050, %v1489
      %v2084 = vsel %vm2065, %v2051, %v1491
      %v2085 = vsel %vm2065, %v2052, %v1493
      %v2086 = vsel %vm2065, %v2053, %v1495
      %v2087 = vsel %vm2065, %v2054, %v1497
      %v2088 = vsel %vm2065, %v2055, %v1499
      %v2089 = vsel %vm2065, %v2056, %v1501
      %v2090 = vsel %vm2065, %v2057, %v1503
      %v2091 = vsel %vm2065, %v2058, %v1505
      %v2092 = vsel %vm2065, %v2059, %v1507
      %v2093 = vsel %vm2065, %v2060, %v1509
      %v2094 = vsel %vm2065, %v2061, %v1511
      %v2095 = vsel %vm2065, %v2062, %v1513
      %v2096 = vsel %vm2065, %v2063, %v1515
      %v2097 = vsel %vm2065, %v2064, %v1517
      %vm2098 = vcmask 392192
      %v2099 = vsel %vm2098, %v2066, %v1583
      %v2100 = vsel %vm2098, %v2067, %v1585
      %v2101 = vsel %vm2098, %v2068, %v1587
      %v2102 = vsel %vm2098, %v2069, %v1589
      %v2103 = vsel %vm2098, %v2070, %v1591
      %v2104 = vsel %vm2098, %v2071, %v1593
      %v2105 = vsel %vm2098, %v2072, %v1595
      %v2106 = vsel %vm2098, %v2073, %v1597
      %v2107 = vsel %vm2098, %v2074, %v1599
      %v2108 = vsel %vm2098, %v2075, %v1601
      %v2109 = vsel %vm2098, %v2076, %v1603
      %v2110 = vsel %vm2098, %v2077, %v1605
      %v2111 = vsel %vm2098, %v2078, %v1607
      %v2112 = vsel %vm2098, %v2079, %v1609
      %v2113 = vsel %vm2098, %v2080, %v1611
      %v2114 = vsel %vm2098, %v2081, %v1613
      %v2115 = vsel %vm2098, %v2082, %v1615
      %v2116 = vsel %vm2098, %v2083, %v1617
      %v2117 = vsel %vm2098, %v2084, %v1619
      %v2118 = vsel %vm2098, %v2085, %v1621
      %v2119 = vsel %vm2098, %v2086, %v1623
      %v2120 = vsel %vm2098, %v2087, %v1625
      %v2121 = vsel %vm2098, %v2088, %v1627
      %v2122 = vsel %vm2098, %v2089, %v1629
      %v2123 = vsel %vm2098, %v2090, %v1631
      %v2124 = vsel %vm2098, %v2091, %v1633
      %v2125 = vsel %vm2098, %v2092, %v1635
      %v2126 = vsel %vm2098, %v2093, %v1637
      %v2127 = vsel %vm2098, %v2094, %v1639
      %v2128 = vsel %vm2098, %v2095, %v1641
      %v2129 = vsel %vm2098, %v2096, %v1643
      %v2130 = vsel %vm2098, %v2097, %v1645
      %vm2131 = vcmask 457728
      %v2132 = vsel %vm2131, %v2099, %v1711
      %v2133 = vsel %vm2131, %v2100, %v1713
      %v2134 = vsel %vm2131, %v2101, %v1715
      %v2135 = vsel %vm2131, %v2102, %v1717
      %v2136 = vsel %vm2131, %v2103, %v1719
      %v2137 = vsel %vm2131, %v2104, %v1721
      %v2138 = vsel %vm2131, %v2105, %v1723
      %v2139 = vsel %vm2131, %v2106, %v1725
      %v2140 = vsel %vm2131, %v2107, %v1727
      %v2141 = vsel %vm2131, %v2108, %v1729
      %v2142 = vsel %vm2131, %v2109, %v1731
      %v2143 = vsel %vm2131, %v2110, %v1733
      %v2144 = vsel %vm2131, %v2111, %v1735
      %v2145 = vsel %vm2131, %v2112, %v1737
      %v2146 = vsel %vm2131, %v2113, %v1739
      %v2147 = vsel %vm2131, %v2114, %v1741
      %v2148 = vsel %vm2131, %v2115, %v1743
      %v2149 = vsel %vm2131, %v2116, %v1745
      %v2150 = vsel %vm2131, %v2117, %v1747
      %v2151 = vsel %vm2131, %v2118, %v1749
      %v2152 = vsel %vm2131, %v2119, %v1751
      %v2153 = vsel %vm2131, %v2120, %v1753
      %v2154 = vsel %vm2131, %v2121, %v1755
      %v2155 = vsel %vm2131, %v2122, %v1757
      %v2156 = vsel %vm2131, %v2123, %v1759
      %v2157 = vsel %vm2131, %v2124, %v1761
      %v2158 = vsel %vm2131, %v2125, %v1763
      %v2159 = vsel %vm2131, %v2126, %v1765
      %v2160 = vsel %vm2131, %v2127, %v1767
      %v2161 = vsel %vm2131, %v2128, %v1769
      %v2162 = vsel %vm2131, %v2129, %v1771
      %v2163 = vsel %vm2131, %v2130, %v1773
      %vm2164 = vcmask 523264
      %v2165 = vsel %vm2164, %v2132, %v1839
      %v2166 = vsel %vm2164, %v2133, %v1841
      %v2167 = vsel %vm2164, %v2134, %v1843
      %v2168 = vsel %vm2164, %v2135, %v1845
      %v2169 = vsel %vm2164, %v2136, %v1847
      %v2170 = vsel %vm2164, %v2137, %v1849
      %v2171 = vsel %vm2164, %v2138, %v1851
      %v2172 = vsel %vm2164, %v2139, %v1853
      %v2173 = vsel %vm2164, %v2140, %v1855
      %v2174 = vsel %vm2164, %v2141, %v1857
      %v2175 = vsel %vm2164, %v2142, %v1859
      %v2176 = vsel %vm2164, %v2143, %v1861
      %v2177 = vsel %vm2164, %v2144, %v1863
      %v2178 = vsel %vm2164, %v2145, %v1865
      %v2179 = vsel %vm2164, %v2146, %v1867
      %v2180 = vsel %vm2164, %v2147, %v1869
      %v2181 = vsel %vm2164, %v2148, %v1871
      %v2182 = vsel %vm2164, %v2149, %v1873
      %v2183 = vsel %vm2164, %v2150, %v1875
      %v2184 = vsel %vm2164, %v2151, %v1877
      %v2185 = vsel %vm2164, %v2152, %v1879
      %v2186 = vsel %vm2164, %v2153, %v1881
      %v2187 = vsel %vm2164, %v2154, %v1883
      %v2188 = vsel %vm2164, %v2155, %v1885
      %v2189 = vsel %vm2164, %v2156, %v1887
      %v2190 = vsel %vm2164, %v2157, %v1889
      %v2191 = vsel %vm2164, %v2158, %v1891
      %v2192 = vsel %vm2164, %v2159, %v1893
      %v2193 = vsel %vm2164, %v2160, %v1895
      %v2194 = vsel %vm2164, %v2161, %v1897
      %v2195 = vsel %vm2164, %v2162, %v1899
      %v2196 = vsel %vm2164, %v2163, %v1901
      %v2197 = vld [vmem:[%s2] sm:$0xff]
      %v2198 = vld [vmem:[%s2 + $0x8] sm:$0xff]
      %v2199 = vld [vmem:[%s2 + $0x10] sm:$0xff]
      %v2200 = vld [vmem:[%s2 + $0x18] sm:$0xff]
      %v2201 = vld [vmem:[%s2 + $0x20] sm:$0xff]
      %v2202 = vld [vmem:[%s2 + $0x28] sm:$0xff]
      %v2203 = vld [vmem:[%s2 + $0x30] sm:$0xff]
      %v2204 = vld [vmem:[%s2 + $0x38] sm:$0xff]
      %v2205 = vld [vmem:[%s2 + $0x40] sm:$0xff]
      %vm2206 = vcmask 588800
      %v2208 = vsel %vm2206, %v2165, 0
      %v2211 = vsel %vm2206, %v2166, 0
      %v2214 = vsel %vm2206, %v2167, 0
      %v2217 = vsel %vm2206, %v2168, 0
      %v2220 = vsel %vm2206, %v2169, 0
      %v2223 = vsel %vm2206, %v2170, 0
      %v2226 = vsel %vm2206, %v2171, 0
      %v2229 = vsel %vm2206, %v2172, 0
      %v2232 = vsel %vm2206, %v2173, 0
      %v2235 = vsel %vm2206, %v2174, 0
      %v2238 = vsel %vm2206, %v2175, 0
      %v2241 = vsel %vm2206, %v2176, 0
      %v2244 = vsel %vm2206, %v2177, 0
      %v2247 = vsel %vm2206, %v2178, 0
      %v2250 = vsel %vm2206, %v2179, 0
      %v2253 = vsel %vm2206, %v2180, 0
      %v2256 = vsel %vm2206, %v2181, 0
      %v2259 = vsel %vm2206, %v2182, 0
      %v2262 = vsel %vm2206, %v2183, 0
      %v2265 = vsel %vm2206, %v2184, 0
      %v2268 = vsel %vm2206, %v2185, 0
      %v2271 = vsel %vm2206, %v2186, 0
      %v2274 = vsel %vm2206, %v2187, 0
      %v2277 = vsel %vm2206, %v2188, 0
      %v2280 = vsel %vm2206, %v2189, 0
      %v2283 = vsel %vm2206, %v2190, 0
      %v2286 = vsel %vm2206, %v2191, 0
      %v2289 = vsel %vm2206, %v2192, 0
      %v2292 = vsel %vm2206, %v2193, 0
      %v2295 = vsel %vm2206, %v2194, 0
      %v2298 = vsel %vm2206, %v2195, 0
      %v2301 = vsel %vm2206, %v2196, 0
      %2303 = vmatpush.msra.mxu0 0.0
      %2304 = vmatpush.msra.mxu0 0.0
      %2305 = vmatpush.msra.mxu0 0.0
      %2306 = vmatpush.msra.mxu0 0.0
      %2307 = vmatpush.msra.mxu0 0.0
      %2308 = vmatpush.msra.mxu0 0.0
      %2309 = vmatpush.msra.mxu0 0.0
      %2310 = vmatpush.msra.mxu0 %v2205
      %2311 = vmatpush.msra.mxu0 %v2204
      %2312 = vmatpush.msra.mxu0 %v2203
      %2313 = vmatpush.msra.mxu0 %v2202
      %2314 = vmatpush.msra.mxu0 %v2201
      %2315 = vmatpush.msra.mxu0 %v2200
      %2316 = vmatpush.msra.mxu0 %v2199
      %2317 = vmatpush.msra.mxu0 %v2198
      %2318 = vmatpush.msra.mxu0 %v2197
      %2319 = vmatmul.f32.gmra.mxu0 %v2208
      %v2320 = vpop.f32.mrf.mxu0
      %v2321 = vadd.f32 0.0, %v2320
      %2322 = vmatmul.f32.gmra.mxu0 %v2211
      %v2323 = vpop.f32.mrf.mxu0
      %v2324 = vadd.f32 0.0, %v2323
      %2325 = vmatmul.f32.gmra.mxu0 %v2214
      %v2326 = vpop.f32.mrf.mxu0
      %v2327 = vadd.f32 0.0, %v2326
      %2328 = vmatmul.f32.gmra.mxu0 %v2217
      %v2329 = vpop.f32.mrf.mxu0
      %v2330 = vadd.f32 0.0, %v2329
      %2331 = vmatmul.f32.gmra.mxu0 %v2220
      %v2332 = vpop.f32.mrf.mxu0
      %v2333 = vadd.f32 0.0, %v2332
      %2334 = vmatmul.f32.gmra.mxu0 %v2223
      %v2335 = vpop.f32.mrf.mxu0
      %v2336 = vadd.f32 0.0, %v2335
      %2337 = vmatmul.f32.gmra.mxu0 %v2226
      %v2338 = vpop.f32.mrf.mxu0
      %v2339 = vadd.f32 0.0, %v2338
      %2340 = vmatmul.f32.gmra.mxu0 %v2229
      %v2341 = vpop.f32.mrf.mxu0
      %v2342 = vadd.f32 0.0, %v2341
      %2343 = vmatmul.f32.gmra.mxu0 %v2232
      %v2344 = vpop.f32.mrf.mxu0
      %v2345 = vadd.f32 0.0, %v2344
      %2346 = vmatmul.f32.gmra.mxu0 %v2235
      %v2347 = vpop.f32.mrf.mxu0
      %v2348 = vadd.f32 0.0, %v2347
      %2349 = vmatmul.f32.gmra.mxu0 %v2238
      %v2350 = vpop.f32.mrf.mxu0
      %v2351 = vadd.f32 0.0, %v2350
      %2352 = vmatmul.f32.gmra.mxu0 %v2241
      %v2353 = vpop.f32.mrf.mxu0
      %v2354 = vadd.f32 0.0, %v2353
      %2355 = vmatmul.f32.gmra.mxu0 %v2244
      %v2356 = vpop.f32.mrf.mxu0
      %v2357 = vadd.f32 0.0, %v2356
      %2358 = vmatmul.f32.gmra.mxu0 %v2247
      %v2359 = vpop.f32.mrf.mxu0
      %v2360 = vadd.f32 0.0, %v2359
      %2361 = vmatmul.f32.gmra.mxu0 %v2250
      %v2362 = vpop.f32.mrf.mxu0
      %v2363 = vadd.f32 0.0, %v2362
      %2364 = vmatmul.f32.gmra.mxu0 %v2253
      %v2365 = vpop.f32.mrf.mxu0
      %v2366 = vadd.f32 0.0, %v2365
      %2367 = vmatmul.f32.gmra.mxu0 %v2256
      %v2368 = vpop.f32.mrf.mxu0
      %v2369 = vadd.f32 0.0, %v2368
      %2370 = vmatmul.f32.gmra.mxu0 %v2259
      %v2371 = vpop.f32.mrf.mxu0
      %v2372 = vadd.f32 0.0, %v2371
      %2373 = vmatmul.f32.gmra.mxu0 %v2262
      %v2374 = vpop.f32.mrf.mxu0
      %v2375 = vadd.f32 0.0, %v2374
      %2376 = vmatmul.f32.gmra.mxu0 %v2265
      %v2377 = vpop.f32.mrf.mxu0
      %v2378 = vadd.f32 0.0, %v2377
      %2379 = vmatmul.f32.gmra.mxu0 %v2268
      %v2380 = vpop.f32.mrf.mxu0
      %v2381 = vadd.f32 0.0, %v2380
      %2382 = vmatmul.f32.gmra.mxu0 %v2271
      %v2383 = vpop.f32.mrf.mxu0
      %v2384 = vadd.f32 0.0, %v2383
      %2385 = vmatmul.f32.gmra.mxu0 %v2274
      %v2386 = vpop.f32.mrf.mxu0
      %v2387 = vadd.f32 0.0, %v2386
      %2388 = vmatmul.f32.gmra.mxu0 %v2277
      %v2389 = vpop.f32.mrf.mxu0
      %v2390 = vadd.f32 0.0, %v2389
      %2391 = vmatmul.f32.gmra.mxu0 %v2280
      %v2392 = vpop.f32.mrf.mxu0
      %v2393 = vadd.f32 0.0, %v2392
      %2394 = vmatmul.f32.gmra.mxu0 %v2283
      %v2395 = vpop.f32.mrf.mxu0
      %v2396 = vadd.f32 0.0, %v2395
      %2397 = vmatmul.f32.gmra.mxu0 %v2286
      %v2398 = vpop.f32.mrf.mxu0
      %v2399 = vadd.f32 0.0, %v2398
      %2400 = vmatmul.f32.gmra.mxu0 %v2289
      %v2401 = vpop.f32.mrf.mxu0
      %v2402 = vadd.f32 0.0, %v2401
      %2403 = vmatmul.f32.gmra.mxu0 %v2292
      %v2404 = vpop.f32.mrf.mxu0
      %v2405 = vadd.f32 0.0, %v2404
      %2406 = vmatmul.f32.gmra.mxu0 %v2295
      %v2407 = vpop.f32.mrf.mxu0
      %v2408 = vadd.f32 0.0, %v2407
      %2409 = vmatmul.f32.gmra.mxu0 %v2298
      %v2410 = vpop.f32.mrf.mxu0
      %v2411 = vadd.f32 0.0, %v2410
      %2412 = vmatmul.f32.gmra.mxu0 %v2301
      %v2413 = vpop.f32.mrf.mxu0
      %v2414 = vadd.f32 0.0, %v2413
      %2415 = vdwg.mxu0
      %v2416 = vmax.f32 %v2321, 0.0
      %v2417 = vmax.f32 %v2324, 0.0
      %v2418 = vmax.f32 %v2327, 0.0
      %v2419 = vmax.f32 %v2330, 0.0
      %v2420 = vmax.f32 %v2333, 0.0
      %v2421 = vmax.f32 %v2336, 0.0
      %v2422 = vmax.f32 %v2339, 0.0
      %v2423 = vmax.f32 %v2342, 0.0
      %v2424 = vmax.f32 %v2345, 0.0
      %v2425 = vmax.f32 %v2348, 0.0
      %v2426 = vmax.f32 %v2351, 0.0
      %v2427 = vmax.f32 %v2354, 0.0
      %v2428 = vmax.f32 %v2357, 0.0
      %v2429 = vmax.f32 %v2360, 0.0
      %v2430 = vmax.f32 %v2363, 0.0
      %v2431 = vmax.f32 %v2366, 0.0
      %v2432 = vmax.f32 %v2369, 0.0
      %v2433 = vmax.f32 %v2372, 0.0
      %v2434 = vmax.f32 %v2375, 0.0
      %v2435 = vmax.f32 %v2378, 0.0
      %v2436 = vmax.f32 %v2381, 0.0
      %v2437 = vmax.f32 %v2384, 0.0
      %v2438 = vmax.f32 %v2387, 0.0
      %v2439 = vmax.f32 %v2390, 0.0
      %v2440 = vmax.f32 %v2393, 0.0
      %v2441 = vmax.f32 %v2396, 0.0
      %v2442 = vmax.f32 %v2399, 0.0
      %v2443 = vmax.f32 %v2402, 0.0
      %v2444 = vmax.f32 %v2405, 0.0
      %v2445 = vmax.f32 %v2408, 0.0
      %v2446 = vmax.f32 %v2411, 0.0
      %v2447 = vmax.f32 %v2414, 0.0
      %s2448 = scalar_lea.vmem [#allocation3], 32
      %2449 = vst.msk [vmem:[%s2448 + $0x8] sm:$0xff] %vm218, %v2416
      %2450 = vst.msk [vmem:[%s2448 + $0x10] sm:$0xff] %vm218, %v2417
      %2451 = vst.msk [vmem:[%s2448 + $0x28] sm:$0xff] %vm218, %v2418
      %2452 = vst.msk [vmem:[%s2448 + $0x30] sm:$0xff] %vm218, %v2419
      %2453 = vst.msk [vmem:[%s2448 + $0x48] sm:$0xff] %vm218, %v2420
      %2454 = vst.msk [vmem:[%s2448 + $0x50] sm:$0xff] %vm218, %v2421
      %2455 = vst.msk [vmem:[%s2448 + $0x68] sm:$0xff] %vm218, %v2422
      %2456 = vst.msk [vmem:[%s2448 + $0x70] sm:$0xff] %vm218, %v2423
      %2457 = vst.msk [vmem:[%s2448 + $0x88] sm:$0xff] %vm218, %v2424
      %2458 = vst.msk [vmem:[%s2448 + $0x90] sm:$0xff] %vm218, %v2425
      %2459 = vst.msk [vmem:[%s2448 + $0xa8] sm:$0xff] %vm218, %v2426
      %2460 = vst.msk [vmem:[%s2448 + $0xb0] sm:$0xff] %vm218, %v2427
      %2461 = vst.msk [vmem:[%s2448 + $0xc8] sm:$0xff] %vm218, %v2428
      %2462 = vst.msk [vmem:[%s2448 + $0xd0] sm:$0xff] %vm218, %v2429
      %2463 = vst.msk [vmem:[%s2448 + $0xe8] sm:$0xff] %vm218, %v2430
      %2464 = vst.msk [vmem:[%s2448 + $0xf0] sm:$0xff] %vm218, %v2431
      %2465 = vst.msk [vmem:[%s2448 + $0x108] sm:$0xff] %vm218, %v2432
      %2466 = vst.msk [vmem:[%s2448 + $0x110] sm:$0xff] %vm218, %v2433
      %2467 = vst.msk [vmem:[%s2448 + $0x128] sm:$0xff] %vm218, %v2434
      %2468 = vst.msk [vmem:[%s2448 + $0x130] sm:$0xff] %vm218, %v2435
      %2469 = vst.msk [vmem:[%s2448 + $0x148] sm:$0xff] %vm218, %v2436
      %2470 = vst.msk [vmem:[%s2448 + $0x150] sm:$0xff] %vm218, %v2437
      %2471 = vst.msk [vmem:[%s2448 + $0x168] sm:$0xff] %vm218, %v2438
      %2472 = vst.msk [vmem:[%s2448 + $0x170] sm:$0xff] %vm218, %v2439
      %2473 = vst.msk [vmem:[%s2448 + $0x188] sm:$0xff] %vm218, %v2440
      %2474 = vst.msk [vmem:[%s2448 + $0x190] sm:$0xff] %vm218, %v2441
      %2475 = vst.msk [vmem:[%s2448 + $0x1a8] sm:$0xff] %vm218, %v2442
      %2476 = vst.msk [vmem:[%s2448 + $0x1b0] sm:$0xff] %vm218, %v2443
      %2477 = vst.msk [vmem:[%s2448 + $0x1c8] sm:$0xff] %vm218, %v2444
      %2478 = vst.msk [vmem:[%s2448 + $0x1d0] sm:$0xff] %vm218, %v2445
      %2479 = vst.msk [vmem:[%s2448 + $0x1e8] sm:$0xff] %vm218, %v2446
      %2480 = vst.msk [vmem:[%s2448 + $0x1f0] sm:$0xff] %vm218, %v2447
      %v2481 = vld [vmem:[#allocation3 + $0x7] sm:$0xff]
      %v2482 = vld [vmem:[#allocation3 + $0xf] sm:$0xff]
      %v2483 = vld [vmem:[#allocation3 + $0x27] sm:$0xff]
      %v2484 = vld [vmem:[#allocation3 + $0x2f] sm:$0xff]
      %v2485 = vld [vmem:[#allocation3 + $0x47] sm:$0xff]
      %v2486 = vld [vmem:[#allocation3 + $0x4f] sm:$0xff]
      %v2487 = vld [vmem:[#allocation3 + $0x67] sm:$0xff]
      %v2488 = vld [vmem:[#allocation3 + $0x6f] sm:$0xff]
      %v2489 = vld [vmem:[#allocation3 + $0x87] sm:$0xff]
      %v2490 = vld [vmem:[#allocation3 + $0x8f] sm:$0xff]
      %v2491 = vld [vmem:[#allocation3 + $0xa7] sm:$0xff]
      %v2492 = vld [vmem:[#allocation3 + $0xaf] sm:$0xff]
      %v2493 = vld [vmem:[#allocation3 + $0xc7] sm:$0xff]
      %v2494 = vld [vmem:[#allocation3 + $0xcf] sm:$0xff]
      %v2495 = vld [vmem:[#allocation3 + $0xe7] sm:$0xff]
      %v2496 = vld [vmem:[#allocation3 + $0xef] sm:$0xff]
      %v2497 = vld [vmem:[#allocation3 + $0x107] sm:$0xff]
      %v2498 = vld [vmem:[#allocation3 + $0x10f] sm:$0xff]
      %v2499 = vld [vmem:[#allocation3 + $0x127] sm:$0xff]
      %v2500 = vld [vmem:[#allocation3 + $0x12f] sm:$0xff]
      %v2501 = vld [vmem:[#allocation3 + $0x147] sm:$0xff]
      %v2502 = vld [vmem:[#allocation3 + $0x14f] sm:$0xff]
      %v2503 = vld [vmem:[#allocation3 + $0x167] sm:$0xff]
      %v2504 = vld [vmem:[#allocation3 + $0x16f] sm:$0xff]
      %v2505 = vld [vmem:[#allocation3 + $0x187] sm:$0xff]
      %v2506 = vld [vmem:[#allocation3 + $0x18f] sm:$0xff]
      %v2507 = vld [vmem:[#allocation3 + $0x1a7] sm:$0xff]
      %v2508 = vld [vmem:[#allocation3 + $0x1af] sm:$0xff]
      %v2509 = vld [vmem:[#allocation3 + $0x1c7] sm:$0xff]
      %v2510 = vld [vmem:[#allocation3 + $0x1cf] sm:$0xff]
      %v2511 = vld [vmem:[#allocation3 + $0x1e7] sm:$0xff]
      %v2512 = vld [vmem:[#allocation3 + $0x1ef] sm:$0xff]
      %v2513 = vld [vmem:[#allocation3 + $0x8] sm:$0xff]
      %v2514 = vld [vmem:[#allocation3 + $0x10] sm:$0xff]
      %v2515 = vld [vmem:[#allocation3 + $0x28] sm:$0xff]
      %v2516 = vld [vmem:[#allocation3 + $0x30] sm:$0xff]
      %v2517 = vld [vmem:[#allocation3 + $0x48] sm:$0xff]
      %v2518 = vld [vmem:[#allocation3 + $0x50] sm:$0xff]
      %v2519 = vld [vmem:[#allocation3 + $0x68] sm:$0xff]
      %v2520 = vld [vmem:[#allocation3 + $0x70] sm:$0xff]
      %v2521 = vld [vmem:[#allocation3 + $0x88] sm:$0xff]
      %v2522 = vld [vmem:[#allocation3 + $0x90] sm:$0xff]
      %v2523 = vld [vmem:[#allocation3 + $0xa8] sm:$0xff]
      %v2524 = vld [vmem:[#allocation3 + $0xb0] sm:$0xff]
      %v2525 = vld [vmem:[#allocation3 + $0xc8] sm:$0xff]
      %v2526 = vld [vmem:[#allocation3 + $0xd0] sm:$0xff]
      %v2527 = vld [vmem:[#allocation3 + $0xe8] sm:$0xff]
      %v2528 = vld [vmem:[#allocation3 + $0xf0] sm:$0xff]
      %v2529 = vld [vmem:[#allocation3 + $0x108] sm:$0xff]
      %v2530 = vld [vmem:[#allocation3 + $0x110] sm:$0xff]
      %v2531 = vld [vmem:[#allocation3 + $0x128] sm:$0xff]
      %v2532 = vld [vmem:[#allocation3 + $0x130] sm:$0xff]
      %v2533 = vld [vmem:[#allocation3 + $0x148] sm:$0xff]
      %v2534 = vld [vmem:[#allocation3 + $0x150] sm:$0xff]
      %v2535 = vld [vmem:[#allocation3 + $0x168] sm:$0xff]
      %v2536 = vld [vmem:[#allocation3 + $0x170] sm:$0xff]
      %v2537 = vld [vmem:[#allocation3 + $0x188] sm:$0xff]
      %v2538 = vld [vmem:[#allocation3 + $0x190] sm:$0xff]
      %v2539 = vld [vmem:[#allocation3 + $0x1a8] sm:$0xff]
      %v2540 = vld [vmem:[#allocation3 + $0x1b0] sm:$0xff]
      %v2541 = vld [vmem:[#allocation3 + $0x1c8] sm:$0xff]
      %v2542 = vld [vmem:[#allocation3 + $0x1d0] sm:$0xff]
      %v2543 = vld [vmem:[#allocation3 + $0x1e8] sm:$0xff]
      %v2544 = vld [vmem:[#allocation3 + $0x1f0] sm:$0xff]
      %v2545 = vld [vmem:[#allocation3 + $0x9] sm:$0xff]
      %v2546 = vld [vmem:[#allocation3 + $0x11] sm:$0xff]
      %v2547 = vld [vmem:[#allocation3 + $0x29] sm:$0xff]
      %v2548 = vld [vmem:[#allocation3 + $0x31] sm:$0xff]
      %v2549 = vld [vmem:[#allocation3 + $0x49] sm:$0xff]
      %v2550 = vld [vmem:[#allocation3 + $0x51] sm:$0xff]
      %v2551 = vld [vmem:[#allocation3 + $0x69] sm:$0xff]
      %v2552 = vld [vmem:[#allocation3 + $0x71] sm:$0xff]
      %v2553 = vld [vmem:[#allocation3 + $0x89] sm:$0xff]
      %v2554 = vld [vmem:[#allocation3 + $0x91] sm:$0xff]
      %v2555 = vld [vmem:[#allocation3 + $0xa9] sm:$0xff]
      %v2556 = vld [vmem:[#allocation3 + $0xb1] sm:$0xff]
      %v2557 = vld [vmem:[#allocation3 + $0xc9] sm:$0xff]
      %v2558 = vld [vmem:[#allocation3 + $0xd1] sm:$0xff]
      %v2559 = vld [vmem:[#allocation3 + $0xe9] sm:$0xff]
      %v2560 = vld [vmem:[#allocation3 + $0xf1] sm:$0xff]
      %v2561 = vld [vmem:[#allocation3 + $0x109] sm:$0xff]
      %v2562 = vld [vmem:[#allocation3 + $0x111] sm:$0xff]
      %v2563 = vld [vmem:[#allocation3 + $0x129] sm:$0xff]
      %v2564 = vld [vmem:[#allocation3 + $0x131] sm:$0xff]
      %v2565 = vld [vmem:[#allocation3 + $0x149] sm:$0xff]
      %v2566 = vld [vmem:[#allocation3 + $0x151] sm:$0xff]
      %v2567 = vld [vmem:[#allocation3 + $0x169] sm:$0xff]
      %v2568 = vld [vmem:[#allocation3 + $0x171] sm:$0xff]
      %v2569 = vld [vmem:[#allocation3 + $0x189] sm:$0xff]
      %v2570 = vld [vmem:[#allocation3 + $0x191] sm:$0xff]
      %v2571 = vld [vmem:[#allocation3 + $0x1a9] sm:$0xff]
      %v2572 = vld [vmem:[#allocation3 + $0x1b1] sm:$0xff]
      %v2573 = vld [vmem:[#allocation3 + $0x1c9] sm:$0xff]
      %v2574 = vld [vmem:[#allocation3 + $0x1d1] sm:$0xff]
      %v2575 = vld [vmem:[#allocation3 + $0x1e9] sm:$0xff]
      %v2576 = vld [vmem:[#allocation3 + $0x1f1] sm:$0xff]
      %v2577 = vld [vmem:[%s2448 + $0x7] sm:$0xff]
      %v2578 = vld [vmem:[%s2448 + $0xf] sm:$0xff]
      %v2579 = vld [vmem:[%s2448 + $0x27] sm:$0xff]
      %v2580 = vld [vmem:[%s2448 + $0x2f] sm:$0xff]
      %v2581 = vld [vmem:[%s2448 + $0x47] sm:$0xff]
      %v2582 = vld [vmem:[%s2448 + $0x4f] sm:$0xff]
      %v2583 = vld [vmem:[%s2448 + $0x67] sm:$0xff]
      %v2584 = vld [vmem:[%s2448 + $0x6f] sm:$0xff]
      %v2585 = vld [vmem:[%s2448 + $0x87] sm:$0xff]
      %v2586 = vld [vmem:[%s2448 + $0x8f] sm:$0xff]
      %v2587 = vld [vmem:[%s2448 + $0xa7] sm:$0xff]
      %v2588 = vld [vmem:[%s2448 + $0xaf] sm:$0xff]
      %v2589 = vld [vmem:[%s2448 + $0xc7] sm:$0xff]
      %v2590 = vld [vmem:[%s2448 + $0xcf] sm:$0xff]
      %v2591 = vld [vmem:[%s2448 + $0xe7] sm:$0xff]
      %v2592 = vld [vmem:[%s2448 + $0xef] sm:$0xff]
      %v2593 = vld [vmem:[%s2448 + $0x107] sm:$0xff]
      %v2594 = vld [vmem:[%s2448 + $0x10f] sm:$0xff]
      %v2595 = vld [vmem:[%s2448 + $0x127] sm:$0xff]
      %v2596 = vld [vmem:[%s2448 + $0x12f] sm:$0xff]
      %v2597 = vld [vmem:[%s2448 + $0x147] sm:$0xff]
      %v2598 = vld [vmem:[%s2448 + $0x14f] sm:$0xff]
      %v2599 = vld [vmem:[%s2448 + $0x167] sm:$0xff]
      %v2600 = vld [vmem:[%s2448 + $0x16f] sm:$0xff]
      %v2601 = vld [vmem:[%s2448 + $0x187] sm:$0xff]
      %v2602 = vld [vmem:[%s2448 + $0x18f] sm:$0xff]
      %v2603 = vld [vmem:[%s2448 + $0x1a7] sm:$0xff]
      %v2604 = vld [vmem:[%s2448 + $0x1af] sm:$0xff]
      %v2605 = vld [vmem:[%s2448 + $0x1c7] sm:$0xff]
      %v2606 = vld [vmem:[%s2448 + $0x1cf] sm:$0xff]
      %v2607 = vld [vmem:[%s2448 + $0x1e7] sm:$0xff]
      %v2608 = vld [vmem:[%s2448 + $0x1ef] sm:$0xff]
      %v2609 = vld [vmem:[%s2448 + $0x8] sm:$0xff]
      %v2610 = vld [vmem:[%s2448 + $0x10] sm:$0xff]
      %v2611 = vld [vmem:[%s2448 + $0x28] sm:$0xff]
      %v2612 = vld [vmem:[%s2448 + $0x30] sm:$0xff]
      %v2613 = vld [vmem:[%s2448 + $0x48] sm:$0xff]
      %v2614 = vld [vmem:[%s2448 + $0x50] sm:$0xff]
      %v2615 = vld [vmem:[%s2448 + $0x68] sm:$0xff]
      %v2616 = vld [vmem:[%s2448 + $0x70] sm:$0xff]
      %v2617 = vld [vmem:[%s2448 + $0x88] sm:$0xff]
      %v2618 = vld [vmem:[%s2448 + $0x90] sm:$0xff]
      %v2619 = vld [vmem:[%s2448 + $0xa8] sm:$0xff]
      %v2620 = vld [vmem:[%s2448 + $0xb0] sm:$0xff]
      %v2621 = vld [vmem:[%s2448 + $0xc8] sm:$0xff]
      %v2622 = vld [vmem:[%s2448 + $0xd0] sm:$0xff]
      %v2623 = vld [vmem:[%s2448 + $0xe8] sm:$0xff]
      %v2624 = vld [vmem:[%s2448 + $0xf0] sm:$0xff]
      %v2625 = vld [vmem:[%s2448 + $0x108] sm:$0xff]
      %v2626 = vld [vmem:[%s2448 + $0x110] sm:$0xff]
      %v2627 = vld [vmem:[%s2448 + $0x128] sm:$0xff]
      %v2628 = vld [vmem:[%s2448 + $0x130] sm:$0xff]
      %v2629 = vld [vmem:[%s2448 + $0x148] sm:$0xff]
      %v2630 = vld [vmem:[%s2448 + $0x150] sm:$0xff]
      %v2631 = vld [vmem:[%s2448 + $0x168] sm:$0xff]
      %v2632 = vld [vmem:[%s2448 + $0x170] sm:$0xff]
      %v2633 = vld [vmem:[%s2448 + $0x188] sm:$0xff]
      %v2634 = vld [vmem:[%s2448 + $0x190] sm:$0xff]
      %v2635 = vld [vmem:[%s2448 + $0x1a8] sm:$0xff]
      %v2636 = vld [vmem:[%s2448 + $0x1b0] sm:$0xff]
      %v2637 = vld [vmem:[%s2448 + $0x1c8] sm:$0xff]
      %v2638 = vld [vmem:[%s2448 + $0x1d0] sm:$0xff]
      %v2639 = vld [vmem:[%s2448 + $0x1e8] sm:$0xff]
      %v2640 = vld [vmem:[%s2448 + $0x1f0] sm:$0xff]
      %v2641 = vld [vmem:[%s2448 + $0x9] sm:$0xff]
      %v2642 = vld [vmem:[%s2448 + $0x11] sm:$0xff]
      %v2643 = vld [vmem:[%s2448 + $0x29] sm:$0xff]
      %v2644 = vld [vmem:[%s2448 + $0x31] sm:$0xff]
      %v2645 = vld [vmem:[%s2448 + $0x49] sm:$0xff]
      %v2646 = vld [vmem:[%s2448 + $0x51] sm:$0xff]
      %v2647 = vld [vmem:[%s2448 + $0x69] sm:$0xff]
      %v2648 = vld [vmem:[%s2448 + $0x71] sm:$0xff]
      %v2649 = vld [vmem:[%s2448 + $0x89] sm:$0xff]
      %v2650 = vld [vmem:[%s2448 + $0x91] sm:$0xff]
      %v2651 = vld [vmem:[%s2448 + $0xa9] sm:$0xff]
      %v2652 = vld [vmem:[%s2448 + $0xb1] sm:$0xff]
      %v2653 = vld [vmem:[%s2448 + $0xc9] sm:$0xff]
      %v2654 = vld [vmem:[%s2448 + $0xd1] sm:$0xff]
      %v2655 = vld [vmem:[%s2448 + $0xe9] sm:$0xff]
      %v2656 = vld [vmem:[%s2448 + $0xf1] sm:$0xff]
      %v2657 = vld [vmem:[%s2448 + $0x109] sm:$0xff]
      %v2658 = vld [vmem:[%s2448 + $0x111] sm:$0xff]
      %v2659 = vld [vmem:[%s2448 + $0x129] sm:$0xff]
      %v2660 = vld [vmem:[%s2448 + $0x131] sm:$0xff]
      %v2661 = vld [vmem:[%s2448 + $0x149] sm:$0xff]
      %v2662 = vld [vmem:[%s2448 + $0x151] sm:$0xff]
      %v2663 = vld [vmem:[%s2448 + $0x169] sm:$0xff]
      %v2664 = vld [vmem:[%s2448 + $0x171] sm:$0xff]
      %v2665 = vld [vmem:[%s2448 + $0x189] sm:$0xff]
      %v2666 = vld [vmem:[%s2448 + $0x191] sm:$0xff]
      %v2667 = vld [vmem:[%s2448 + $0x1a9] sm:$0xff]
      %v2668 = vld [vmem:[%s2448 + $0x1b1] sm:$0xff]
      %v2669 = vld [vmem:[%s2448 + $0x1c9] sm:$0xff]
      %v2670 = vld [vmem:[%s2448 + $0x1d1] sm:$0xff]
      %v2671 = vld [vmem:[%s2448 + $0x1e9] sm:$0xff]
      %v2672 = vld [vmem:[%s2448 + $0x1f1] sm:$0xff]
      %s2673 = scalar_lea.vmem [#allocation3], 64
      %v2674 = vld [vmem:[%s2673 + $0x7] sm:$0xff]
      %v2675 = vld [vmem:[%s2673 + $0xf] sm:$0xff]
      %v2676 = vld [vmem:[%s2673 + $0x27] sm:$0xff]
      %v2677 = vld [vmem:[%s2673 + $0x2f] sm:$0xff]
      %v2678 = vld [vmem:[%s2673 + $0x47] sm:$0xff]
      %v2679 = vld [vmem:[%s2673 + $0x4f] sm:$0xff]
      %v2680 = vld [vmem:[%s2673 + $0x67] sm:$0xff]
      %v2681 = vld [vmem:[%s2673 + $0x6f] sm:$0xff]
      %v2682 = vld [vmem:[%s2673 + $0x87] sm:$0xff]
      %v2683 = vld [vmem:[%s2673 + $0x8f] sm:$0xff]
      %v2684 = vld [vmem:[%s2673 + $0xa7] sm:$0xff]
      %v2685 = vld [vmem:[%s2673 + $0xaf] sm:$0xff]
      %v2686 = vld [vmem:[%s2673 + $0xc7] sm:$0xff]
      %v2687 = vld [vmem:[%s2673 + $0xcf] sm:$0xff]
      %v2688 = vld [vmem:[%s2673 + $0xe7] sm:$0xff]
      %v2689 = vld [vmem:[%s2673 + $0xef] sm:$0xff]
      %v2690 = vld [vmem:[%s2673 + $0x107] sm:$0xff]
      %v2691 = vld [vmem:[%s2673 + $0x10f] sm:$0xff]
      %v2692 = vld [vmem:[%s2673 + $0x127] sm:$0xff]
      %v2693 = vld [vmem:[%s2673 + $0x12f] sm:$0xff]
      %v2694 = vld [vmem:[%s2673 + $0x147] sm:$0xff]
      %v2695 = vld [vmem:[%s2673 + $0x14f] sm:$0xff]
      %v2696 = vld [vmem:[%s2673 + $0x167] sm:$0xff]
      %v2697 = vld [vmem:[%s2673 + $0x16f] sm:$0xff]
      %v2698 = vld [vmem:[%s2673 + $0x187] sm:$0xff]
      %v2699 = vld [vmem:[%s2673 + $0x18f] sm:$0xff]
      %v2700 = vld [vmem:[%s2673 + $0x1a7] sm:$0xff]
      %v2701 = vld [vmem:[%s2673 + $0x1af] sm:$0xff]
      %v2702 = vld [vmem:[%s2673 + $0x1c7] sm:$0xff]
      %v2703 = vld [vmem:[%s2673 + $0x1cf] sm:$0xff]
      %v2704 = vld [vmem:[%s2673 + $0x1e7] sm:$0xff]
      %v2705 = vld [vmem:[%s2673 + $0x1ef] sm:$0xff]
      %v2706 = vld [vmem:[%s2673 + $0x8] sm:$0xff]
      %v2707 = vld [vmem:[%s2673 + $0x10] sm:$0xff]
      %v2708 = vld [vmem:[%s2673 + $0x28] sm:$0xff]
      %v2709 = vld [vmem:[%s2673 + $0x30] sm:$0xff]
      %v2710 = vld [vmem:[%s2673 + $0x48] sm:$0xff]
      %v2711 = vld [vmem:[%s2673 + $0x50] sm:$0xff]
      %v2712 = vld [vmem:[%s2673 + $0x68] sm:$0xff]
      %v2713 = vld [vmem:[%s2673 + $0x70] sm:$0xff]
      %v2714 = vld [vmem:[%s2673 + $0x88] sm:$0xff]
      %v2715 = vld [vmem:[%s2673 + $0x90] sm:$0xff]
      %v2716 = vld [vmem:[%s2673 + $0xa8] sm:$0xff]
      %v2717 = vld [vmem:[%s2673 + $0xb0] sm:$0xff]
      %v2718 = vld [vmem:[%s2673 + $0xc8] sm:$0xff]
      %v2719 = vld [vmem:[%s2673 + $0xd0] sm:$0xff]
      %v2720 = vld [vmem:[%s2673 + $0xe8] sm:$0xff]
      %v2721 = vld [vmem:[%s2673 + $0xf0] sm:$0xff]
      %v2722 = vld [vmem:[%s2673 + $0x108] sm:$0xff]
      %v2723 = vld [vmem:[%s2673 + $0x110] sm:$0xff]
      %v2724 = vld [vmem:[%s2673 + $0x128] sm:$0xff]
      %v2725 = vld [vmem:[%s2673 + $0x130] sm:$0xff]
      %v2726 = vld [vmem:[%s2673 + $0x148] sm:$0xff]
      %v2727 = vld [vmem:[%s2673 + $0x150] sm:$0xff]
      %v2728 = vld [vmem:[%s2673 + $0x168] sm:$0xff]
      %v2729 = vld [vmem:[%s2673 + $0x170] sm:$0xff]
      %v2730 = vld [vmem:[%s2673 + $0x188] sm:$0xff]
      %v2731 = vld [vmem:[%s2673 + $0x190] sm:$0xff]
      %v2732 = vld [vmem:[%s2673 + $0x1a8] sm:$0xff]
      %v2733 = vld [vmem:[%s2673 + $0x1b0] sm:$0xff]
      %v2734 = vld [vmem:[%s2673 + $0x1c8] sm:$0xff]
      %v2735 = vld [vmem:[%s2673 + $0x1d0] sm:$0xff]
      %v2736 = vld [vmem:[%s2673 + $0x1e8] sm:$0xff]
      %v2737 = vld [vmem:[%s2673 + $0x1f0] sm:$0xff]
      %v2738 = vld [vmem:[%s2673 + $0x9] sm:$0xff]
      %v2739 = vld [vmem:[%s2673 + $0x11] sm:$0xff]
      %v2740 = vld [vmem:[%s2673 + $0x29] sm:$0xff]
      %v2741 = vld [vmem:[%s2673 + $0x31] sm:$0xff]
      %v2742 = vld [vmem:[%s2673 + $0x49] sm:$0xff]
      %v2743 = vld [vmem:[%s2673 + $0x51] sm:$0xff]
      %v2744 = vld [vmem:[%s2673 + $0x69] sm:$0xff]
      %v2745 = vld [vmem:[%s2673 + $0x71] sm:$0xff]
      %v2746 = vld [vmem:[%s2673 + $0x89] sm:$0xff]
      %v2747 = vld [vmem:[%s2673 + $0x91] sm:$0xff]
      %v2748 = vld [vmem:[%s2673 + $0xa9] sm:$0xff]
      %v2749 = vld [vmem:[%s2673 + $0xb1] sm:$0xff]
      %v2750 = vld [vmem:[%s2673 + $0xc9] sm:$0xff]
      %v2751 = vld [vmem:[%s2673 + $0xd1] sm:$0xff]
      %v2752 = vld [vmem:[%s2673 + $0xe9] sm:$0xff]
      %v2753 = vld [vmem:[%s2673 + $0xf1] sm:$0xff]
      %v2754 = vld [vmem:[%s2673 + $0x109] sm:$0xff]
      %v2755 = vld [vmem:[%s2673 + $0x111] sm:$0xff]
      %v2756 = vld [vmem:[%s2673 + $0x129] sm:$0xff]
      %v2757 = vld [vmem:[%s2673 + $0x131] sm:$0xff]
      %v2758 = vld [vmem:[%s2673 + $0x149] sm:$0xff]
      %v2759 = vld [vmem:[%s2673 + $0x151] sm:$0xff]
      %v2760 = vld [vmem:[%s2673 + $0x169] sm:$0xff]
      %v2761 = vld [vmem:[%s2673 + $0x171] sm:$0xff]
      %v2762 = vld [vmem:[%s2673 + $0x189] sm:$0xff]
      %v2763 = vld [vmem:[%s2673 + $0x191] sm:$0xff]
      %v2764 = vld [vmem:[%s2673 + $0x1a9] sm:$0xff]
      %v2765 = vld [vmem:[%s2673 + $0x1b1] sm:$0xff]
      %v2766 = vld [vmem:[%s2673 + $0x1c9] sm:$0xff]
      %v2767 = vld [vmem:[%s2673 + $0x1d1] sm:$0xff]
      %v2768 = vld [vmem:[%s2673 + $0x1e9] sm:$0xff]
      %v2769 = vld [vmem:[%s2673 + $0x1f1] sm:$0xff]
      %2802 = vrot.lane.b32.xlu0 %v2513, 8
      %v2803 = vpop.permute.xlu0 %2802
      %2804 = vrot.lane.b32.xlu0 %v2514, 8
      %v2805 = vpop.permute.xlu0 %2804
      %2806 = vrot.lane.b32.xlu0 %v2515, 8
      %v2807 = vpop.permute.xlu0 %2806
      %2808 = vrot.lane.b32.xlu0 %v2516, 8
      %v2809 = vpop.permute.xlu0 %2808
      %2810 = vrot.lane.b32.xlu0 %v2517, 8
      %v2811 = vpop.permute.xlu0 %2810
      %2812 = vrot.lane.b32.xlu0 %v2518, 8
      %v2813 = vpop.permute.xlu0 %2812
      %2814 = vrot.lane.b32.xlu0 %v2519, 8
      %v2815 = vpop.permute.xlu0 %2814
      %2816 = vrot.lane.b32.xlu0 %v2520, 8
      %v2817 = vpop.permute.xlu0 %2816
      %2818 = vrot.lane.b32.xlu0 %v2521, 8
      %v2819 = vpop.permute.xlu0 %2818
      %2820 = vrot.lane.b32.xlu0 %v2522, 8
      %v2821 = vpop.permute.xlu0 %2820
      %2822 = vrot.lane.b32.xlu0 %v2523, 8
      %v2823 = vpop.permute.xlu0 %2822
      %2824 = vrot.lane.b32.xlu0 %v2524, 8
      %v2825 = vpop.permute.xlu0 %2824
      %2826 = vrot.lane.b32.xlu0 %v2525, 8
      %v2827 = vpop.permute.xlu0 %2826
      %2828 = vrot.lane.b32.xlu0 %v2526, 8
      %v2829 = vpop.permute.xlu0 %2828
      %2830 = vrot.lane.b32.xlu0 %v2527, 8
      %v2831 = vpop.permute.xlu0 %2830
      %2832 = vrot.lane.b32.xlu0 %v2528, 8
      %v2833 = vpop.permute.xlu0 %2832
      %2834 = vrot.lane.b32.xlu0 %v2529, 8
      %v2835 = vpop.permute.xlu0 %2834
      %2836 = vrot.lane.b32.xlu0 %v2530, 8
      %v2837 = vpop.permute.xlu0 %2836
      %2838 = vrot.lane.b32.xlu0 %v2531, 8
      %v2839 = vpop.permute.xlu0 %2838
      %2840 = vrot.lane.b32.xlu0 %v2532, 8
      %v2841 = vpop.permute.xlu0 %2840
      %2842 = vrot.lane.b32.xlu0 %v2533, 8
      %v2843 = vpop.permute.xlu0 %2842
      %2844 = vrot.lane.b32.xlu0 %v2534, 8
      %v2845 = vpop.permute.xlu0 %2844
      %2846 = vrot.lane.b32.xlu0 %v2535, 8
      %v2847 = vpop.permute.xlu0 %2846
      %2848 = vrot.lane.b32.xlu0 %v2536, 8
      %v2849 = vpop.permute.xlu0 %2848
      %2850 = vrot.lane.b32.xlu0 %v2537, 8
      %v2851 = vpop.permute.xlu0 %2850
      %2852 = vrot.lane.b32.xlu0 %v2538, 8
      %v2853 = vpop.permute.xlu0 %2852
      %2854 = vrot.lane.b32.xlu0 %v2539, 8
      %v2855 = vpop.permute.xlu0 %2854
      %2856 = vrot.lane.b32.xlu0 %v2540, 8
      %v2857 = vpop.permute.xlu0 %2856
      %2858 = vrot.lane.b32.xlu0 %v2541, 8
      %v2859 = vpop.permute.xlu0 %2858
      %2860 = vrot.lane.b32.xlu0 %v2542, 8
      %v2861 = vpop.permute.xlu0 %2860
      %2862 = vrot.lane.b32.xlu0 %v2543, 8
      %v2863 = vpop.permute.xlu0 %2862
      %2864 = vrot.lane.b32.xlu0 %v2544, 8
      %v2865 = vpop.permute.xlu0 %2864
      %2930 = vrot.lane.b32.xlu0 %v2545, 16
      %v2931 = vpop.permute.xlu0 %2930
      %2932 = vrot.lane.b32.xlu0 %v2546, 16
      %v2933 = vpop.permute.xlu0 %2932
      %2934 = vrot.lane.b32.xlu0 %v2547, 16
      %v2935 = vpop.permute.xlu0 %2934
      %2936 = vrot.lane.b32.xlu0 %v2548, 16
      %v2937 = vpop.permute.xlu0 %2936
      %2938 = vrot.lane.b32.xlu0 %v2549, 16
      %v2939 = vpop.permute.xlu0 %2938
      %2940 = vrot.lane.b32.xlu0 %v2550, 16
      %v2941 = vpop.permute.xlu0 %2940
      %2942 = vrot.lane.b32.xlu0 %v2551, 16
      %v2943 = vpop.permute.xlu0 %2942
      %2944 = vrot.lane.b32.xlu0 %v2552, 16
      %v2945 = vpop.permute.xlu0 %2944
      %2946 = vrot.lane.b32.xlu0 %v2553, 16
      %v2947 = vpop.permute.xlu0 %2946
      %2948 = vrot.lane.b32.xlu0 %v2554, 16
      %v2949 = vpop.permute.xlu0 %2948
      %2950 = vrot.lane.b32.xlu0 %v2555, 16
      %v2951 = vpop.permute.xlu0 %2950
      %2952 = vrot.lane.b32.xlu0 %v2556, 16
      %v2953 = vpop.permute.xlu0 %2952
      %2954 = vrot.lane.b32.xlu0 %v2557, 16
      %v2955 = vpop.permute.xlu0 %2954
      %2956 = vrot.lane.b32.xlu0 %v2558, 16
      %v2957 = vpop.permute.xlu0 %2956
      %2958 = vrot.lane.b32.xlu0 %v2559, 16
      %v2959 = vpop.permute.xlu0 %2958
      %2960 = vrot.lane.b32.xlu0 %v2560, 16
      %v2961 = vpop.permute.xlu0 %2960
      %2962 = vrot.lane.b32.xlu0 %v2561, 16
      %v2963 = vpop.permute.xlu0 %2962
      %2964 = vrot.lane.b32.xlu0 %v2562, 16
      %v2965 = vpop.permute.xlu0 %2964
      %2966 = vrot.lane.b32.xlu0 %v2563, 16
      %v2967 = vpop.permute.xlu0 %2966
      %2968 = vrot.lane.b32.xlu0 %v2564, 16
      %v2969 = vpop.permute.xlu0 %2968
      %2970 = vrot.lane.b32.xlu0 %v2565, 16
      %v2971 = vpop.permute.xlu0 %2970
      %2972 = vrot.lane.b32.xlu0 %v2566, 16
      %v2973 = vpop.permute.xlu0 %2972
      %2974 = vrot.lane.b32.xlu0 %v2567, 16
      %v2975 = vpop.permute.xlu0 %2974
      %2976 = vrot.lane.b32.xlu0 %v2568, 16
      %v2977 = vpop.permute.xlu0 %2976
      %2978 = vrot.lane.b32.xlu0 %v2569, 16
      %v2979 = vpop.permute.xlu0 %2978
      %2980 = vrot.lane.b32.xlu0 %v2570, 16
      %v2981 = vpop.permute.xlu0 %2980
      %2982 = vrot.lane.b32.xlu0 %v2571, 16
      %v2983 = vpop.permute.xlu0 %2982
      %2984 = vrot.lane.b32.xlu0 %v2572, 16
      %v2985 = vpop.permute.xlu0 %2984
      %2986 = vrot.lane.b32.xlu0 %v2573, 16
      %v2987 = vpop.permute.xlu0 %2986
      %2988 = vrot.lane.b32.xlu0 %v2574, 16
      %v2989 = vpop.permute.xlu0 %2988
      %2990 = vrot.lane.b32.xlu0 %v2575, 16
      %v2991 = vpop.permute.xlu0 %2990
      %2992 = vrot.lane.b32.xlu0 %v2576, 16
      %v2993 = vpop.permute.xlu0 %2992
      %3058 = vrot.lane.b32.xlu0 %v2577, 24
      %v3059 = vpop.permute.xlu0 %3058
      %3060 = vrot.lane.b32.xlu0 %v2578, 24
      %v3061 = vpop.permute.xlu0 %3060
      %3062 = vrot.lane.b32.xlu0 %v2579, 24
      %v3063 = vpop.permute.xlu0 %3062
      %3064 = vrot.lane.b32.xlu0 %v2580, 24
      %v3065 = vpop.permute.xlu0 %3064
      %3066 = vrot.lane.b32.xlu0 %v2581, 24
      %v3067 = vpop.permute.xlu0 %3066
      %3068 = vrot.lane.b32.xlu0 %v2582, 24
      %v3069 = vpop.permute.xlu0 %3068
      %3070 = vrot.lane.b32.xlu0 %v2583, 24
      %v3071 = vpop.permute.xlu0 %3070
      %3072 = vrot.lane.b32.xlu0 %v2584, 24
      %v3073 = vpop.permute.xlu0 %3072
      %3074 = vrot.lane.b32.xlu0 %v2585, 24
      %v3075 = vpop.permute.xlu0 %3074
      %3076 = vrot.lane.b32.xlu0 %v2586, 24
      %v3077 = vpop.permute.xlu0 %3076
      %3078 = vrot.lane.b32.xlu0 %v2587, 24
      %v3079 = vpop.permute.xlu0 %3078
      %3080 = vrot.lane.b32.xlu0 %v2588, 24
      %v3081 = vpop.permute.xlu0 %3080
      %3082 = vrot.lane.b32.xlu0 %v2589, 24
      %v3083 = vpop.permute.xlu0 %3082
      %3084 = vrot.lane.b32.xlu0 %v2590, 24
      %v3085 = vpop.permute.xlu0 %3084
      %3086 = vrot.lane.b32.xlu0 %v2591, 24
      %v3087 = vpop.permute.xlu0 %3086
      %3088 = vrot.lane.b32.xlu0 %v2592, 24
      %v3089 = vpop.permute.xlu0 %3088
      %3090 = vrot.lane.b32.xlu0 %v2593, 24
      %v3091 = vpop.permute.xlu0 %3090
      %3092 = vrot.lane.b32.xlu0 %v2594, 24
      %v3093 = vpop.permute.xlu0 %3092
      %3094 = vrot.lane.b32.xlu0 %v2595, 24
      %v3095 = vpop.permute.xlu0 %3094
      %3096 = vrot.lane.b32.xlu0 %v2596, 24
      %v3097 = vpop.permute.xlu0 %3096
      %3098 = vrot.lane.b32.xlu0 %v2597, 24
      %v3099 = vpop.permute.xlu0 %3098
      %3100 = vrot.lane.b32.xlu0 %v2598, 24
      %v3101 = vpop.permute.xlu0 %3100
      %3102 = vrot.lane.b32.xlu0 %v2599, 24
      %v3103 = vpop.permute.xlu0 %3102
      %3104 = vrot.lane.b32.xlu0 %v2600, 24
      %v3105 = vpop.permute.xlu0 %3104
      %3106 = vrot.lane.b32.xlu0 %v2601, 24
      %v3107 = vpop.permute.xlu0 %3106
      %3108 = vrot.lane.b32.xlu0 %v2602, 24
      %v3109 = vpop.permute.xlu0 %3108
      %3110 = vrot.lane.b32.xlu0 %v2603, 24
      %v3111 = vpop.permute.xlu0 %3110
      %3112 = vrot.lane.b32.xlu0 %v2604, 24
      %v3113 = vpop.permute.xlu0 %3112
      %3114 = vrot.lane.b32.xlu0 %v2605, 24
      %v3115 = vpop.permute.xlu0 %3114
      %3116 = vrot.lane.b32.xlu0 %v2606, 24
      %v3117 = vpop.permute.xlu0 %3116
      %3118 = vrot.lane.b32.xlu0 %v2607, 24
      %v3119 = vpop.permute.xlu0 %3118
      %3120 = vrot.lane.b32.xlu0 %v2608, 24
      %v3121 = vpop.permute.xlu0 %3120
      %3186 = vrot.lane.b32.xlu0 %v2609, 32
      %v3187 = vpop.permute.xlu0 %3186
      %3188 = vrot.lane.b32.xlu0 %v2610, 32
      %v3189 = vpop.permute.xlu0 %3188
      %3190 = vrot.lane.b32.xlu0 %v2611, 32
      %v3191 = vpop.permute.xlu0 %3190
      %3192 = vrot.lane.b32.xlu0 %v2612, 32
      %v3193 = vpop.permute.xlu0 %3192
      %3194 = vrot.lane.b32.xlu0 %v2613, 32
      %v3195 = vpop.permute.xlu0 %3194
      %3196 = vrot.lane.b32.xlu0 %v2614, 32
      %v3197 = vpop.permute.xlu0 %3196
      %3198 = vrot.lane.b32.xlu0 %v2615, 32
      %v3199 = vpop.permute.xlu0 %3198
      %3200 = vrot.lane.b32.xlu0 %v2616, 32
      %v3201 = vpop.permute.xlu0 %3200
      %3202 = vrot.lane.b32.xlu0 %v2617, 32
      %v3203 = vpop.permute.xlu0 %3202
      %3204 = vrot.lane.b32.xlu0 %v2618, 32
      %v3205 = vpop.permute.xlu0 %3204
      %3206 = vrot.lane.b32.xlu0 %v2619, 32
      %v3207 = vpop.permute.xlu0 %3206
      %3208 = vrot.lane.b32.xlu0 %v2620, 32
      %v3209 = vpop.permute.xlu0 %3208
      %3210 = vrot.lane.b32.xlu0 %v2621, 32
      %v3211 = vpop.permute.xlu0 %3210
      %3212 = vrot.lane.b32.xlu0 %v2622, 32
      %v3213 = vpop.permute.xlu0 %3212
      %3214 = vrot.lane.b32.xlu0 %v2623, 32
      %v3215 = vpop.permute.xlu0 %3214
      %3216 = vrot.lane.b32.xlu0 %v2624, 32
      %v3217 = vpop.permute.xlu0 %3216
      %3218 = vrot.lane.b32.xlu0 %v2625, 32
      %v3219 = vpop.permute.xlu0 %3218
      %3220 = vrot.lane.b32.xlu0 %v2626, 32
      %v3221 = vpop.permute.xlu0 %3220
      %3222 = vrot.lane.b32.xlu0 %v2627, 32
      %v3223 = vpop.permute.xlu0 %3222
      %3224 = vrot.lane.b32.xlu0 %v2628, 32
      %v3225 = vpop.permute.xlu0 %3224
      %3226 = vrot.lane.b32.xlu0 %v2629, 32
      %v3227 = vpop.permute.xlu0 %3226
      %3228 = vrot.lane.b32.xlu0 %v2630, 32
      %v3229 = vpop.permute.xlu0 %3228
      %3230 = vrot.lane.b32.xlu0 %v2631, 32
      %v3231 = vpop.permute.xlu0 %3230
      %3232 = vrot.lane.b32.xlu0 %v2632, 32
      %v3233 = vpop.permute.xlu0 %3232
      %3234 = vrot.lane.b32.xlu0 %v2633, 32
      %v3235 = vpop.permute.xlu0 %3234
      %3236 = vrot.lane.b32.xlu0 %v2634, 32
      %v3237 = vpop.permute.xlu0 %3236
      %3238 = vrot.lane.b32.xlu0 %v2635, 32
      %v3239 = vpop.permute.xlu0 %3238
      %3240 = vrot.lane.b32.xlu0 %v2636, 32
      %v3241 = vpop.permute.xlu0 %3240
      %3242 = vrot.lane.b32.xlu0 %v2637, 32
      %v3243 = vpop.permute.xlu0 %3242
      %3244 = vrot.lane.b32.xlu0 %v2638, 32
      %v3245 = vpop.permute.xlu0 %3244
      %3246 = vrot.lane.b32.xlu0 %v2639, 32
      %v3247 = vpop.permute.xlu0 %3246
      %3248 = vrot.lane.b32.xlu0 %v2640, 32
      %v3249 = vpop.permute.xlu0 %3248
      %3314 = vrot.lane.b32.xlu0 %v2641, 40
      %v3315 = vpop.permute.xlu0 %3314
      %3316 = vrot.lane.b32.xlu0 %v2642, 40
      %v3317 = vpop.permute.xlu0 %3316
      %3318 = vrot.lane.b32.xlu0 %v2643, 40
      %v3319 = vpop.permute.xlu0 %3318
      %3320 = vrot.lane.b32.xlu0 %v2644, 40
      %v3321 = vpop.permute.xlu0 %3320
      %3322 = vrot.lane.b32.xlu0 %v2645, 40
      %v3323 = vpop.permute.xlu0 %3322
      %3324 = vrot.lane.b32.xlu0 %v2646, 40
      %v3325 = vpop.permute.xlu0 %3324
      %3326 = vrot.lane.b32.xlu0 %v2647, 40
      %v3327 = vpop.permute.xlu0 %3326
      %3328 = vrot.lane.b32.xlu0 %v2648, 40
      %v3329 = vpop.permute.xlu0 %3328
      %3330 = vrot.lane.b32.xlu0 %v2649, 40
      %v3331 = vpop.permute.xlu0 %3330
      %3332 = vrot.lane.b32.xlu0 %v2650, 40
      %v3333 = vpop.permute.xlu0 %3332
      %3334 = vrot.lane.b32.xlu0 %v2651, 40
      %v3335 = vpop.permute.xlu0 %3334
      %3336 = vrot.lane.b32.xlu0 %v2652, 40
      %v3337 = vpop.permute.xlu0 %3336
      %3338 = vrot.lane.b32.xlu0 %v2653, 40
      %v3339 = vpop.permute.xlu0 %3338
      %3340 = vrot.lane.b32.xlu0 %v2654, 40
      %v3341 = vpop.permute.xlu0 %3340
      %3342 = vrot.lane.b32.xlu0 %v2655, 40
      %v3343 = vpop.permute.xlu0 %3342
      %3344 = vrot.lane.b32.xlu0 %v2656, 40
      %v3345 = vpop.permute.xlu0 %3344
      %3346 = vrot.lane.b32.xlu0 %v2657, 40
      %v3347 = vpop.permute.xlu0 %3346
      %3348 = vrot.lane.b32.xlu0 %v2658, 40
      %v3349 = vpop.permute.xlu0 %3348
      %3350 = vrot.lane.b32.xlu0 %v2659, 40
      %v3351 = vpop.permute.xlu0 %3350
      %3352 = vrot.lane.b32.xlu0 %v2660, 40
      %v3353 = vpop.permute.xlu0 %3352
      %3354 = vrot.lane.b32.xlu0 %v2661, 40
      %v3355 = vpop.permute.xlu0 %3354
      %3356 = vrot.lane.b32.xlu0 %v2662, 40
      %v3357 = vpop.permute.xlu0 %3356
      %3358 = vrot.lane.b32.xlu0 %v2663, 40
      %v3359 = vpop.permute.xlu0 %3358
      %3360 = vrot.lane.b32.xlu0 %v2664, 40
      %v3361 = vpop.permute.xlu0 %3360
      %3362 = vrot.lane.b32.xlu0 %v2665, 40
      %v3363 = vpop.permute.xlu0 %3362
      %3364 = vrot.lane.b32.xlu0 %v2666, 40
      %v3365 = vpop.permute.xlu0 %3364
      %3366 = vrot.lane.b32.xlu0 %v2667, 40
      %v3367 = vpop.permute.xlu0 %3366
      %3368 = vrot.lane.b32.xlu0 %v2668, 40
      %v3369 = vpop.permute.xlu0 %3368
      %3370 = vrot.lane.b32.xlu0 %v2669, 40
      %v3371 = vpop.permute.xlu0 %3370
      %3372 = vrot.lane.b32.xlu0 %v2670, 40
      %v3373 = vpop.permute.xlu0 %3372
      %3374 = vrot.lane.b32.xlu0 %v2671, 40
      %v3375 = vpop.permute.xlu0 %3374
      %3376 = vrot.lane.b32.xlu0 %v2672, 40
      %v3377 = vpop.permute.xlu0 %3376
      %3442 = vrot.lane.b32.xlu0 %v2674, 48
      %v3443 = vpop.permute.xlu0 %3442
      %3444 = vrot.lane.b32.xlu0 %v2675, 48
      %v3445 = vpop.permute.xlu0 %3444
      %3446 = vrot.lane.b32.xlu0 %v2676, 48
      %v3447 = vpop.permute.xlu0 %3446
      %3448 = vrot.lane.b32.xlu0 %v2677, 48
      %v3449 = vpop.permute.xlu0 %3448
      %3450 = vrot.lane.b32.xlu0 %v2678, 48
      %v3451 = vpop.permute.xlu0 %3450
      %3452 = vrot.lane.b32.xlu0 %v2679, 48
      %v3453 = vpop.permute.xlu0 %3452
      %3454 = vrot.lane.b32.xlu0 %v2680, 48
      %v3455 = vpop.permute.xlu0 %3454
      %3456 = vrot.lane.b32.xlu0 %v2681, 48
      %v3457 = vpop.permute.xlu0 %3456
      %3458 = vrot.lane.b32.xlu0 %v2682, 48
      %v3459 = vpop.permute.xlu0 %3458
      %3460 = vrot.lane.b32.xlu0 %v2683, 48
      %v3461 = vpop.permute.xlu0 %3460
      %3462 = vrot.lane.b32.xlu0 %v2684, 48
      %v3463 = vpop.permute.xlu0 %3462
      %3464 = vrot.lane.b32.xlu0 %v2685, 48
      %v3465 = vpop.permute.xlu0 %3464
      %3466 = vrot.lane.b32.xlu0 %v2686, 48
      %v3467 = vpop.permute.xlu0 %3466
      %3468 = vrot.lane.b32.xlu0 %v2687, 48
      %v3469 = vpop.permute.xlu0 %3468
      %3470 = vrot.lane.b32.xlu0 %v2688, 48
      %v3471 = vpop.permute.xlu0 %3470
      %3472 = vrot.lane.b32.xlu0 %v2689, 48
      %v3473 = vpop.permute.xlu0 %3472
      %3474 = vrot.lane.b32.xlu0 %v2690, 48
      %v3475 = vpop.permute.xlu0 %3474
      %3476 = vrot.lane.b32.xlu0 %v2691, 48
      %v3477 = vpop.permute.xlu0 %3476
      %3478 = vrot.lane.b32.xlu0 %v2692, 48
      %v3479 = vpop.permute.xlu0 %3478
      %3480 = vrot.lane.b32.xlu0 %v2693, 48
      %v3481 = vpop.permute.xlu0 %3480
      %3482 = vrot.lane.b32.xlu0 %v2694, 48
      %v3483 = vpop.permute.xlu0 %3482
      %3484 = vrot.lane.b32.xlu0 %v2695, 48
      %v3485 = vpop.permute.xlu0 %3484
      %3486 = vrot.lane.b32.xlu0 %v2696, 48
      %v3487 = vpop.permute.xlu0 %3486
      %3488 = vrot.lane.b32.xlu0 %v2697, 48
      %v3489 = vpop.permute.xlu0 %3488
      %3490 = vrot.lane.b32.xlu0 %v2698, 48
      %v3491 = vpop.permute.xlu0 %3490
      %3492 = vrot.lane.b32.xlu0 %v2699, 48
      %v3493 = vpop.permute.xlu0 %3492
      %3494 = vrot.lane.b32.xlu0 %v2700, 48
      %v3495 = vpop.permute.xlu0 %3494
      %3496 = vrot.lane.b32.xlu0 %v2701, 48
      %v3497 = vpop.permute.xlu0 %3496
      %3498 = vrot.lane.b32.xlu0 %v2702, 48
      %v3499 = vpop.permute.xlu0 %3498
      %3500 = vrot.lane.b32.xlu0 %v2703, 48
      %v3501 = vpop.permute.xlu0 %3500
      %3502 = vrot.lane.b32.xlu0 %v2704, 48
      %v3503 = vpop.permute.xlu0 %3502
      %3504 = vrot.lane.b32.xlu0 %v2705, 48
      %v3505 = vpop.permute.xlu0 %3504
      %3570 = vrot.lane.b32.xlu0 %v2706, 56
      %v3571 = vpop.permute.xlu0 %3570
      %3572 = vrot.lane.b32.xlu0 %v2707, 56
      %v3573 = vpop.permute.xlu0 %3572
      %3574 = vrot.lane.b32.xlu0 %v2708, 56
      %v3575 = vpop.permute.xlu0 %3574
      %3576 = vrot.lane.b32.xlu0 %v2709, 56
      %v3577 = vpop.permute.xlu0 %3576
      %3578 = vrot.lane.b32.xlu0 %v2710, 56
      %v3579 = vpop.permute.xlu0 %3578
      %3580 = vrot.lane.b32.xlu0 %v2711, 56
      %v3581 = vpop.permute.xlu0 %3580
      %3582 = vrot.lane.b32.xlu0 %v2712, 56
      %v3583 = vpop.permute.xlu0 %3582
      %3584 = vrot.lane.b32.xlu0 %v2713, 56
      %v3585 = vpop.permute.xlu0 %3584
      %3586 = vrot.lane.b32.xlu0 %v2714, 56
      %v3587 = vpop.permute.xlu0 %3586
      %3588 = vrot.lane.b32.xlu0 %v2715, 56
      %v3589 = vpop.permute.xlu0 %3588
      %3590 = vrot.lane.b32.xlu0 %v2716, 56
      %v3591 = vpop.permute.xlu0 %3590
      %3592 = vrot.lane.b32.xlu0 %v2717, 56
      %v3593 = vpop.permute.xlu0 %3592
      %3594 = vrot.lane.b32.xlu0 %v2718, 56
      %v3595 = vpop.permute.xlu0 %3594
      %3596 = vrot.lane.b32.xlu0 %v2719, 56
      %v3597 = vpop.permute.xlu0 %3596
      %3598 = vrot.lane.b32.xlu0 %v2720, 56
      %v3599 = vpop.permute.xlu0 %3598
      %3600 = vrot.lane.b32.xlu0 %v2721, 56
      %v3601 = vpop.permute.xlu0 %3600
      %3602 = vrot.lane.b32.xlu0 %v2722, 56
      %v3603 = vpop.permute.xlu0 %3602
      %3604 = vrot.lane.b32.xlu0 %v2723, 56
      %v3605 = vpop.permute.xlu0 %3604
      %3606 = vrot.lane.b32.xlu0 %v2724, 56
      %v3607 = vpop.permute.xlu0 %3606
      %3608 = vrot.lane.b32.xlu0 %v2725, 56
      %v3609 = vpop.permute.xlu0 %3608
      %3610 = vrot.lane.b32.xlu0 %v2726, 56
      %v3611 = vpop.permute.xlu0 %3610
      %3612 = vrot.lane.b32.xlu0 %v2727, 56
      %v3613 = vpop.permute.xlu0 %3612
      %3614 = vrot.lane.b32.xlu0 %v2728, 56
      %v3615 = vpop.permute.xlu0 %3614
      %3616 = vrot.lane.b32.xlu0 %v2729, 56
      %v3617 = vpop.permute.xlu0 %3616
      %3618 = vrot.lane.b32.xlu0 %v2730, 56
      %v3619 = vpop.permute.xlu0 %3618
      %3620 = vrot.lane.b32.xlu0 %v2731, 56
      %v3621 = vpop.permute.xlu0 %3620
      %3622 = vrot.lane.b32.xlu0 %v2732, 56
      %v3623 = vpop.permute.xlu0 %3622
      %3624 = vrot.lane.b32.xlu0 %v2733, 56
      %v3625 = vpop.permute.xlu0 %3624
      %3626 = vrot.lane.b32.xlu0 %v2734, 56
      %v3627 = vpop.permute.xlu0 %3626
      %3628 = vrot.lane.b32.xlu0 %v2735, 56
      %v3629 = vpop.permute.xlu0 %3628
      %3630 = vrot.lane.b32.xlu0 %v2736, 56
      %v3631 = vpop.permute.xlu0 %3630
      %3632 = vrot.lane.b32.xlu0 %v2737, 56
      %v3633 = vpop.permute.xlu0 %3632
      %3698 = vrot.lane.b32.xlu0 %v2738, 64
      %v3699 = vpop.permute.xlu0 %3698
      %3700 = vrot.lane.b32.xlu0 %v2739, 64
      %v3701 = vpop.permute.xlu0 %3700
      %3702 = vrot.lane.b32.xlu0 %v2740, 64
      %v3703 = vpop.permute.xlu0 %3702
      %3704 = vrot.lane.b32.xlu0 %v2741, 64
      %v3705 = vpop.permute.xlu0 %3704
      %3706 = vrot.lane.b32.xlu0 %v2742, 64
      %v3707 = vpop.permute.xlu0 %3706
      %3708 = vrot.lane.b32.xlu0 %v2743, 64
      %v3709 = vpop.permute.xlu0 %3708
      %3710 = vrot.lane.b32.xlu0 %v2744, 64
      %v3711 = vpop.permute.xlu0 %3710
      %3712 = vrot.lane.b32.xlu0 %v2745, 64
      %v3713 = vpop.permute.xlu0 %3712
      %3714 = vrot.lane.b32.xlu0 %v2746, 64
      %v3715 = vpop.permute.xlu0 %3714
      %3716 = vrot.lane.b32.xlu0 %v2747, 64
      %v3717 = vpop.permute.xlu0 %3716
      %3718 = vrot.lane.b32.xlu0 %v2748, 64
      %v3719 = vpop.permute.xlu0 %3718
      %3720 = vrot.lane.b32.xlu0 %v2749, 64
      %v3721 = vpop.permute.xlu0 %3720
      %3722 = vrot.lane.b32.xlu0 %v2750, 64
      %v3723 = vpop.permute.xlu0 %3722
      %3724 = vrot.lane.b32.xlu0 %v2751, 64
      %v3725 = vpop.permute.xlu0 %3724
      %3726 = vrot.lane.b32.xlu0 %v2752, 64
      %v3727 = vpop.permute.xlu0 %3726
      %3728 = vrot.lane.b32.xlu0 %v2753, 64
      %v3729 = vpop.permute.xlu0 %3728
      %3730 = vrot.lane.b32.xlu0 %v2754, 64
      %v3731 = vpop.permute.xlu0 %3730
      %3732 = vrot.lane.b32.xlu0 %v2755, 64
      %v3733 = vpop.permute.xlu0 %3732
      %3734 = vrot.lane.b32.xlu0 %v2756, 64
      %v3735 = vpop.permute.xlu0 %3734
      %3736 = vrot.lane.b32.xlu0 %v2757, 64
      %v3737 = vpop.permute.xlu0 %3736
      %3738 = vrot.lane.b32.xlu0 %v2758, 64
      %v3739 = vpop.permute.xlu0 %3738
      %3740 = vrot.lane.b32.xlu0 %v2759, 64
      %v3741 = vpop.permute.xlu0 %3740
      %3742 = vrot.lane.b32.xlu0 %v2760, 64
      %v3743 = vpop.permute.xlu0 %3742
      %3744 = vrot.lane.b32.xlu0 %v2761, 64
      %v3745 = vpop.permute.xlu0 %3744
      %3746 = vrot.lane.b32.xlu0 %v2762, 64
      %v3747 = vpop.permute.xlu0 %3746
      %3748 = vrot.lane.b32.xlu0 %v2763, 64
      %v3749 = vpop.permute.xlu0 %3748
      %3750 = vrot.lane.b32.xlu0 %v2764, 64
      %v3751 = vpop.permute.xlu0 %3750
      %3752 = vrot.lane.b32.xlu0 %v2765, 64
      %v3753 = vpop.permute.xlu0 %3752
      %3754 = vrot.lane.b32.xlu0 %v2766, 64
      %v3755 = vpop.permute.xlu0 %3754
      %3756 = vrot.lane.b32.xlu0 %v2767, 64
      %v3757 = vpop.permute.xlu0 %3756
      %3758 = vrot.lane.b32.xlu0 %v2768, 64
      %v3759 = vpop.permute.xlu0 %3758
      %3760 = vrot.lane.b32.xlu0 %v2769, 64
      %v3761 = vpop.permute.xlu0 %3760
      %v3794 = vsel %vm218, %v2481, %v2803
      %v3795 = vsel %vm218, %v2482, %v2805
      %v3796 = vsel %vm218, %v2483, %v2807
      %v3797 = vsel %vm218, %v2484, %v2809
      %v3798 = vsel %vm218, %v2485, %v2811
      %v3799 = vsel %vm218, %v2486, %v2813
      %v3800 = vsel %vm218, %v2487, %v2815
      %v3801 = vsel %vm218, %v2488, %v2817
      %v3802 = vsel %vm218, %v2489, %v2819
      %v3803 = vsel %vm218, %v2490, %v2821
      %v3804 = vsel %vm218, %v2491, %v2823
      %v3805 = vsel %vm218, %v2492, %v2825
      %v3806 = vsel %vm218, %v2493, %v2827
      %v3807 = vsel %vm218, %v2494, %v2829
      %v3808 = vsel %vm218, %v2495, %v2831
      %v3809 = vsel %vm218, %v2496, %v2833
      %v3810 = vsel %vm218, %v2497, %v2835
      %v3811 = vsel %vm218, %v2498, %v2837
      %v3812 = vsel %vm218, %v2499, %v2839
      %v3813 = vsel %vm218, %v2500, %v2841
      %v3814 = vsel %vm218, %v2501, %v2843
      %v3815 = vsel %vm218, %v2502, %v2845
      %v3816 = vsel %vm218, %v2503, %v2847
      %v3817 = vsel %vm218, %v2504, %v2849
      %v3818 = vsel %vm218, %v2505, %v2851
      %v3819 = vsel %vm218, %v2506, %v2853
      %v3820 = vsel %vm218, %v2507, %v2855
      %v3821 = vsel %vm218, %v2508, %v2857
      %v3822 = vsel %vm218, %v2509, %v2859
      %v3823 = vsel %vm218, %v2510, %v2861
      %v3824 = vsel %vm218, %v2511, %v2863
      %v3825 = vsel %vm218, %v2512, %v2865
      %v3826 = vsel %vm1966, %v3794, %v2931
      %v3827 = vsel %vm1966, %v3795, %v2933
      %v3828 = vsel %vm1966, %v3796, %v2935
      %v3829 = vsel %vm1966, %v3797, %v2937
      %v3830 = vsel %vm1966, %v3798, %v2939
      %v3831 = vsel %vm1966, %v3799, %v2941
      %v3832 = vsel %vm1966, %v3800, %v2943
      %v3833 = vsel %vm1966, %v3801, %v2945
      %v3834 = vsel %vm1966, %v3802, %v2947
      %v3835 = vsel %vm1966, %v3803, %v2949
      %v3836 = vsel %vm1966, %v3804, %v2951
      %v3837 = vsel %vm1966, %v3805, %v2953
      %v3838 = vsel %vm1966, %v3806, %v2955
      %v3839 = vsel %vm1966, %v3807, %v2957
      %v3840 = vsel %vm1966, %v3808, %v2959
      %v3841 = vsel %vm1966, %v3809, %v2961
      %v3842 = vsel %vm1966, %v3810, %v2963
      %v3843 = vsel %vm1966, %v3811, %v2965
      %v3844 = vsel %vm1966, %v3812, %v2967
      %v3845 = vsel %vm1966, %v3813, %v2969
      %v3846 = vsel %vm1966, %v3814, %v2971
      %v3847 = vsel %vm1966, %v3815, %v2973
      %v3848 = vsel %vm1966, %v3816, %v2975
      %v3849 = vsel %vm1966, %v3817, %v2977
      %v3850 = vsel %vm1966, %v3818, %v2979
      %v3851 = vsel %vm1966, %v3819, %v2981
      %v3852 = vsel %vm1966, %v3820, %v2983
      %v3853 = vsel %vm1966, %v3821, %v2985
      %v3854 = vsel %vm1966, %v3822, %v2987
      %v3855 = vsel %vm1966, %v3823, %v2989
      %v3856 = vsel %vm1966, %v3824, %v2991
      %v3857 = vsel %vm1966, %v3825, %v2993
      %v3858 = vsel %vm1999, %v3826, %v3059
      %v3859 = vsel %vm1999, %v3827, %v3061
      %v3860 = vsel %vm1999, %v3828, %v3063
      %v3861 = vsel %vm1999, %v3829, %v3065
      %v3862 = vsel %vm1999, %v3830, %v3067
      %v3863 = vsel %vm1999, %v3831, %v3069
      %v3864 = vsel %vm1999, %v3832, %v3071
      %v3865 = vsel %vm1999, %v3833, %v3073
      %v3866 = vsel %vm1999, %v3834, %v3075
      %v3867 = vsel %vm1999, %v3835, %v3077
      %v3868 = vsel %vm1999, %v3836, %v3079
      %v3869 = vsel %vm1999, %v3837, %v3081
      %v3870 = vsel %vm1999, %v3838, %v3083
      %v3871 = vsel %vm1999, %v3839, %v3085
      %v3872 = vsel %vm1999, %v3840, %v3087
      %v3873 = vsel %vm1999, %v3841, %v3089
      %v3874 = vsel %vm1999, %v3842, %v3091
      %v3875 = vsel %vm1999, %v3843, %v3093
      %v3876 = vsel %vm1999, %v3844, %v3095
      %v3877 = vsel %vm1999, %v3845, %v3097
      %v3878 = vsel %vm1999, %v3846, %v3099
      %v3879 = vsel %vm1999, %v3847, %v3101
      %v3880 = vsel %vm1999, %v3848, %v3103
      %v3881 = vsel %vm1999, %v3849, %v3105
      %v3882 = vsel %vm1999, %v3850, %v3107
      %v3883 = vsel %vm1999, %v3851, %v3109
      %v3884 = vsel %vm1999, %v3852, %v3111
      %v3885 = vsel %vm1999, %v3853, %v3113
      %v3886 = vsel %vm1999, %v3854, %v3115
      %v3887 = vsel %vm1999, %v3855, %v3117
      %v3888 = vsel %vm1999, %v3856, %v3119
      %v3889 = vsel %vm1999, %v3857, %v3121
      %v3890 = vsel %vm2032, %v3858, %v3187
      %v3891 = vsel %vm2032, %v3859, %v3189
      %v3892 = vsel %vm2032, %v3860, %v3191
      %v3893 = vsel %vm2032, %v3861, %v3193
      %v3894 = vsel %vm2032, %v3862, %v3195
      %v3895 = vsel %vm2032, %v3863, %v3197
      %v3896 = vsel %vm2032, %v3864, %v3199
      %v3897 = vsel %vm2032, %v3865, %v3201
      %v3898 = vsel %vm2032, %v3866, %v3203
      %v3899 = vsel %vm2032, %v3867, %v3205
      %v3900 = vsel %vm2032, %v3868, %v3207
      %v3901 = vsel %vm2032, %v3869, %v3209
      %v3902 = vsel %vm2032, %v3870, %v3211
      %v3903 = vsel %vm2032, %v3871, %v3213
      %v3904 = vsel %vm2032, %v3872, %v3215
      %v3905 = vsel %vm2032, %v3873, %v3217
      %v3906 = vsel %vm2032, %v3874, %v3219
      %v3907 = vsel %vm2032, %v3875, %v3221
      %v3908 = vsel %vm2032, %v3876, %v3223
      %v3909 = vsel %vm2032, %v3877, %v3225
      %v3910 = vsel %vm2032, %v3878, %v3227
      %v3911 = vsel %vm2032, %v3879, %v3229
      %v3912 = vsel %vm2032, %v3880, %v3231
      %v3913 = vsel %vm2032, %v3881, %v3233
      %v3914 = vsel %vm2032, %v3882, %v3235
      %v3915 = vsel %vm2032, %v3883, %v3237
      %v3916 = vsel %vm2032, %v3884, %v3239
      %v3917 = vsel %vm2032, %v3885, %v3241
      %v3918 = vsel %vm2032, %v3886, %v3243
      %v3919 = vsel %vm2032, %v3887, %v3245
      %v3920 = vsel %vm2032, %v3888, %v3247
      %v3921 = vsel %vm2032, %v3889, %v3249
      %v3922 = vsel %vm2065, %v3890, %v3315
      %v3923 = vsel %vm2065, %v3891, %v3317
      %v3924 = vsel %vm2065, %v3892, %v3319
      %v3925 = vsel %vm2065, %v3893, %v3321
      %v3926 = vsel %vm2065, %v3894, %v3323
      %v3927 = vsel %vm2065, %v3895, %v3325
      %v3928 = vsel %vm2065, %v3896, %v3327
      %v3929 = vsel %vm2065, %v3897, %v3329
      %v3930 = vsel %vm2065, %v3898, %v3331
      %v3931 = vsel %vm2065, %v3899, %v3333
      %v3932 = vsel %vm2065, %v3900, %v3335
      %v3933 = vsel %vm2065, %v3901, %v3337
      %v3934 = vsel %vm2065, %v3902, %v3339
      %v3935 = vsel %vm2065, %v3903, %v3341
      %v3936 = vsel %vm2065, %v3904, %v3343
      %v3937 = vsel %vm2065, %v3905, %v3345
      %v3938 = vsel %vm2065, %v3906, %v3347
      %v3939 = vsel %vm2065, %v3907, %v3349
      %v3940 = vsel %vm2065, %v3908, %v3351
      %v3941 = vsel %vm2065, %v3909, %v3353
      %v3942 = vsel %vm2065, %v3910, %v3355
      %v3943 = vsel %vm2065, %v3911, %v3357
      %v3944 = vsel %vm2065, %v3912, %v3359
      %v3945 = vsel %vm2065, %v3913, %v3361
      %v3946 = vsel %vm2065, %v3914, %v3363
      %v3947 = vsel %vm2065, %v3915, %v3365
      %v3948 = vsel %vm2065, %v3916, %v3367
      %v3949 = vsel %vm2065, %v3917, %v3369
      %v3950 = vsel %vm2065, %v3918, %v3371
      %v3951 = vsel %vm2065, %v3919, %v3373
      %v3952 = vsel %vm2065, %v3920, %v3375
      %v3953 = vsel %vm2065, %v3921, %v3377
      %v3954 = vsel %vm2098, %v3922, %v3443
      %v3955 = vsel %vm2098, %v3923, %v3445
      %v3956 = vsel %vm2098, %v3924, %v3447
      %v3957 = vsel %vm2098, %v3925, %v3449
      %v3958 = vsel %vm2098, %v3926, %v3451
      %v3959 = vsel %vm2098, %v3927, %v3453
      %v3960 = vsel %vm2098, %v3928, %v3455
      %v3961 = vsel %vm2098, %v3929, %v3457
      %v3962 = vsel %vm2098, %v3930, %v3459
      %v3963 = vsel %vm2098, %v3931, %v3461
      %v3964 = vsel %vm2098, %v3932, %v3463
      %v3965 = vsel %vm2098, %v3933, %v3465
      %v3966 = vsel %vm2098, %v3934, %v3467
      %v3967 = vsel %vm2098, %v3935, %v3469
      %v3968 = vsel %vm2098, %v3936, %v3471
      %v3969 = vsel %vm2098, %v3937, %v3473
      %v3970 = vsel %vm2098, %v3938, %v3475
      %v3971 = vsel %vm2098, %v3939, %v3477
      %v3972 = vsel %vm2098, %v3940, %v3479
      %v3973 = vsel %vm2098, %v3941, %v3481
      %v3974 = vsel %vm2098, %v3942, %v3483
      %v3975 = vsel %vm2098, %v3943, %v3485
      %v3976 = vsel %vm2098, %v3944, %v3487
      %v3977 = vsel %vm2098, %v3945, %v3489
      %v3978 = vsel %vm2098, %v3946, %v3491
      %v3979 = vsel %vm2098, %v3947, %v3493
      %v3980 = vsel %vm2098, %v3948, %v3495
      %v3981 = vsel %vm2098, %v3949, %v3497
      %v3982 = vsel %vm2098, %v3950, %v3499
      %v3983 = vsel %vm2098, %v3951, %v3501
      %v3984 = vsel %vm2098, %v3952, %v3503
      %v3985 = vsel %vm2098, %v3953, %v3505
      %v3986 = vsel %vm2131, %v3954, %v3571
      %v3987 = vsel %vm2131, %v3955, %v3573
      %v3988 = vsel %vm2131, %v3956, %v3575
      %v3989 = vsel %vm2131, %v3957, %v3577
      %v3990 = vsel %vm2131, %v3958, %v3579
      %v3991 = vsel %vm2131, %v3959, %v3581
      %v3992 = vsel %vm2131, %v3960, %v3583
      %v3993 = vsel %vm2131, %v3961, %v3585
      %v3994 = vsel %vm2131, %v3962, %v3587
      %v3995 = vsel %vm2131, %v3963, %v3589
      %v3996 = vsel %vm2131, %v3964, %v3591
      %v3997 = vsel %vm2131, %v3965, %v3593
      %v3998 = vsel %vm2131, %v3966, %v3595
      %v3999 = vsel %vm2131, %v3967, %v3597
      %v4000 = vsel %vm2131, %v3968, %v3599
      %v4001 = vsel %vm2131, %v3969, %v3601
      %v4002 = vsel %vm2131, %v3970, %v3603
      %v4003 = vsel %vm2131, %v3971, %v3605
      %v4004 = vsel %vm2131, %v3972, %v3607
      %v4005 = vsel %vm2131, %v3973, %v3609
      %v4006 = vsel %vm2131, %v3974, %v3611
      %v4007 = vsel %vm2131, %v3975, %v3613
      %v4008 = vsel %vm2131, %v3976, %v3615
      %v4009 = vsel %vm2131, %v3977, %v3617
      %v4010 = vsel %vm2131, %v3978, %v3619
      %v4011 = vsel %vm2131, %v3979, %v3621
      %v4012 = vsel %vm2131, %v3980, %v3623
      %v4013 = vsel %vm2131, %v3981, %v3625
      %v4014 = vsel %vm2131, %v3982, %v3627
      %v4015 = vsel %vm2131, %v3983, %v3629
      %v4016 = vsel %vm2131, %v3984, %v3631
      %v4017 = vsel %vm2131, %v3985, %v3633
      %v4018 = vsel %vm2164, %v3986, %v3699
      %v4019 = vsel %vm2164, %v3987, %v3701
      %v4020 = vsel %vm2164, %v3988, %v3703
      %v4021 = vsel %vm2164, %v3989, %v3705
      %v4022 = vsel %vm2164, %v3990, %v3707
      %v4023 = vsel %vm2164, %v3991, %v3709
      %v4024 = vsel %vm2164, %v3992, %v3711
      %v4025 = vsel %vm2164, %v3993, %v3713
      %v4026 = vsel %vm2164, %v3994, %v3715
      %v4027 = vsel %vm2164, %v3995, %v3717
      %v4028 = vsel %vm2164, %v3996, %v3719
      %v4029 = vsel %vm2164, %v3997, %v3721
      %v4030 = vsel %vm2164, %v3998, %v3723
      %v4031 = vsel %vm2164, %v3999, %v3725
      %v4032 = vsel %vm2164, %v4000, %v3727
      %v4033 = vsel %vm2164, %v4001, %v3729
      %v4034 = vsel %vm2164, %v4002, %v3731
      %v4035 = vsel %vm2164, %v4003, %v3733
      %v4036 = vsel %vm2164, %v4004, %v3735
      %v4037 = vsel %vm2164, %v4005, %v3737
      %v4038 = vsel %vm2164, %v4006, %v3739
      %v4039 = vsel %vm2164, %v4007, %v3741
      %v4040 = vsel %vm2164, %v4008, %v3743
      %v4041 = vsel %vm2164, %v4009, %v3745
      %v4042 = vsel %vm2164, %v4010, %v3747
      %v4043 = vsel %vm2164, %v4011, %v3749
      %v4044 = vsel %vm2164, %v4012, %v3751
      %v4045 = vsel %vm2164, %v4013, %v3753
      %v4046 = vsel %vm2164, %v4014, %v3755
      %v4047 = vsel %vm2164, %v4015, %v3757
      %v4048 = vsel %vm2164, %v4016, %v3759
      %v4049 = vsel %vm2164, %v4017, %v3761
      %v4050 = vld [vmem:[%s3] sm:$0xff]
      %v4051 = vld [vmem:[%s3 + $0x8] sm:$0xff]
      %v4052 = vld [vmem:[%s3 + $0x10] sm:$0xff]
      %v4053 = vld [vmem:[%s3 + $0x18] sm:$0xff]
      %v4054 = vld [vmem:[%s3 + $0x20] sm:$0xff]
      %v4055 = vld [vmem:[%s3 + $0x28] sm:$0xff]
      %v4056 = vld [vmem:[%s3 + $0x30] sm:$0xff]
      %v4057 = vld [vmem:[%s3 + $0x38] sm:$0xff]
      %v4058 = vld [vmem:[%s3 + $0x40] sm:$0xff]
      %v4060 = vsel %vm2206, %v4018, 0
      %v4063 = vsel %vm2206, %v4019, 0
      %v4066 = vsel %vm2206, %v4020, 0
      %v4069 = vsel %vm2206, %v4021, 0
      %v4072 = vsel %vm2206, %v4022, 0
      %v4075 = vsel %vm2206, %v4023, 0
      %v4078 = vsel %vm2206, %v4024, 0
      %v4081 = vsel %vm2206, %v4025, 0
      %v4084 = vsel %vm2206, %v4026, 0
      %v4087 = vsel %vm2206, %v4027, 0
      %v4090 = vsel %vm2206, %v4028, 0
      %v4093 = vsel %vm2206, %v4029, 0
      %v4096 = vsel %vm2206, %v4030, 0
      %v4099 = vsel %vm2206, %v4031, 0
      %v4102 = vsel %vm2206, %v4032, 0
      %v4105 = vsel %vm2206, %v4033, 0
      %v4108 = vsel %vm2206, %v4034, 0
      %v4111 = vsel %vm2206, %v4035, 0
      %v4114 = vsel %vm2206, %v4036, 0
      %v4117 = vsel %vm2206, %v4037, 0
      %v4120 = vsel %vm2206, %v4038, 0
      %v4123 = vsel %vm2206, %v4039, 0
      %v4126 = vsel %vm2206, %v4040, 0
      %v4129 = vsel %vm2206, %v4041, 0
      %v4132 = vsel %vm2206, %v4042, 0
      %v4135 = vsel %vm2206, %v4043, 0
      %v4138 = vsel %vm2206, %v4044, 0
      %v4141 = vsel %vm2206, %v4045, 0
      %v4144 = vsel %vm2206, %v4046, 0
      %v4147 = vsel %vm2206, %v4047, 0
      %v4150 = vsel %vm2206, %v4048, 0
      %v4153 = vsel %vm2206, %v4049, 0
      %4155 = vmatpush.msra.mxu0 0.0
      %4156 = vmatpush.msra.mxu0 0.0
      %4157 = vmatpush.msra.mxu0 0.0
      %4158 = vmatpush.msra.mxu0 0.0
      %4159 = vmatpush.msra.mxu0 0.0
      %4160 = vmatpush.msra.mxu0 0.0
      %4161 = vmatpush.msra.mxu0 0.0
      %4162 = vmatpush.msra.mxu0 %v4058
      %4163 = vmatpush.msra.mxu0 %v4057
      %4164 = vmatpush.msra.mxu0 %v4056
      %4165 = vmatpush.msra.mxu0 %v4055
      %4166 = vmatpush.msra.mxu0 %v4054
      %4167 = vmatpush.msra.mxu0 %v4053
      %4168 = vmatpush.msra.mxu0 %v4052
      %4169 = vmatpush.msra.mxu0 %v4051
      %4170 = vmatpush.msra.mxu0 %v4050
      %4171 = vmatmul.f32.gmra.mxu0 %v4060
      %v4172 = vpop.f32.mrf.mxu0
      %v4173 = vadd.f32 0.0, %v4172
      %4174 = vmatmul.f32.gmra.mxu0 %v4063
      %v4175 = vpop.f32.mrf.mxu0
      %v4176 = vadd.f32 0.0, %v4175
      %4177 = vmatmul.f32.gmra.mxu0 %v4066
      %v4178 = vpop.f32.mrf.mxu0
      %v4179 = vadd.f32 0.0, %v4178
      %4180 = vmatmul.f32.gmra.mxu0 %v4069
      %v4181 = vpop.f32.mrf.mxu0
      %v4182 = vadd.f32 0.0, %v4181
      %4183 = vmatmul.f32.gmra.mxu0 %v4072
      %v4184 = vpop.f32.mrf.mxu0
      %v4185 = vadd.f32 0.0, %v4184
      %4186 = vmatmul.f32.gmra.mxu0 %v4075
      %v4187 = vpop.f32.mrf.mxu0
      %v4188 = vadd.f32 0.0, %v4187
      %4189 = vmatmul.f32.gmra.mxu0 %v4078
      %v4190 = vpop.f32.mrf.mxu0
      %v4191 = vadd.f32 0.0, %v4190
      %4192 = vmatmul.f32.gmra.mxu0 %v4081
      %v4193 = vpop.f32.mrf.mxu0
      %v4194 = vadd.f32 0.0, %v4193
      %4195 = vmatmul.f32.gmra.mxu0 %v4084
      %v4196 = vpop.f32.mrf.mxu0
      %v4197 = vadd.f32 0.0, %v4196
      %4198 = vmatmul.f32.gmra.mxu0 %v4087
      %v4199 = vpop.f32.mrf.mxu0
      %v4200 = vadd.f32 0.0, %v4199
      %4201 = vmatmul.f32.gmra.mxu0 %v4090
      %v4202 = vpop.f32.mrf.mxu0
      %v4203 = vadd.f32 0.0, %v4202
      %4204 = vmatmul.f32.gmra.mxu0 %v4093
      %v4205 = vpop.f32.mrf.mxu0
      %v4206 = vadd.f32 0.0, %v4205
      %4207 = vmatmul.f32.gmra.mxu0 %v4096
      %v4208 = vpop.f32.mrf.mxu0
      %v4209 = vadd.f32 0.0, %v4208
      %4210 = vmatmul.f32.gmra.mxu0 %v4099
      %v4211 = vpop.f32.mrf.mxu0
      %v4212 = vadd.f32 0.0, %v4211
      %4213 = vmatmul.f32.gmra.mxu0 %v4102
      %v4214 = vpop.f32.mrf.mxu0
      %v4215 = vadd.f32 0.0, %v4214
      %4216 = vmatmul.f32.gmra.mxu0 %v4105
      %v4217 = vpop.f32.mrf.mxu0
      %v4218 = vadd.f32 0.0, %v4217
      %4219 = vmatmul.f32.gmra.mxu0 %v4108
      %v4220 = vpop.f32.mrf.mxu0
      %v4221 = vadd.f32 0.0, %v4220
      %4222 = vmatmul.f32.gmra.mxu0 %v4111
      %v4223 = vpop.f32.mrf.mxu0
      %v4224 = vadd.f32 0.0, %v4223
      %4225 = vmatmul.f32.gmra.mxu0 %v4114
      %v4226 = vpop.f32.mrf.mxu0
      %v4227 = vadd.f32 0.0, %v4226
      %4228 = vmatmul.f32.gmra.mxu0 %v4117
      %v4229 = vpop.f32.mrf.mxu0
      %v4230 = vadd.f32 0.0, %v4229
      %4231 = vmatmul.f32.gmra.mxu0 %v4120
      %v4232 = vpop.f32.mrf.mxu0
      %v4233 = vadd.f32 0.0, %v4232
      %4234 = vmatmul.f32.gmra.mxu0 %v4123
      %v4235 = vpop.f32.mrf.mxu0
      %v4236 = vadd.f32 0.0, %v4235
      %4237 = vmatmul.f32.gmra.mxu0 %v4126
      %v4238 = vpop.f32.mrf.mxu0
      %v4239 = vadd.f32 0.0, %v4238
      %4240 = vmatmul.f32.gmra.mxu0 %v4129
      %v4241 = vpop.f32.mrf.mxu0
      %v4242 = vadd.f32 0.0, %v4241
      %4243 = vmatmul.f32.gmra.mxu0 %v4132
      %v4244 = vpop.f32.mrf.mxu0
      %v4245 = vadd.f32 0.0, %v4244
      %4246 = vmatmul.f32.gmra.mxu0 %v4135
      %v4247 = vpop.f32.mrf.mxu0
      %v4248 = vadd.f32 0.0, %v4247
      %4249 = vmatmul.f32.gmra.mxu0 %v4138
      %v4250 = vpop.f32.mrf.mxu0
      %v4251 = vadd.f32 0.0, %v4250
      %4252 = vmatmul.f32.gmra.mxu0 %v4141
      %v4253 = vpop.f32.mrf.mxu0
      %v4254 = vadd.f32 0.0, %v4253
      %4255 = vmatmul.f32.gmra.mxu0 %v4144
      %v4256 = vpop.f32.mrf.mxu0
      %v4257 = vadd.f32 0.0, %v4256
      %4258 = vmatmul.f32.gmra.mxu0 %v4147
      %v4259 = vpop.f32.mrf.mxu0
      %v4260 = vadd.f32 0.0, %v4259
      %4261 = vmatmul.f32.gmra.mxu0 %v4150
      %v4262 = vpop.f32.mrf.mxu0
      %v4263 = vadd.f32 0.0, %v4262
      %4264 = vmatmul.f32.gmra.mxu0 %v4153
      %v4265 = vpop.f32.mrf.mxu0
      %v4266 = vadd.f32 0.0, %v4265
      %4267 = vdwg.mxu0
      %v4268 = vmax.f32 %v4173, 0.0
      %v4269 = vmax.f32 %v4176, 0.0
      %v4270 = vmax.f32 %v4179, 0.0
      %v4271 = vmax.f32 %v4182, 0.0
      %v4272 = vmax.f32 %v4185, 0.0
      %v4273 = vmax.f32 %v4188, 0.0
      %v4274 = vmax.f32 %v4191, 0.0
      %v4275 = vmax.f32 %v4194, 0.0
      %v4276 = vmax.f32 %v4197, 0.0
      %v4277 = vmax.f32 %v4200, 0.0
      %v4278 = vmax.f32 %v4203, 0.0
      %v4279 = vmax.f32 %v4206, 0.0
      %v4280 = vmax.f32 %v4209, 0.0
      %v4281 = vmax.f32 %v4212, 0.0
      %v4282 = vmax.f32 %v4215, 0.0
      %v4283 = vmax.f32 %v4218, 0.0
      %v4284 = vmax.f32 %v4221, 0.0
      %v4285 = vmax.f32 %v4224, 0.0
      %v4286 = vmax.f32 %v4227, 0.0
      %v4287 = vmax.f32 %v4230, 0.0
      %v4288 = vmax.f32 %v4233, 0.0
      %v4289 = vmax.f32 %v4236, 0.0
      %v4290 = vmax.f32 %v4239, 0.0
      %v4291 = vmax.f32 %v4242, 0.0
      %v4292 = vmax.f32 %v4245, 0.0
      %v4293 = vmax.f32 %v4248, 0.0
      %v4294 = vmax.f32 %v4251, 0.0
      %v4295 = vmax.f32 %v4254, 0.0
      %v4296 = vmax.f32 %v4257, 0.0
      %v4297 = vmax.f32 %v4260, 0.0
      %v4298 = vmax.f32 %v4263, 0.0
      %v4299 = vmax.f32 %v4266, 0.0
      %4300 = vxpose.xlu0.b32.start [1/16] %v4268, 128
      %4301 = vxpose.xlu0.b32.cont [2/16] %v4269, 128
      %4302 = vxpose.xlu0.b32.cont [3/16] %v4270, 128
      %4303 = vxpose.xlu0.b32.cont [4/16] %v4271, 128
      %4304 = vxpose.xlu0.b32.cont [5/16] %v4272, 128
      %4305 = vxpose.xlu0.b32.cont [6/16] %v4273, 128
      %4306 = vxpose.xlu0.b32.cont [7/16] %v4274, 128
      %4307 = vxpose.xlu0.b32.cont [8/16] %v4275, 128
      %4308 = vxpose.xlu0.b32.cont [9/16] %v4276, 128
      %4309 = vxpose.xlu0.b32.cont [10/16] %v4277, 128
      %4310 = vxpose.xlu0.b32.cont [11/16] %v4278, 128
      %4311 = vxpose.xlu0.b32.cont [12/16] %v4279, 128
      %4312 = vxpose.xlu0.b32.cont [13/16] %v4280, 128
      %4313 = vxpose.xlu0.b32.cont [14/16] %v4281, 128
      %4314 = vxpose.xlu0.b32.cont [15/16] %v4282, 128
      %4315 = vxpose.xlu0.b32.end [16/16] %v4283, 128
      %v4316 = vpop.trf.xlu0
      %v4317 = vpop.trf.xlu0
      %v4318 = vpop.trf.xlu0
      %v4319 = vpop.trf.xlu0
      %v4320 = vpop.trf.xlu0
      %v4321 = vpop.trf.xlu0
      %v4322 = vpop.trf.xlu0
      %v4323 = vpop.trf.xlu0
      %v4324 = vpop.trf.xlu0
      %v4325 = vpop.trf.xlu0
      %v4326 = vpop.trf.xlu0
      %v4327 = vpop.trf.xlu0
      %v4328 = vpop.trf.xlu0
      %v4329 = vpop.trf.xlu0
      %v4330 = vpop.trf.xlu0
      %v4331 = vpop.trf.xlu0
      %4332 = vxpose.xlu0.b32.start [1/16] %v4284, 128
      %4333 = vxpose.xlu0.b32.cont [2/16] %v4285, 128
      %4334 = vxpose.xlu0.b32.cont [3/16] %v4286, 128
      %4335 = vxpose.xlu0.b32.cont [4/16] %v4287, 128
      %4336 = vxpose.xlu0.b32.cont [5/16] %v4288, 128
      %4337 = vxpose.xlu0.b32.cont [6/16] %v4289, 128
      %4338 = vxpose.xlu0.b32.cont [7/16] %v4290, 128
      %4339 = vxpose.xlu0.b32.cont [8/16] %v4291, 128
      %4340 = vxpose.xlu0.b32.cont [9/16] %v4292, 128
      %4341 = vxpose.xlu0.b32.cont [10/16] %v4293, 128
      %4342 = vxpose.xlu0.b32.cont [11/16] %v4294, 128
      %4343 = vxpose.xlu0.b32.cont [12/16] %v4295, 128
      %4344 = vxpose.xlu0.b32.cont [13/16] %v4296, 128
      %4345 = vxpose.xlu0.b32.cont [14/16] %v4297, 128
      %4346 = vxpose.xlu0.b32.cont [15/16] %v4298, 128
      %4347 = vxpose.xlu0.b32.end [16/16] %v4299, 128
      %v4348 = vpop.trf.xlu0
      %v4349 = vpop.trf.xlu0
      %v4350 = vpop.trf.xlu0
      %v4351 = vpop.trf.xlu0
      %v4352 = vpop.trf.xlu0
      %v4353 = vpop.trf.xlu0
      %v4354 = vpop.trf.xlu0
      %v4355 = vpop.trf.xlu0
      %v4356 = vpop.trf.xlu0
      %v4357 = vpop.trf.xlu0
      %v4358 = vpop.trf.xlu0
      %v4359 = vpop.trf.xlu0
      %v4360 = vpop.trf.xlu0
      %v4361 = vpop.trf.xlu0
      %v4362 = vpop.trf.xlu0
      %v4363 = vpop.trf.xlu0
      %4364 = vst [vmem:[%s217] sm:$0xff] %v4316
      %4365 = vst [vmem:[%s217 + $0x8] sm:$0xff] %v4348
      %p4366 = scmp.lt.s32.totalorder %s15, 1
      %s4367 = scalar_select %p4366, %s15, 1
      %s4368 = smul.addr %s4367, 2
      %s4369 = smul.addr %s4368, 8
      %s4370 = scalar_lea.vmem %s4, %s4369
      // Predicated region
      $region37: #{cat_up_forward.1} parent=35 // pred_check
        %p4371 = pneg %p127
      $region38: #{cat_up_forward.1} parent=35 // pred_check_branch
        %4373 = sbr.rel (%p4371) target = $region40
      $region39: #{cat_up_forward.1} parent=35 // pred_region
        _
      $region40: #{cat_up_forward.1} parent=35 // pred_fallthru
        _
    $region36: #{cat_up_forward.1} parent=5 // pred_fallthru
      _
    %p4374 = scmp.le.s32.totalorder 2, %s10
    // Predicated region
    $region41: #{cat_up_forward.1} parent=5 // pred_check
      %p4375 = pneg %p4374
    $region42: #{cat_up_forward.1} parent=5 // pred_check_branch
      %4377 = sbr.rel (%p4375) target = $region44
    $region43: #{cat_up_forward.1} parent=5 // pred_region
      %s4378 = ssub.s32 %s10, 2
      // Predicated region
      $region45: #{cat_up_forward.1} parent=43 // pred_check
        %p4379 = pneg %p133
      $region46: #{cat_up_forward.1} parent=43 // pred_check_branch
        %4381 = sbr.rel (%p4379) target = $region48
      $region47: #{cat_up_forward.1} parent=43 // pred_region
        %p4382 = scmp.lt.s32.totalorder %s16, 1
        %s4383 = scalar_select %p4382, %s16, 1
        %s4384 = smul.addr %s4383, 2
        %s4385 = smul.addr %s4384, 8
        %s4386 = scalar_lea.vmem %s4, %s4385
      $region48: #{cat_up_forward.1} parent=43 // pred_fallthru
        _
    $region44: #{cat_up_forward.1} parent=5 // pred_fallthru
      _
  $region6: #{cat_up_forward.1} parent=0 // loop_footer
    %s14 = sadd.s32 1, %s10
  $region7: #{cat_up_forward.1} parent=0 // loop_footer_branch
    %9 = sbr.rel target = $region3
  $region8: #{cat_up_forward.1} parent=0 // loop_exit
    _

</llo_original>
